<compile_context>
chip_gen: v7x
topology: tpu7x:2x2x1
jax: 0.10.0
libtpu: 0.0.40
codegen_flags: <defaults>
</compile_context>

<pallas_src>
import jax
import jax.numpy as jnp
from jax.experimental import pallas as pl
from jax.experimental.pallas import tpu as pltpu


def _round_up(x, m):
    return (x + m - 1) // m * m


def _pick_samples_per_block(B, Lp, target_rows=256):
    tb = max(1, min(B, target_rows // Lp))
    while B % tb:
        tb -= 1
    return tb


# ----------------------------- fused TCN kernel ------------------------------

def fused_tcn_stack(x_rows, w_slab, b_slab, meta, *, Lp, samples_per_block,
                    bn_rows=None):
    """Run a whole TemporalConvNet stack as ONE Pallas call.

    x_rows  : (B*Lp, Cin) f32 — rows = (sample, padded position), lanes = chan.
    w_slab  : (Rw, Cw) bf16  — all conv/downsample weights, column packed.
    b_slab  : (1, Cw) f32    — matching biases (same column offsets).
    meta    : list of per-block dicts with static slice offsets.
    bn_rows : optional (B*Lp, 2) f32 — eval-mode BatchNorm as per-row affine.
    """
    Rtot, cin0 = x_rows.shape
    B = Rtot // Lp
    TB = samples_per_block
    assert B % TB == 0
    RB = TB * Lp                               # rows per grid block (mult of 8)
    out_ch = meta[-1]["cout"]
    has_bn = bn_rows is not None

    def kernel(*refs):
        if has_bn:
            x_ref, bn_ref, w_ref, b_ref, o_ref = refs
        else:
            x_ref, w_ref, b_ref, o_ref = refs

        # within-sample position of every row (for causal masking)
        pos = jax.lax.broadcasted_iota(jnp.int32, (RB, 1), 0) % Lp

        def shifted(v, s):
            # causal shift by s rows within each sample: XLU roll + VPU mask
            return jnp.where(pos >= s, pltpu.roll(v, s, axis=0), 0.0)

        h = x_ref[...]
        if has_bn:                             # eval-mode BatchNorm1d
            h = h * bn_ref[:, 0:1] + bn_ref[:, 1:2]

        for m in meta:                         # TemporalBlocks, all in VMEM
            K = len(m["shifts"])
            cin, cout = m["cin"], m["cout"]
            # conv1 taps (+ fused 1x1 residual downsample) in ONE bf16 matmul
            hcat = jnp.concatenate(
                [h] + [shifted(h, s) for s in m["shifts"][1:]], axis=-1)
            w1 = w_ref[0:K * cin, m["c1"]:m["c1"] + m["w1c"]]
            z1 = jnp.dot(hcat.astype(jnp.bfloat16), w1,
                         preferred_element_type=jnp.float32)
            z1 = z1 + b_ref[0:1, m["c1"]:m["c1"] + m["w1c"]]
            if m["down"]:
                a = jnp.maximum(z1[:, :cout], 0.0)
                res = z1[:, cout:]
            else:
                a = jnp.maximum(z1, 0.0)
                res = h
            # conv2 taps in ONE bf16 matmul
            acat = jnp.concatenate(
                [a] + [shifted(a, s) for s in m["shifts"][1:]], axis=-1)
            w2 = w_ref[0:K * cout, m["c2"]:m["c2"] + cout]
            z2 = jnp.dot(acat.astype(jnp.bfloat16), w2,
                         preferred_element_type=jnp.float32)
            z2 = z2 + b_ref[0:1, m["c2"]:m["c2"] + cout]
            h = jnp.maximum(z2 + res, 0.0)
        o_ref[...] = h

    inputs = [x_rows]
    in_specs = [pl.BlockSpec((RB, cin0), lambda i: (i, 0))]
    if has_bn:
        inputs.append(bn_rows)
        in_specs.append(pl.BlockSpec((RB, 2), lambda i: (i, 0)))
    inputs += [w_slab, b_slab]
    in_specs += [pl.BlockSpec(w_slab.shape, lambda i: (0, 0)),
                 pl.BlockSpec(b_slab.shape, lambda i: (0, 0))]

    return pl.pallas_call(
        kernel,
        out_shape=jax.ShapeDtypeStruct((Rtot, out_ch), jnp.float32),
        grid=(B // TB,),
        in_specs=in_specs,
        out_specs=pl.BlockSpec((RB, out_ch), lambda i: (i, 0)),
        compiler_params=pltpu.CompilerParams(
            dimension_semantics=("parallel",)),
    )(*inputs)


# --------------------------- model (forward only) ----------------------------

def tcn_vae_forward(x, packed):
    # x: (N, C, T, V, M) -- PyTorch skeleton-sequence layout
    N, C, T, V, M = x.shape
    L = V * C
    B = N * M
    Lp = packed["Lp"]
    tb = packed["samples_per_block"]

    # -------- EncoderTCN: data_bn + whole TemporalConvNet, ONE pallas_call ----
    xe = jnp.transpose(x, (0, 4, 3, 1, 2)).reshape(B, L, T)
    xe = jnp.pad(xe, ((0, 0), (0, Lp - L), (0, 0))).reshape(B * Lp, T)
    h = fused_tcn_stack(xe, packed["enc_w"], packed["enc_b"],
                        packed["enc_meta"], Lp=Lp, samples_per_block=tb,
                        bn_rows=packed["bn_rows"])                 # (B*Lp, CH)
    CH = h.shape[-1]
    h = h.reshape(B, Lp, CH)[:, :L, :].reshape(B, L * CH)
    # encoder fcn1: weights pre-permuted to the kernel's (p, ch) flatten order
    mid = h @ packed["enc_fc_w"] + packed["enc_fc_b"]

    # -------- DecoderATCN: fcn1 (XLA dot) + whole AntiTCN, ONE pallas_call ----
    d = mid @ packed["dec_fc_w"] + packed["dec_fc_b"]              # (B, L*OT)
    OT = packed["dec_meta"][0]["cin"]
    d = d.reshape(B, L, OT)
    d = jnp.pad(d, ((0, 0), (0, Lp - L), (0, 0))).reshape(B * Lp, OT)
    out = fused_tcn_stack(d, packed["dec_w"], packed["dec_b"],
                          packed["dec_meta"], Lp=Lp, samples_per_block=tb)
    OC = out.shape[-1]
    # TODO(synk): the epilogue transpose could be folded into the decoder
    # kernel (in-kernel per-sample transpose => lane-dense store); kept as a
    # tiny XLA op for lowering safety.
    out = out.reshape(B, Lp, OC)[:, :L, :].transpose(0, 2, 1)      # (B, OC, C*V)
    return mid, out


# ------------------------------ parameter init -------------------------------

def _conv_params(key, K, cin, cout, scale=0.1):
    kw, kb = jax.random.split(key)
    w = jax.random.normal(kw, (K, cin, cout), jnp.float32) * scale
    b = jax.random.normal(kb, (cout,), jnp.float32) * scale
    return w, b


def build_params(key, en_input_size, en_channels, de_channels, output_size,
                 in_channels=3, num_point=22, num_person=1,
                 classifeature=100, kernel_size=2):
    # TODO(synk): weights are synthetic; real PyTorch Conv1d weights are
    # (cout, cin, K) and would be transposed to (K, cin, cout) when porting.
    CV = in_channels * num_point
    MCV = num_person * CV
    keys = iter(jax.random.split(key, 64))
    p = {"kernel_size": kernel_size}
    # encoder data_bn = BatchNorm1d(M*C*V), eval mode; fold into scale/shift
    gamma = 1.0 + 0.05 * jax.random.normal(next(keys), (MCV,), jnp.float32)
    beta = 0.05 * jax.random.normal(next(keys), (MCV,), jnp.float32)
    rmean = 0.05 * jax.random.normal(next(keys), (MCV,), jnp.float32)
    rvar = 1.0 + 0.5 * jax.random.uniform(next(keys), (MCV,), jnp.float32)
    scale = gamma / jnp.sqrt(rvar + 1e-5)
    p["bn_scale"] = scale
    p["bn_shift"] = beta - rmean * scale
    # encoder TemporalConvNet blocks
    enc = []
    for i, cout in enumerate(en_channels):
        cin = en_input_size if i == 0 else en_channels[i - 1]
        blk = {"dilation": 2 ** i}
        blk["w1"], blk["b1"] = _conv_params(next(keys), kernel_size, cin, cout)
        blk["w2"], blk["b2"] = _conv_params(next(keys), kernel_size, cout, cout)
        if cin != cout:
            wd, bd = _conv_params(next(keys), 1, cin, cout)
            blk["wd"], blk["bd"] = wd[0], bd
        enc.append(blk)
    p["enc_tcn"] = enc
    # encoder fcn1: Linear(C*V*ch[-1], classifeature), rows in flatten order
    # ch*CV + p (PyTorch); permuted at pack time.
    fin = CV * en_channels[-1]
    p["enc_fc_w"] = jax.random.normal(next(keys), (fin, classifeature),
                                      jnp.float32) * 0.02
    p["enc_fc_b"] = 0.02 * jax.random.normal(next(keys), (classifeature,),
                                             jnp.float32)
    # decoder fcn1: Linear(classifeature, C*V*de_channels[0])
    fout = CV * de_channels[0]
    p["dec_fc_w"] = jax.random.normal(next(keys), (classifeature, fout),
                                      jnp.float32) * 0.02
    p["dec_fc_b"] = 0.02 * jax.random.normal(next(keys), (fout,), jnp.float32)
    # decoder AntiTemporalConvNet blocks (mirrored channel plan / dilations)
    dec = []
    levels = len(de_channels)
    for i in range(levels):
        cin = de_channels[i]
        cout = de_channels[i + 1] if i < levels - 1 else output_size
        blk = {"dilation": 2 ** (levels - 1 - i)}
        blk["w1"], blk["b1"] = _conv_params(next(keys), kernel_size, cin, cout)
        blk["w2"], blk["b2"] = _conv_params(next(keys), kernel_size, cout, cout)
        if cin != cout:
            wd, bd = _conv_params(next(keys), 1, cin, cout)
            blk["wd"], blk["bd"] = wd[0], bd
        dec.append(blk)
    p["dec_tcn"] = dec
    return p


# ------------------ pack PyTorch-layout params for the kernels ---------------

def _pack_stack(blocks, K):
    """Pack a whole TCN stack: one bf16 weight slab + one f32 bias slab
    (column blocks 128-lane aligned) + static slicing metadata."""
    LANE = 128
    rows_needed = max(max(K * blk["w1"].shape[1], K * blk["w2"].shape[1])
                      for blk in blocks)
    Rw = _round_up(rows_needed, 8)
    pieces_w, pieces_b, meta = [], [], []
    col = 0

    def _add(w, b):
        nonlocal col
        r, c = w.shape
        cpad = _round_up(c, LANE)
        pieces_w.append(jnp.pad(w, ((0, Rw - r), (0, cpad - c))))
        pieces_b.append(jnp.pad(b, ((0, 0), (0, cpad - c))))
        off = col
        col += cpad
        return off

    for blk in blocks:
        _, cin, cout = blk["w1"].shape
        d = int(blk["dilation"])
        shifts = tuple(j * d for j in range(K))
        has_down = "wd" in blk
        # PyTorch tap k multiplies x[l-(K-1-k)*d]  ->  shift j*d uses tap K-1-j
        w1 = jnp.concatenate([blk["w1"][K - 1 - j] for j in range(K)], axis=0)
        b1 = blk["b1"].reshape(1, -1)
        if has_down:
            down = jnp.concatenate(
                [blk["wd"]] + [jnp.zeros((cin, cout), jnp.float32)] * (K - 1),
                axis=0)
            w1 = jnp.concatenate([w1, down], axis=1)       # conv1 | downsample
            b1 = jnp.concatenate([b1, blk["bd"].reshape(1, -1)], axis=1)
        w2 = jnp.concatenate([blk["w2"][K - 1 - j] for j in range(K)], axis=0)
        b2 = blk["b2"].reshape(1, -1)
        c1 = _add(w1, b1)
        c2 = _add(w2, b2)
        meta.append(dict(cin=cin, cout=cout, shifts=shifts, down=has_down,
                         w1c=int(w1.shape[1]), c1=c1, c2=c2))
    w_slab = jnp.concatenate(pieces_w, axis=1).astype(jnp.bfloat16)
    b_slab = jnp.concatenate(pieces_b, axis=1).astype(jnp.float32)
    return w_slab, b_slab, meta


def pack_params(params, x_shape):
    """Eager (outside jit) conversion to the layouts the fused kernels use."""
    N, C, T, V, M = x_shape
    L = V * C
    B = N * M
    Lp = _round_up(L, 8)
    K = params["kernel_size"]
    packed = {"Lp": Lp, "samples_per_block": _pick_samples_per_block(B, Lp)}
    # data_bn scale/shift per padded row (b, p): BN channel = (b % M)*L + p
    ch = jnp.arange(M)[:, None] * L + jnp.arange(L)[None, :]          # (M, L)
    scale = jnp.pad(jnp.tile(params["bn_scale"][ch], (N, 1)),
                    ((0, 0), (0, Lp - L)), constant_values=1.0)
    shift = jnp.pad(jnp.tile(params["bn_shift"][ch], (N, 1)),
                    ((0, 0), (0, Lp - L)))
    packed["bn_rows"] = jnp.stack([scale.reshape(-1), shift.reshape(-1)],
                                  axis=-1)                            # (B*Lp,2)
    packed["enc_w"], packed["enc_b"], packed["enc_meta"] = _pack_stack(
        params["enc_tcn"], K)
    packed["dec_w"], packed["dec_b"], packed["dec_meta"] = _pack_stack(
        params["dec_tcn"], K)
    # encoder fcn1: permute rows from PyTorch (ch*CV + p) to kernel (p*CH + ch)
    CH = params["enc_tcn"][-1]["b2"].shape[0]
    F = params["enc_fc_w"].shape[1]
    packed["enc_fc_w"] = (params["enc_fc_w"].reshape(CH, L, F)
                          .transpose(1, 0, 2).reshape(L * CH, F))
    packed["enc_fc_b"] = params["enc_fc_b"]
    # decoder fcn1: permute cols from PyTorch (ot*CV + p) to kernel (p*OT + ot)
    OT = params["dec_tcn"][0]["w1"].shape[1]
    packed["dec_fc_w"] = (params["dec_fc_w"].reshape(F, OT, L)
                          .transpose(0, 2, 1).reshape(F, L * OT))
    packed["dec_fc_b"] = (params["dec_fc_b"].reshape(OT, L)
                          .transpose(1, 0).reshape(L * OT))
    return packed


# ------------------------ pure-JAX reference (validation) --------------------

def _ref_tcn_stack(x3, blocks, K, bn=None):
    """Mirror of the kernel math on (B, L, C) arrays: tap-concatenated bf16
    matmuls with f32 accumulation, explicit per-sample causal shifts."""
    h = x3 if bn is None else x3 * bn[0] + bn[1]
    L = x3.shape[1]
    bf = jnp.bfloat16

    def shift(a, s):
        if s == 0:
            return a
        return jnp.pad(a, ((0, 0), (s, 0), (0, 0)))[:, :L, :]

    for blk in blocks:
        _, cin, cout = blk["w1"].shape
        d = int(blk["dilation"])
        shifts = [j * d for j in range(K)]
        w1 = jnp.concatenate([blk["w1"][K - 1 - j] for j in range(K)], axis=0)
        b1 = blk["b1"].reshape(1, 1, -1)
        has_down = "wd" in blk
        if has_down:
            down = jnp.concatenate(
                [blk["wd"]] + [jnp.zeros((cin, cout), jnp.float32)] * (K - 1),
                axis=0)
            w1 = jnp.concatenate([w1, down], axis=1)
            b1 = jnp.concatenate([b1, blk["bd"].reshape(1, 1, -1)], axis=-1)
        w2 = jnp.concatenate([blk["w2"][K - 1 - j] for j in range(K)], axis=0)
        b2 = blk["b2"].reshape(1, 1, -1)

        hcat = jnp.concatenate([shift(h, s) for s in shifts], axis=-1)
        z1 = jnp.einsum("blc,cd->bld", hcat.astype(bf), w1.astype(bf),
                        preferred_element_type=jnp.float32) + b1
        if has_down:
            a = jnp.maximum(z1[..., :cout], 0.0)
            res = z1[..., cout:]
        else:
            a = jnp.maximum(z1, 0.0)
            res = h
        acat = jnp.concatenate([shift(a, s) for s in shifts], axis=-1)
        z2 = jnp.einsum("blc,cd->bld", acat.astype(bf), w2.astype(bf),
                        preferred_element_type=jnp.float32) + b2
        h = jnp.maximum(z2 + res, 0.0)
    return h


# ----------------------------------- main -------------------------------------

if __name__ == "__main__":
    # small shapes consistent with the module defaults (in_channels=3, V=22)
    N, C, T, V, M = 4, 3, 8, 22, 1
    en_input_size = T            # Conv1d channel dim after the permutes is T
    en_channels = [16, 16]
    de_channels = [16, 16]
    output_size = T              # decoder reconstructs T frames
    classifeature = 100
    K = 2

    key = jax.random.PRNGKey(0)
    kx, kp = jax.random.split(key)
    x = jax.random.normal(kx, (N, C, T, V, M), jnp.float32)
    params = build_params(kp, en_input_size, en_channels, de_channels,
                          output_size, in_channels=C, num_point=V,
                          num_person=M, classifeature=classifeature,
                          kernel_size=K)
    packed = pack_params(params, x.shape)

    fwd = jax.jit(lambda inp: tcn_vae_forward(inp, packed))
    mid, out = fwd(x)
    jax.block_until_ready((mid, out))

    B, L = N * M, C * V
    assert mid.shape == (B, classifeature)
    assert out.shape == (B, output_size, L)
    assert bool(jnp.all(jnp.isfinite(mid))) and bool(jnp.all(jnp.isfinite(out)))

    # pure-JAX reference check of the fused stacks (same packed fc weights)
    Lp = packed["Lp"]
    xe3 = jnp.transpose(x, (0, 4, 3, 1, 2)).reshape(B, L, T)
    bn3 = packed["bn_rows"].reshape(B, Lp, 2)[:, :L, :]
    h_ref = _ref_tcn_stack(xe3, params["enc_tcn"], K,
                           bn=(bn3[..., 0:1], bn3[..., 1:2]))
    CH = h_ref.shape[-1]
    mid_ref = (h_ref.reshape(B, L * CH) @ packed["enc_fc_w"]
               + packed["enc_fc_b"])
    OT = de_channels[0]
    d_ref = (mid_ref @ packed["dec_fc_w"] + packed["dec_fc_b"]).reshape(
        B, L, OT)
    o_ref = _ref_tcn_stack(d_ref, params["dec_tcn"], K)
    out_ref = o_ref.transpose(0, 2, 1)
    assert bool(jnp.allclose(mid, mid_ref, rtol=2e-2, atol=2e-2)), "enc mismatch"
    assert bool(jnp.allclose(out, out_ref, rtol=2e-2, atol=2e-2)), "dec mismatch"

    print("KERNEL_OK")
</pallas_src>

<mosaic_0001>
module attributes {stable_mosaic.version = 11 : i64} {
  func.func @kernel(%arg0: i32, %arg1: memref<144x8xf32, #tpu.memory_space<vmem>>, %arg2: memref<144x2xf32, #tpu.memory_space<vmem>>, %arg3: memref<32x512xbf16, #tpu.memory_space<vmem>>, %arg4: memref<1x512xf32, #tpu.memory_space<vmem>>, %arg5: memref<144x16xf32, #tpu.memory_space<vmem>>) attributes {dimension_semantics = [#tpu.dimension_semantics<parallel>], iteration_bounds = array<i64: 2>, scalar_prefetch = 0 : i64, scratch_operands = 0 : i64, tpu.core_type = #tpu.core_type<tc>, window_params = [{transform_indices = @transform_0, window_bounds = array<i64: 144, 8>}, {transform_indices = @transform_1, window_bounds = array<i64: 144, 2>}, {pipeline_mode = #tpu.pipeline_mode<synchronous>, transform_indices = @transform_2, window_bounds = array<i64: 32, 512>}, {pipeline_mode = #tpu.pipeline_mode<synchronous>, transform_indices = @transform_3, window_bounds = array<i64: 1, 512>}, {transform_indices = @transform_4, window_bounds = array<i64: 144, 16>}]} {
    %0 = tpu.iota {dimensions = array<i32: 0>} : vector<144x1xi32>
    %c72_i32 = arith.constant 72 : i32
    %c0_i32 = arith.constant 0 : i32
    %1 = arith.cmpi eq, %c72_i32, %c0_i32 : i32
    %c1_i32 = arith.constant 1 : i32
    %2 = arith.select %1, %c1_i32, %c72_i32 : i32
    %3 = vector.broadcast %2 : i32 to vector<144x1xi32>
    %4 = arith.remsi %0, %3 : vector<144x1xi32>
    %c0_i32_0 = arith.constant 0 : i32
    %5 = vector.broadcast %c0_i32_0 : i32 to vector<144x1xi32>
    %6 = arith.cmpi ne, %4, %5 : vector<144x1xi32>
    %c0_i32_1 = arith.constant 0 : i32
    %7 = vector.broadcast %c0_i32_1 : i32 to vector<144x1xi32>
    %8 = arith.cmpi slt, %4, %7 : vector<144x1xi32>
    %c0_i32_2 = arith.constant 0 : i32
    %9 = arith.cmpi slt, %2, %c0_i32_2 : i32
    %10 = vector.broadcast %9 : i1 to vector<144x1xi1>
    %11 = vector.broadcast %10 : vector<144x1xi1> to vector<144x1xi1>
    %12 = arith.xori %8, %11 : vector<144x1xi1>
    %13 = arith.andi %12, %6 : vector<144x1xi1>
    %14 = vector.broadcast %2 : i32 to vector<144x1xi32>
    %15 = arith.addi %4, %14 : vector<144x1xi32>
    %16 = arith.select %13, %15, %4 : vector<144x1xi1>, vector<144x1xi32>
    %c0 = arith.constant 0 : index
    %c0_3 = arith.constant 0 : index
    %17 = vector.load %arg1[%c0, %c0_3] : memref<144x8xf32, #tpu.memory_space<vmem>>, vector<144x8xf32>
    %c0_4 = arith.constant 0 : index
    %c0_5 = arith.constant 0 : index
    %18 = vector.load %arg2[%c0_4, %c0_5] : memref<144x2xf32, #tpu.memory_space<vmem>>, vector<144x1xf32>
    %19 = vector.broadcast %18 : vector<144x1xf32> to vector<144x8xf32>
    %20 = arith.mulf %17, %19 : vector<144x8xf32>
    %c0_6 = arith.constant 0 : index
    %c1 = arith.constant 1 : index
    %21 = vector.load %arg2[%c0_6, %c1] : memref<144x2xf32, #tpu.memory_space<vmem>>, vector<144x1xf32>
    %22 = vector.broadcast %21 : vector<144x1xf32> to vector<144x8xf32>
    %23 = arith.addf %20, %22 : vector<144x8xf32>
    %c1_i32_7 = arith.constant 1 : i32
    %24 = vector.broadcast %c1_i32_7 : i32 to vector<144x1xi32>
    %25 = arith.cmpi sge, %16, %24 : vector<144x1xi32>
    %c1_i32_8 = arith.constant 1 : i32
    %26 = tpu.dynamic_rotate %23 by %c1_i32_8 dim 0 : vector<144x8xf32>, i32 -> vector<144x8xf32>
    %cst = arith.constant 0.000000e+00 : f32
    %27 = vector.shape_cast %25 : vector<144x1xi1> to vector<144x1xi1>
    %28 = vector.broadcast %27 : vector<144x1xi1> to vector<144x8xi1>
    %29 = vector.broadcast %cst : f32 to vector<144x8xf32>
    %30 = arith.select %28, %26, %29 : vector<144x8xi1>, vector<144x8xf32>
    %31 = tpu.concatenate %23, %30 in 1 : vector<144x8xf32>, vector<144x8xf32> -> vector<144x16xf32>
    %c0_9 = arith.constant 0 : index
    %c0_10 = arith.constant 0 : index
    %32 = vector.load %arg3[%c0_9, %c0_10] : memref<32x512xbf16, #tpu.memory_space<vmem>>, vector<16x32xbf16>
    %33 = arith.truncf %31 : vector<144x16xf32> to vector<144x16xbf16>
    %cst_11 = arith.constant dense<0.000000e+00> : vector<144x32xf32>
    %34 = tpu.matmul %33, %32, %cst_11 {dimension_numbers = #tpu.dot_dimension_numbers<[1], [0], [0], [1], [0, 0, 1, 1], [], []>} : vector<144x16xbf16>, vector<16x32xbf16>, vector<144x32xf32> -> vector<144x32xf32>
    %c0_12 = arith.constant 0 : index
    %c0_13 = arith.constant 0 : index
    %35 = vector.load %arg4[%c0_12, %c0_13] : memref<1x512xf32, #tpu.memory_space<vmem>>, vector<1x32xf32>
    %36 = vector.broadcast %35 : vector<1x32xf32> to vector<144x32xf32>
    %37 = arith.addf %34, %36 : vector<144x32xf32>
    %38 = vector.extract_strided_slice %37 {offsets = [0, 0], sizes = [144, 16], strides = [1, 1]} : vector<144x32xf32> to vector<144x16xf32>
    %cst_14 = arith.constant 0.000000e+00 : f32
    %39 = vector.broadcast %cst_14 : f32 to vector<144x16xf32>
    %40 = arith.maximumf %38, %39 : vector<144x16xf32>
    %41 = vector.extract_strided_slice %37 {offsets = [0, 16], sizes = [144, 16], strides = [1, 1]} : vector<144x32xf32> to vector<144x16xf32>
    %c1_i32_15 = arith.constant 1 : i32
    %42 = vector.broadcast %c1_i32_15 : i32 to vector<144x1xi32>
    %43 = arith.cmpi sge, %16, %42 : vector<144x1xi32>
    %c1_i32_16 = arith.constant 1 : i32
    %44 = tpu.dynamic_rotate %40 by %c1_i32_16 dim 0 : vector<144x16xf32>, i32 -> vector<144x16xf32>
    %cst_17 = arith.constant 0.000000e+00 : f32
    %45 = vector.shape_cast %43 : vector<144x1xi1> to vector<144x1xi1>
    %46 = vector.broadcast %45 : vector<144x1xi1> to vector<144x16xi1>
    %47 = vector.broadcast %cst_17 : f32 to vector<144x16xf32>
    %48 = arith.select %46, %44, %47 : vector<144x16xi1>, vector<144x16xf32>
    %49 = tpu.concatenate %40, %48 in 1 : vector<144x16xf32>, vector<144x16xf32> -> vector<144x32xf32>
    %c0_18 = arith.constant 0 : index
    %c128 = arith.constant 128 : index
    %50 = vector.load %arg3[%c0_18, %c128] : memref<32x512xbf16, #tpu.memory_space<vmem>>, vector<32x16xbf16>
    %51 = arith.truncf %49 : vector<144x32xf32> to vector<144x32xbf16>
    %cst_19 = arith.constant dense<0.000000e+00> : vector<144x16xf32>
    %52 = tpu.matmul %51, %50, %cst_19 {dimension_numbers = #tpu.dot_dimension_numbers<[1], [0], [0], [1], [0, 0, 1, 1], [], []>} : vector<144x32xbf16>, vector<32x16xbf16>, vector<144x16xf32> -> vector<144x16xf32>
    %c0_20 = arith.constant 0 : index
    %c128_21 = arith.constant 128 : index
    %53 = vector.load %arg4[%c0_20, %c128_21] : memref<1x512xf32, #tpu.memory_space<vmem>>, vector<1x16xf32>
    %54 = vector.broadcast %53 : vector<1x16xf32> to vector<144x16xf32>
    %55 = arith.addf %52, %54 : vector<144x16xf32>
    %56 = arith.addf %55, %41 : vector<144x16xf32>
    %cst_22 = arith.constant 0.000000e+00 : f32
    %57 = vector.broadcast %cst_22 : f32 to vector<144x16xf32>
    %58 = arith.maximumf %56, %57 : vector<144x16xf32>
    %c2_i32 = arith.constant 2 : i32
    %59 = vector.broadcast %c2_i32 : i32 to vector<144x1xi32>
    %60 = arith.cmpi sge, %16, %59 : vector<144x1xi32>
    %c2_i32_23 = arith.constant 2 : i32
    %61 = tpu.dynamic_rotate %58 by %c2_i32_23 dim 0 : vector<144x16xf32>, i32 -> vector<144x16xf32>
    %cst_24 = arith.constant 0.000000e+00 : f32
    %62 = vector.shape_cast %60 : vector<144x1xi1> to vector<144x1xi1>
    %63 = vector.broadcast %62 : vector<144x1xi1> to vector<144x16xi1>
    %64 = vector.broadcast %cst_24 : f32 to vector<144x16xf32>
    %65 = arith.select %63, %61, %64 : vector<144x16xi1>, vector<144x16xf32>
    %66 = tpu.concatenate %58, %65 in 1 : vector<144x16xf32>, vector<144x16xf32> -> vector<144x32xf32>
    %c0_25 = arith.constant 0 : index
    %c256 = arith.constant 256 : index
    %67 = vector.load %arg3[%c0_25, %c256] : memref<32x512xbf16, #tpu.memory_space<vmem>>, vector<32x16xbf16>
    %68 = arith.truncf %66 : vector<144x32xf32> to vector<144x32xbf16>
    %cst_26 = arith.constant dense<0.000000e+00> : vector<144x16xf32>
    %69 = tpu.matmul %68, %67, %cst_26 {dimension_numbers = #tpu.dot_dimension_numbers<[1], [0], [0], [1], [0, 0, 1, 1], [], []>} : vector<144x32xbf16>, vector<32x16xbf16>, vector<144x16xf32> -> vector<144x16xf32>
    %c0_27 = arith.constant 0 : index
    %c256_28 = arith.constant 256 : index
    %70 = vector.load %arg4[%c0_27, %c256_28] : memref<1x512xf32, #tpu.memory_space<vmem>>, vector<1x16xf32>
    %71 = vector.broadcast %70 : vector<1x16xf32> to vector<144x16xf32>
    %72 = arith.addf %69, %71 : vector<144x16xf32>
    %cst_29 = arith.constant 0.000000e+00 : f32
    %73 = vector.broadcast %cst_29 : f32 to vector<144x16xf32>
    %74 = arith.maximumf %72, %73 : vector<144x16xf32>
    %c2_i32_30 = arith.constant 2 : i32
    %75 = vector.broadcast %c2_i32_30 : i32 to vector<144x1xi32>
    %76 = arith.cmpi sge, %16, %75 : vector<144x1xi32>
    %c2_i32_31 = arith.constant 2 : i32
    %77 = tpu.dynamic_rotate %74 by %c2_i32_31 dim 0 : vector<144x16xf32>, i32 -> vector<144x16xf32>
    %cst_32 = arith.constant 0.000000e+00 : f32
    %78 = vector.shape_cast %76 : vector<144x1xi1> to vector<144x1xi1>
    %79 = vector.broadcast %78 : vector<144x1xi1> to vector<144x16xi1>
    %80 = vector.broadcast %cst_32 : f32 to vector<144x16xf32>
    %81 = arith.select %79, %77, %80 : vector<144x16xi1>, vector<144x16xf32>
    %82 = tpu.concatenate %74, %81 in 1 : vector<144x16xf32>, vector<144x16xf32> -> vector<144x32xf32>
    %c0_33 = arith.constant 0 : index
    %c384 = arith.constant 384 : index
    %83 = vector.load %arg3[%c0_33, %c384] : memref<32x512xbf16, #tpu.memory_space<vmem>>, vector<32x16xbf16>
    %84 = arith.truncf %82 : vector<144x32xf32> to vector<144x32xbf16>
    %cst_34 = arith.constant dense<0.000000e+00> : vector<144x16xf32>
    %85 = tpu.matmul %84, %83, %cst_34 {dimension_numbers = #tpu.dot_dimension_numbers<[1], [0], [0], [1], [0, 0, 1, 1], [], []>} : vector<144x32xbf16>, vector<32x16xbf16>, vector<144x16xf32> -> vector<144x16xf32>
    %c0_35 = arith.constant 0 : index
    %c384_36 = arith.constant 384 : index
    %86 = vector.load %arg4[%c0_35, %c384_36] : memref<1x512xf32, #tpu.memory_space<vmem>>, vector<1x16xf32>
    %87 = vector.broadcast %86 : vector<1x16xf32> to vector<144x16xf32>
    %88 = arith.addf %85, %87 : vector<144x16xf32>
    %89 = arith.addf %88, %58 : vector<144x16xf32>
    %cst_37 = arith.constant 0.000000e+00 : f32
    %90 = vector.broadcast %cst_37 : f32 to vector<144x16xf32>
    %91 = arith.maximumf %89, %90 : vector<144x16xf32>
    %c0_38 = arith.constant 0 : index
    %c0_39 = arith.constant 0 : index
    %92 = vector.load %arg5[%c0_38, %c0_39] : memref<144x16xf32, #tpu.memory_space<vmem>>, vector<144x16xf32>
    tpu.vector_store %arg5[%c0_38, %c0_39], %91 {strides = array<i32>} : memref<144x16xf32, #tpu.memory_space<vmem>>, vector<144x16xf32>,
    return
  }
  func.func @transform_0(%arg0: i32) -> (i32, i32) {
    %c0_i32 = arith.constant 0 : i32
    %c0_i32_0 = arith.constant 0 : i32
    return %arg0, %c0_i32 : i32, i32
  }
  func.func @transform_1(%arg0: i32) -> (i32, i32) {
    %c0_i32 = arith.constant 0 : i32
    %c0_i32_0 = arith.constant 0 : i32
    return %arg0, %c0_i32 : i32, i32
  }
  func.func @transform_2(%arg0: i32) -> (i32, i32) {
    %c0_i32 = arith.constant 0 : i32
    %c0_i32_0 = arith.constant 0 : i32
    %c0_i32_1 = arith.constant 0 : i32
    return %c0_i32, %c0_i32_0 : i32, i32
  }
  func.func @transform_3(%arg0: i32) -> (i32, i32) {
    %c0_i32 = arith.constant 0 : i32
    %c0_i32_0 = arith.constant 0 : i32
    %c0_i32_1 = arith.constant 0 : i32
    return %c0_i32, %c0_i32_0 : i32, i32
  }
  func.func @transform_4(%arg0: i32) -> (i32, i32) {
    %c0_i32 = arith.constant 0 : i32
    %c0_i32_0 = arith.constant 0 : i32
    return %arg0, %c0_i32 : i32, i32
  }
}

module attributes {stable_mosaic.version = 11 : i64} {
  func.func @kernel(%arg0: i32, %arg1: memref<144x16xf32, #tpu.memory_space<vmem>>, %arg2: memref<32x512xbf16, #tpu.memory_space<vmem>>, %arg3: memref<1x512xf32, #tpu.memory_space<vmem>>, %arg4: memref<144x8xf32, #tpu.memory_space<vmem>>) attributes {dimension_semantics = [#tpu.dimension_semantics<parallel>], iteration_bounds = array<i64: 2>, scalar_prefetch = 0 : i64, scratch_operands = 0 : i64, tpu.core_type = #tpu.core_type<tc>, window_params = [{transform_indices = @transform_0, window_bounds = array<i64: 144, 16>}, {pipeline_mode = #tpu.pipeline_mode<synchronous>, transform_indices = @transform_1, window_bounds = array<i64: 32, 512>}, {pipeline_mode = #tpu.pipeline_mode<synchronous>, transform_indices = @transform_2, window_bounds = array<i64: 1, 512>}, {transform_indices = @transform_3, window_bounds = array<i64: 144, 8>}]} {
    %0 = tpu.iota {dimensions = array<i32: 0>} : vector<144x1xi32>
    %c72_i32 = arith.constant 72 : i32
    %c0_i32 = arith.constant 0 : i32
    %1 = arith.cmpi eq, %c72_i32, %c0_i32 : i32
    %c1_i32 = arith.constant 1 : i32
    %2 = arith.select %1, %c1_i32, %c72_i32 : i32
    %3 = vector.broadcast %2 : i32 to vector<144x1xi32>
    %4 = arith.remsi %0, %3 : vector<144x1xi32>
    %c0_i32_0 = arith.constant 0 : i32
    %5 = vector.broadcast %c0_i32_0 : i32 to vector<144x1xi32>
    %6 = arith.cmpi ne, %4, %5 : vector<144x1xi32>
    %c0_i32_1 = arith.constant 0 : i32
    %7 = vector.broadcast %c0_i32_1 : i32 to vector<144x1xi32>
    %8 = arith.cmpi slt, %4, %7 : vector<144x1xi32>
    %c0_i32_2 = arith.constant 0 : i32
    %9 = arith.cmpi slt, %2, %c0_i32_2 : i32
    %10 = vector.broadcast %9 : i1 to vector<144x1xi1>
    %11 = vector.broadcast %10 : vector<144x1xi1> to vector<144x1xi1>
    %12 = arith.xori %8, %11 : vector<144x1xi1>
    %13 = arith.andi %12, %6 : vector<144x1xi1>
    %14 = vector.broadcast %2 : i32 to vector<144x1xi32>
    %15 = arith.addi %4, %14 : vector<144x1xi32>
    %16 = arith.select %13, %15, %4 : vector<144x1xi1>, vector<144x1xi32>
    %c0 = arith.constant 0 : index
    %c0_3 = arith.constant 0 : index
    %17 = vector.load %arg1[%c0, %c0_3] : memref<144x16xf32, #tpu.memory_space<vmem>>, vector<144x16xf32>
    %c2_i32 = arith.constant 2 : i32
    %18 = vector.broadcast %c2_i32 : i32 to vector<144x1xi32>
    %19 = arith.cmpi sge, %16, %18 : vector<144x1xi32>
    %c2_i32_4 = arith.constant 2 : i32
    %20 = tpu.dynamic_rotate %17 by %c2_i32_4 dim 0 : vector<144x16xf32>, i32 -> vector<144x16xf32>
    %cst = arith.constant 0.000000e+00 : f32
    %21 = vector.shape_cast %19 : vector<144x1xi1> to vector<144x1xi1>
    %22 = vector.broadcast %21 : vector<144x1xi1> to vector<144x16xi1>
    %23 = vector.broadcast %cst : f32 to vector<144x16xf32>
    %24 = arith.select %22, %20, %23 : vector<144x16xi1>, vector<144x16xf32>
    %25 = tpu.concatenate %17, %24 in 1 : vector<144x16xf32>, vector<144x16xf32> -> vector<144x32xf32>
    %c0_5 = arith.constant 0 : index
    %c0_6 = arith.constant 0 : index
    %26 = vector.load %arg2[%c0_5, %c0_6] : memref<32x512xbf16, #tpu.memory_space<vmem>>, vector<32x16xbf16>
    %27 = arith.truncf %25 : vector<144x32xf32> to vector<144x32xbf16>
    %cst_7 = arith.constant dense<0.000000e+00> : vector<144x16xf32>
    %28 = tpu.matmul %27, %26, %cst_7 {dimension_numbers = #tpu.dot_dimension_numbers<[1], [0], [0], [1], [0, 0, 1, 1], [], []>} : vector<144x32xbf16>, vector<32x16xbf16>, vector<144x16xf32> -> vector<144x16xf32>
    %c0_8 = arith.constant 0 : index
    %c0_9 = arith.constant 0 : index
    %29 = vector.load %arg3[%c0_8, %c0_9] : memref<1x512xf32, #tpu.memory_space<vmem>>, vector<1x16xf32>
    %30 = vector.broadcast %29 : vector<1x16xf32> to vector<144x16xf32>
    %31 = arith.addf %28, %30 : vector<144x16xf32>
    %cst_10 = arith.constant 0.000000e+00 : f32
    %32 = vector.broadcast %cst_10 : f32 to vector<144x16xf32>
    %33 = arith.maximumf %31, %32 : vector<144x16xf32>
    %c2_i32_11 = arith.constant 2 : i32
    %34 = vector.broadcast %c2_i32_11 : i32 to vector<144x1xi32>
    %35 = arith.cmpi sge, %16, %34 : vector<144x1xi32>
    %c2_i32_12 = arith.constant 2 : i32
    %36 = tpu.dynamic_rotate %33 by %c2_i32_12 dim 0 : vector<144x16xf32>, i32 -> vector<144x16xf32>
    %cst_13 = arith.constant 0.000000e+00 : f32
    %37 = vector.shape_cast %35 : vector<144x1xi1> to vector<144x1xi1>
    %38 = vector.broadcast %37 : vector<144x1xi1> to vector<144x16xi1>
    %39 = vector.broadcast %cst_13 : f32 to vector<144x16xf32>
    %40 = arith.select %38, %36, %39 : vector<144x16xi1>, vector<144x16xf32>
    %41 = tpu.concatenate %33, %40 in 1 : vector<144x16xf32>, vector<144x16xf32> -> vector<144x32xf32>
    %c0_14 = arith.constant 0 : index
    %c128 = arith.constant 128 : index
    %42 = vector.load %arg2[%c0_14, %c128] : memref<32x512xbf16, #tpu.memory_space<vmem>>, vector<32x16xbf16>
    %43 = arith.truncf %41 : vector<144x32xf32> to vector<144x32xbf16>
    %cst_15 = arith.constant dense<0.000000e+00> : vector<144x16xf32>
    %44 = tpu.matmul %43, %42, %cst_15 {dimension_numbers = #tpu.dot_dimension_numbers<[1], [0], [0], [1], [0, 0, 1, 1], [], []>} : vector<144x32xbf16>, vector<32x16xbf16>, vector<144x16xf32> -> vector<144x16xf32>
    %c0_16 = arith.constant 0 : index
    %c128_17 = arith.constant 128 : index
    %45 = vector.load %arg3[%c0_16, %c128_17] : memref<1x512xf32, #tpu.memory_space<vmem>>, vector<1x16xf32>
    %46 = vector.broadcast %45 : vector<1x16xf32> to vector<144x16xf32>
    %47 = arith.addf %44, %46 : vector<144x16xf32>
    %48 = arith.addf %47, %17 : vector<144x16xf32>
    %cst_18 = arith.constant 0.000000e+00 : f32
    %49 = vector.broadcast %cst_18 : f32 to vector<144x16xf32>
    %50 = arith.maximumf %48, %49 : vector<144x16xf32>
    %c1_i32_19 = arith.constant 1 : i32
    %51 = vector.broadcast %c1_i32_19 : i32 to vector<144x1xi32>
    %52 = arith.cmpi sge, %16, %51 : vector<144x1xi32>
    %c1_i32_20 = arith.constant 1 : i32
    %53 = tpu.dynamic_rotate %50 by %c1_i32_20 dim 0 : vector<144x16xf32>, i32 -> vector<144x16xf32>
    %cst_21 = arith.constant 0.000000e+00 : f32
    %54 = vector.shape_cast %52 : vector<144x1xi1> to vector<144x1xi1>
    %55 = vector.broadcast %54 : vector<144x1xi1> to vector<144x16xi1>
    %56 = vector.broadcast %cst_21 : f32 to vector<144x16xf32>
    %57 = arith.select %55, %53, %56 : vector<144x16xi1>, vector<144x16xf32>
    %58 = tpu.concatenate %50, %57 in 1 : vector<144x16xf32>, vector<144x16xf32> -> vector<144x32xf32>
    %c0_22 = arith.constant 0 : index
    %c256 = arith.constant 256 : index
    %59 = vector.load %arg2[%c0_22, %c256] : memref<32x512xbf16, #tpu.memory_space<vmem>>, vector<32x16xbf16>
    %60 = arith.truncf %58 : vector<144x32xf32> to vector<144x32xbf16>
    %cst_23 = arith.constant dense<0.000000e+00> : vector<144x16xf32>
    %61 = tpu.matmul %60, %59, %cst_23 {dimension_numbers = #tpu.dot_dimension_numbers<[1], [0], [0], [1], [0, 0, 1, 1], [], []>} : vector<144x32xbf16>, vector<32x16xbf16>, vector<144x16xf32> -> vector<144x16xf32>
    %c0_24 = arith.constant 0 : index
    %c256_25 = arith.constant 256 : index
    %62 = vector.load %arg3[%c0_24, %c256_25] : memref<1x512xf32, #tpu.memory_space<vmem>>, vector<1x16xf32>
    %63 = vector.broadcast %62 : vector<1x16xf32> to vector<144x16xf32>
    %64 = arith.addf %61, %63 : vector<144x16xf32>
    %65 = vector.extract_strided_slice %64 {offsets = [0, 0], sizes = [144, 8], strides = [1, 1]} : vector<144x16xf32> to vector<144x8xf32>
    %cst_26 = arith.constant 0.000000e+00 : f32
    %66 = vector.broadcast %cst_26 : f32 to vector<144x8xf32>
    %67 = arith.maximumf %65, %66 : vector<144x8xf32>
    %68 = vector.extract_strided_slice %64 {offsets = [0, 8], sizes = [144, 8], strides = [1, 1]} : vector<144x16xf32> to vector<144x8xf32>
    %c1_i32_27 = arith.constant 1 : i32
    %69 = vector.broadcast %c1_i32_27 : i32 to vector<144x1xi32>
    %70 = arith.cmpi sge, %16, %69 : vector<144x1xi32>
    %c1_i32_28 = arith.constant 1 : i32
    %71 = tpu.dynamic_rotate %67 by %c1_i32_28 dim 0 : vector<144x8xf32>, i32 -> vector<144x8xf32>
    %cst_29 = arith.constant 0.000000e+00 : f32
    %72 = vector.shape_cast %70 : vector<144x1xi1> to vector<144x1xi1>
    %73 = vector.broadcast %72 : vector<144x1xi1> to vector<144x8xi1>
    %74 = vector.broadcast %cst_29 : f32 to vector<144x8xf32>
    %75 = arith.select %73, %71, %74 : vector<144x8xi1>, vector<144x8xf32>
    %76 = tpu.concatenate %67, %75 in 1 : vector<144x8xf32>, vector<144x8xf32> -> vector<144x16xf32>
    %c0_30 = arith.constant 0 : index
    %c384 = arith.constant 384 : index
    %77 = vector.load %arg2[%c0_30, %c384] : memref<32x512xbf16, #tpu.memory_space<vmem>>, vector<16x8xbf16>
    %78 = arith.truncf %76 : vector<144x16xf32> to vector<144x16xbf16>
    %cst_31 = arith.constant dense<0.000000e+00> : vector<144x8xf32>
    %79 = tpu.matmul %78, %77, %cst_31 {dimension_numbers = #tpu.dot_dimension_numbers<[1], [0], [0], [1], [0, 0, 1, 1], [], []>} : vector<144x16xbf16>, vector<16x8xbf16>, vector<144x8xf32> -> vector<144x8xf32>
    %c0_32 = arith.constant 0 : index
    %c384_33 = arith.constant 384 : index
    %80 = vector.load %arg3[%c0_32, %c384_33] : memref<1x512xf32, #tpu.memory_space<vmem>>, vector<1x8xf32>
    %81 = vector.broadcast %80 : vector<1x8xf32> to vector<144x8xf32>
    %82 = arith.addf %79, %81 : vector<144x8xf32>
    %83 = arith.addf %82, %68 : vector<144x8xf32>
    %cst_34 = arith.constant 0.000000e+00 : f32
    %84 = vector.broadcast %cst_34 : f32 to vector<144x8xf32>
    %85 = arith.maximumf %83, %84 : vector<144x8xf32>
    %c0_35 = arith.constant 0 : index
    %c0_36 = arith.constant 0 : index
    %86 = vector.load %arg4[%c0_35, %c0_36] : memref<144x8xf32, #tpu.memory_space<vmem>>, vector<144x8xf32>
    tpu.vector_store %arg4[%c0_35, %c0_36], %85 {strides = array<i32>} : memref<144x8xf32, #tpu.memory_space<vmem>>, vector<144x8xf32>,
    return
  }
  func.func @transform_0(%arg0: i32) -> (i32, i32) {
    %c0_i32 = arith.constant 0 : i32
    %c0_i32_0 = arith.constant 0 : i32
    return %arg0, %c0_i32 : i32, i32
  }
  func.func @transform_1(%arg0: i32) -> (i32, i32) {
    %c0_i32 = arith.constant 0 : i32
    %c0_i32_0 = arith.constant 0 : i32
    %c0_i32_1 = arith.constant 0 : i32
    return %c0_i32, %c0_i32_0 : i32, i32
  }
  func.func @transform_2(%arg0: i32) -> (i32, i32) {
    %c0_i32 = arith.constant 0 : i32
    %c0_i32_0 = arith.constant 0 : i32
    %c0_i32_1 = arith.constant 0 : i32
    return %c0_i32, %c0_i32_0 : i32, i32
  }
  func.func @transform_3(%arg0: i32) -> (i32, i32) {
    %c0_i32 = arith.constant 0 : i32
    %c0_i32_0 = arith.constant 0 : i32
    return %arg0, %c0_i32 : i32, i32
  }
}

</mosaic_0001>

<llo_original>
// kernel: _lambda_.3
$region0: #{_lambda_.3}
  #allocation0 [shape = 'u32[]', space=smem, size = 0x4, offset = 0x4, fixed_abs, tag = 'smem constant byte address 0x4 - core index']
  #allocation1 [shape = 'u32[144,128]{1,0:T(1,128)}', space=vmem, size = 0x12000, scoped, tag = 'internal scratch']
  %s0 = inlined_call_operand.vmem [shape: f32[288,16], index: 0, kind: input, shape index: {}]
  %s1 = inlined_call_operand.vmem [shape: bf16[32,512], index: 1, kind: input, shape index: {}]
  %s2 = inlined_call_operand.vmem [shape: f32[1,512], index: 2, kind: input, shape index: {}]
  %s3 = inlined_call_operand.vmem [shape: f32[288,8], index: 3, kind: output, shape index: {}]
  %s4 = sld [smem:[#allocation0]]
  $region45: #{_lambda_.3} parent=0
    _
  %s6 = ssub.s32 1, %s4
  %s7 = scalar_select 0, %s6, %s4
  loop: start=0, step=1, limit=4
  $region2: #{_lambda_.3} parent=0 // loop_pre_header
    _
  $region3: #{_lambda_.3} parent=0 // loop_header
    %s9 = sphi 0, %s13
    %p10 = scmp.ge.s32.totalorder %s9, 4
    %s19 = sphi 0, %s21
    %s22 = sphi 0, %s19
    %s23 = sphi 0, %s22
    %s39 = sphi 0, %s23
    %s43 = sphi 0, %s43
    %s45 = sphi 0, %s43
    %s46 = sphi 0, %s45
    %s60 = sphi 0, %s46
    %s64 = sphi 0, %s64
    %s66 = sphi 0, %s64
    %s67 = sphi 0, %s66
    %s81 = sphi 0, %s67
    %s87 = sphi 0, %s89
    %s90 = sphi 0, %s87
    %s91 = sphi 0, %s90
    %s107 = sphi 0, %s91
  $region4: #{_lambda_.3} parent=0 // loop_header_branch
    %12 = sbr.rel (%p10) target = $region8
  $region5: #{_lambda_.3} parent=0 // loop_body
    %s14 = ssub.s32 %s9, 1
    %s15 = ssub.s32 %s9, 2
    %s16 = sadd.s32 %s9, 1
    %s17 = ssub.s32 %s9, %s16
    %p18 = scmp.eq.s32.totalorder %s17, 0
    %s20 = sadd.s32 %s19, 1
    %s21 = scalar_select %p18, %s19, %s20
    %p24 = pneg %p18
    %p25 = scmp.eq.s32.totalorder %s9, 1
    %p26 = por %p24, %p25
    %p27 = scmp.ne.s32.totalorder %s19, %s22
    %p28 = scmp.eq.s32.totalorder %s9, 0
    %p29 = por %p27, %p28
    %p30 = scmp.ne.s32.totalorder %s19, %s22
    %p31 = scmp.eq.s32.totalorder %s14, 1
    %p32 = por %p30, %p31
    %p33 = scmp.ne.s32.totalorder %s22, %s23
    %p34 = scmp.eq.s32.totalorder %s14, 0
    %p35 = por %p33, %p34
    %p36 = scmp.ne.s32.totalorder %s22, %s23
    %p37 = scmp.eq.s32.totalorder %s15, 1
    %p38 = por %p36, %p37
    %p40 = scmp.ne.s32.totalorder %s23, %s39
    %p41 = scmp.eq.s32.totalorder %s15, 0
    %p42 = por %p40, %p41
    %s44 = sadd.s32 %s43, 1
    %p47 = scmp.eq.s32.totalorder %s9, 1
    %p48 = scmp.ne.s32.totalorder %s43, %s45
    %p49 = scmp.eq.s32.totalorder %s9, 0
    %p50 = por %p48, %p49
    %p51 = scmp.ne.s32.totalorder %s43, %s45
    %p52 = scmp.eq.s32.totalorder %s14, 1
    %p53 = por %p51, %p52
    %p54 = scmp.ne.s32.totalorder %s45, %s46
    %p55 = scmp.eq.s32.totalorder %s14, 0
    %p56 = por %p54, %p55
    %p57 = scmp.ne.s32.totalorder %s45, %s46
    %p58 = scmp.eq.s32.totalorder %s15, 1
    %p59 = por %p57, %p58
    %p61 = scmp.ne.s32.totalorder %s46, %s60
    %p62 = scmp.eq.s32.totalorder %s15, 0
    %p63 = por %p61, %p62
    %s65 = sadd.s32 %s64, 1
    %p68 = scmp.eq.s32.totalorder %s9, 1
    %p69 = scmp.ne.s32.totalorder %s64, %s66
    %p70 = scmp.eq.s32.totalorder %s9, 0
    %p71 = por %p69, %p70
    %p72 = scmp.ne.s32.totalorder %s64, %s66
    %p73 = scmp.eq.s32.totalorder %s14, 1
    %p74 = por %p72, %p73
    %p75 = scmp.ne.s32.totalorder %s66, %s67
    %p76 = scmp.eq.s32.totalorder %s14, 0
    %p77 = por %p75, %p76
    %p78 = scmp.ne.s32.totalorder %s66, %s67
    %p79 = scmp.eq.s32.totalorder %s15, 1
    %p80 = por %p78, %p79
    %p82 = scmp.ne.s32.totalorder %s67, %s81
    %p83 = scmp.eq.s32.totalorder %s15, 0
    %p84 = por %p82, %p83
    %s85 = ssub.s32 %s9, %s16
    %p86 = scmp.eq.s32.totalorder %s85, 0
    %s88 = sadd.s32 %s87, 1
    %s89 = scalar_select %p86, %s87, %s88
    %p92 = pneg %p86
    %p93 = scmp.eq.s32.totalorder %s9, 1
    %p94 = por %p92, %p93
    %p95 = scmp.ne.s32.totalorder %s87, %s90
    %p96 = scmp.eq.s32.totalorder %s9, 0
    %p97 = por %p95, %p96
    %p98 = scmp.ne.s32.totalorder %s87, %s90
    %p99 = scmp.eq.s32.totalorder %s14, 1
    %p100 = por %p98, %p99
    %p101 = scmp.ne.s32.totalorder %s90, %s91
    %p102 = scmp.eq.s32.totalorder %s14, 0
    %p103 = por %p101, %p102
    %p104 = scmp.ne.s32.totalorder %s90, %s91
    %p105 = scmp.eq.s32.totalorder %s15, 1
    %p106 = por %p104, %p105
    %p108 = scmp.ne.s32.totalorder %s91, %s107
    %p109 = scmp.eq.s32.totalorder %s15, 0
    %p110 = por %p108, %p109
    %p111 = scmp.le.s32.totalorder 1, %s9
    %p112 = scmp.lt.s32.totalorder %s9, 3
    %p113 = pnand %p111, %p112
    %p114 = pneg %p113
    // Predicated region
    $region9: #{_lambda_.3} parent=5 // pred_check
      _
    $region10: #{_lambda_.3} parent=5 // pred_check_branch
      %116 = sbr.rel (%p113) target = $region12
    $region11: #{_lambda_.3} parent=5 // pred_region
      %s117 = ssub.s32 %s9, 1
      // Predicated region
      $region13: #{_lambda_.3} parent=11 // pred_check
        %p118 = pneg %p56
      $region14: #{_lambda_.3} parent=11 // pred_check_branch
        %120 = sbr.rel (%p118) target = $region16
      $region15: #{_lambda_.3} parent=11 // pred_region
        _
      $region16: #{_lambda_.3} parent=11 // pred_fallthru
        _
      // Predicated region
      $region17: #{_lambda_.3} parent=11 // pred_check
        %p121 = pneg %p77
      $region18: #{_lambda_.3} parent=11 // pred_check_branch
        %123 = sbr.rel (%p121) target = $region20
      $region19: #{_lambda_.3} parent=11 // pred_region
        _
      $region20: #{_lambda_.3} parent=11 // pred_fallthru
        _
    $region12: #{_lambda_.3} parent=5 // pred_fallthru
      _
    %p124 = scmp.lt.s32.totalorder %s9, 2
    // Predicated region
    $region21: #{_lambda_.3} parent=5 // pred_check
      %p125 = pneg %p124
    $region22: #{_lambda_.3} parent=5 // pred_check_branch
      %127 = sbr.rel (%p125) target = $region24
    $region23: #{_lambda_.3} parent=5 // pred_region
      // Predicated region
      $region25: #{_lambda_.3} parent=23 // pred_check
        %p128 = pneg %p29
      $region26: #{_lambda_.3} parent=23 // pred_check_branch
        %130 = sbr.rel (%p128) target = $region28
      $region27: #{_lambda_.3} parent=23 // pred_region
        %s131 = smul.u32 18, %s9
        %p132 = scmp.lt.s32.totalorder %s131, 35
        %s133 = scalar_select %p132, %s131, 35
        %s134 = smul.addr %s133, 8
        %s135 = scalar_lea.vmem %s0, %s134
        %s136 = smul.u32 18, %s9
      $region28: #{_lambda_.3} parent=23 // pred_fallthru
        _
    $region24: #{_lambda_.3} parent=5 // pred_fallthru
      _
    %p137 = scmp.le.s32.totalorder 1, %s9
    %p138 = scmp.lt.s32.totalorder %s9, 3
    %p139 = pnand %p137, %p138
    %p140 = pneg %p139
    // Predicated region
    $region29: #{_lambda_.3} parent=5 // pred_check
      _
    $region30: #{_lambda_.3} parent=5 // pred_check_branch
      %142 = sbr.rel (%p139) target = $region32
    $region31: #{_lambda_.3} parent=5 // pred_region
      %s143 = ssub.s32 %s9, 1
      %s144 = smul.u32 18, %s14
      %p145 = scmp.lt.s32.totalorder %s144, 35
      %s146 = scalar_select %p145, %s144, 35
      %s147 = smul.addr %s146, 8
      %s148 = scalar_lea.vmem %s0, %s147
      %p149 = pneg %p35
      %p150 = pneg %p32
      %p151 = pneg %p56
      %p152 = pneg %p53
      %p153 = pneg %p77
      %p154 = pneg %p74
      %p155 = pneg %p103
      %p156 = pneg %p100
      %s157 = smul.u32 18, %s14
      %p158 = scmp.lt.s32.totalorder %s157, 35
      %s159 = scalar_select %p158, %s157, 35
      %s160 = smul.addr %s159, 8
      %s161 = scalar_lea.vmem %s3, %s160
      %s162 = smul.u32 18, %s14
      %p163 = scmp.lt.s32.totalorder %s162, 35
      %s164 = scalar_select %p163, %s162, 35
      %s165 = smul.addr %s164, 8
      %s166 = scalar_lea.vmem %s0, %s165
      %s167 = smul.u32 18, %s14
      %s168 = smul.u32 18, %s14
      %p169 = scmp.lt.s32.totalorder %s168, 35
      %s170 = scalar_select %p169, %s168, 35
      %s171 = smul.addr %s170, 8
      %s172 = scalar_lea.vmem %s3, %s171
      %s173 = smul.u32 18, %s14
      %v175 = vlaneseq
      %v176 = vshrl.u32 %v175, 7
      %v177 = vadd.s32 %v176, 8
      %v178 = vadd.s32 %v176, 16
      %v179 = vadd.s32 %v176, 24
      %v180 = vadd.s32 %v176, 32
      %v181 = vadd.s32 %v176, 40
      %v182 = vadd.s32 %v176, 48
      %v183 = vadd.s32 %v176, 56
      %v184 = vadd.s32 %v176, 64
      %v185 = vadd.s32 %v176, 72
      %v186 = vadd.s32 %v176, 80
      %v187 = vadd.s32 %v176, 88
      %v188 = vadd.s32 %v176, 96
      %v189 = vadd.s32 %v176, 104
      %v190 = vadd.s32 %v176, 112
      %v191 = vadd.s32 %v176, 120
      %v192 = vadd.s32 %v176, 128
      %v193 = vadd.s32 %v176, 136
      %vm194 = vcmp.lt.s32.totalorder %v176, 0
      %v195 = vsub.s32 0, %v176
      %v196 = vsel %vm194, %v195, %v176
      %v197 = vmul.u32.u64.compose %v196, 3817748708
      %v198 = vextract.low.u32 %v197
      %v199 = vextract.high.u32 %v197
      %v200 = vshrl.u32 %v199, 6
      %v201 = vmul.u32 %v200, 72
      %v202 = vsub.s32 %v196, %v201
      %v203 = vsub.s32 0, %v202
      %v204 = vsel %vm194, %v203, %v202
      %vm205 = vcmp.lt.s32.totalorder %v177, 0
      %v206 = vsub.s32 0, %v177
      %v207 = vsel %vm205, %v206, %v177
      %v208 = vmul.u32.u64.compose %v207, 3817748708
      %v209 = vextract.low.u32 %v208
      %v210 = vextract.high.u32 %v208
      %v211 = vshrl.u32 %v210, 6
      %v212 = vmul.u32 %v211, 72
      %v213 = vsub.s32 %v207, %v212
      %v214 = vsub.s32 0, %v213
      %v215 = vsel %vm205, %v214, %v213
      %vm216 = vcmp.lt.s32.totalorder %v178, 0
      %v217 = vsub.s32 0, %v178
      %v218 = vsel %vm216, %v217, %v178
      %v219 = vmul.u32.u64.compose %v218, 3817748708
      %v220 = vextract.low.u32 %v219
      %v221 = vextract.high.u32 %v219
      %v222 = vshrl.u32 %v221, 6
      %v223 = vmul.u32 %v222, 72
      %v224 = vsub.s32 %v218, %v223
      %v225 = vsub.s32 0, %v224
      %v226 = vsel %vm216, %v225, %v224
      %vm227 = vcmp.lt.s32.totalorder %v179, 0
      %v228 = vsub.s32 0, %v179
      %v229 = vsel %vm227, %v228, %v179
      %v230 = vmul.u32.u64.compose %v229, 3817748708
      %v231 = vextract.low.u32 %v230
      %v232 = vextract.high.u32 %v230
      %v233 = vshrl.u32 %v232, 6
      %v234 = vmul.u32 %v233, 72
      %v235 = vsub.s32 %v229, %v234
      %v236 = vsub.s32 0, %v235
      %v237 = vsel %vm227, %v236, %v235
      %vm238 = vcmp.lt.s32.totalorder %v180, 0
      %v239 = vsub.s32 0, %v180
      %v240 = vsel %vm238, %v239, %v180
      %v241 = vmul.u32.u64.compose %v240, 3817748708
      %v242 = vextract.low.u32 %v241
      %v243 = vextract.high.u32 %v241
      %v244 = vshrl.u32 %v243, 6
      %v245 = vmul.u32 %v244, 72
      %v246 = vsub.s32 %v240, %v245
      %v247 = vsub.s32 0, %v246
      %v248 = vsel %vm238, %v247, %v246
      %vm249 = vcmp.lt.s32.totalorder %v181, 0
      %v250 = vsub.s32 0, %v181
      %v251 = vsel %vm249, %v250, %v181
      %v252 = vmul.u32.u64.compose %v251, 3817748708
      %v253 = vextract.low.u32 %v252
      %v254 = vextract.high.u32 %v252
      %v255 = vshrl.u32 %v254, 6
      %v256 = vmul.u32 %v255, 72
      %v257 = vsub.s32 %v251, %v256
      %v258 = vsub.s32 0, %v257
      %v259 = vsel %vm249, %v258, %v257
      %vm260 = vcmp.lt.s32.totalorder %v182, 0
      %v261 = vsub.s32 0, %v182
      %v262 = vsel %vm260, %v261, %v182
      %v263 = vmul.u32.u64.compose %v262, 3817748708
      %v264 = vextract.low.u32 %v263
      %v265 = vextract.high.u32 %v263
      %v266 = vshrl.u32 %v265, 6
      %v267 = vmul.u32 %v266, 72
      %v268 = vsub.s32 %v262, %v267
      %v269 = vsub.s32 0, %v268
      %v270 = vsel %vm260, %v269, %v268
      %vm271 = vcmp.lt.s32.totalorder %v183, 0
      %v272 = vsub.s32 0, %v183
      %v273 = vsel %vm271, %v272, %v183
      %v274 = vmul.u32.u64.compose %v273, 3817748708
      %v275 = vextract.low.u32 %v274
      %v276 = vextract.high.u32 %v274
      %v277 = vshrl.u32 %v276, 6
      %v278 = vmul.u32 %v277, 72
      %v279 = vsub.s32 %v273, %v278
      %v280 = vsub.s32 0, %v279
      %v281 = vsel %vm271, %v280, %v279
      %vm282 = vcmp.lt.s32.totalorder %v184, 0
      %v283 = vsub.s32 0, %v184
      %v284 = vsel %vm282, %v283, %v184
      %v285 = vmul.u32.u64.compose %v284, 3817748708
      %v286 = vextract.low.u32 %v285
      %v287 = vextract.high.u32 %v285
      %v288 = vshrl.u32 %v287, 6
      %v289 = vmul.u32 %v288, 72
      %v290 = vsub.s32 %v284, %v289
      %v291 = vsub.s32 0, %v290
      %v292 = vsel %vm282, %v291, %v290
      %vm293 = vcmp.lt.s32.totalorder %v185, 0
      %v294 = vsub.s32 0, %v185
      %v295 = vsel %vm293, %v294, %v185
      %v296 = vmul.u32.u64.compose %v295, 3817748708
      %v297 = vextract.low.u32 %v296
      %v298 = vextract.high.u32 %v296
      %v299 = vshrl.u32 %v298, 6
      %v300 = vmul.u32 %v299, 72
      %v301 = vsub.s32 %v295, %v300
      %v302 = vsub.s32 0, %v301
      %v303 = vsel %vm293, %v302, %v301
      %vm304 = vcmp.lt.s32.totalorder %v186, 0
      %v305 = vsub.s32 0, %v186
      %v306 = vsel %vm304, %v305, %v186
      %v307 = vmul.u32.u64.compose %v306, 3817748708
      %v308 = vextract.low.u32 %v307
      %v309 = vextract.high.u32 %v307
      %v310 = vshrl.u32 %v309, 6
      %v311 = vmul.u32 %v310, 72
      %v312 = vsub.s32 %v306, %v311
      %v313 = vsub.s32 0, %v312
      %v314 = vsel %vm304, %v313, %v312
      %vm315 = vcmp.lt.s32.totalorder %v187, 0
      %v316 = vsub.s32 0, %v187
      %v317 = vsel %vm315, %v316, %v187
      %v318 = vmul.u32.u64.compose %v317, 3817748708
      %v319 = vextract.low.u32 %v318
      %v320 = vextract.high.u32 %v318
      %v321 = vshrl.u32 %v320, 6
      %v322 = vmul.u32 %v321, 72
      %v323 = vsub.s32 %v317, %v322
      %v324 = vsub.s32 0, %v323
      %v325 = vsel %vm315, %v324, %v323
      %vm326 = vcmp.lt.s32.totalorder %v188, 0
      %v327 = vsub.s32 0, %v188
      %v328 = vsel %vm326, %v327, %v188
      %v329 = vmul.u32.u64.compose %v328, 3817748708
      %v330 = vextract.low.u32 %v329
      %v331 = vextract.high.u32 %v329
      %v332 = vshrl.u32 %v331, 6
      %v333 = vmul.u32 %v332, 72
      %v334 = vsub.s32 %v328, %v333
      %v335 = vsub.s32 0, %v334
      %v336 = vsel %vm326, %v335, %v334
      %vm337 = vcmp.lt.s32.totalorder %v189, 0
      %v338 = vsub.s32 0, %v189
      %v339 = vsel %vm337, %v338, %v189
      %v340 = vmul.u32.u64.compose %v339, 3817748708
      %v341 = vextract.low.u32 %v340
      %v342 = vextract.high.u32 %v340
      %v343 = vshrl.u32 %v342, 6
      %v344 = vmul.u32 %v343, 72
      %v345 = vsub.s32 %v339, %v344
      %v346 = vsub.s32 0, %v345
      %v347 = vsel %vm337, %v346, %v345
      %vm348 = vcmp.lt.s32.totalorder %v190, 0
      %v349 = vsub.s32 0, %v190
      %v350 = vsel %vm348, %v349, %v190
      %v351 = vmul.u32.u64.compose %v350, 3817748708
      %v352 = vextract.low.u32 %v351
      %v353 = vextract.high.u32 %v351
      %v354 = vshrl.u32 %v353, 6
      %v355 = vmul.u32 %v354, 72
      %v356 = vsub.s32 %v350, %v355
      %v357 = vsub.s32 0, %v356
      %v358 = vsel %vm348, %v357, %v356
      %vm359 = vcmp.lt.s32.totalorder %v191, 0
      %v360 = vsub.s32 0, %v191
      %v361 = vsel %vm359, %v360, %v191
      %v362 = vmul.u32.u64.compose %v361, 3817748708
      %v363 = vextract.low.u32 %v362
      %v364 = vextract.high.u32 %v362
      %v365 = vshrl.u32 %v364, 6
      %v366 = vmul.u32 %v365, 72
      %v367 = vsub.s32 %v361, %v366
      %v368 = vsub.s32 0, %v367
      %v369 = vsel %vm359, %v368, %v367
      %vm370 = vcmp.lt.s32.totalorder %v192, 0
      %v371 = vsub.s32 0, %v192
      %v372 = vsel %vm370, %v371, %v192
      %v373 = vmul.u32.u64.compose %v372, 3817748708
      %v374 = vextract.low.u32 %v373
      %v375 = vextract.high.u32 %v373
      %v376 = vshrl.u32 %v375, 6
      %v377 = vmul.u32 %v376, 72
      %v378 = vsub.s32 %v372, %v377
      %v379 = vsub.s32 0, %v378
      %v380 = vsel %vm370, %v379, %v378
      %vm381 = vcmp.lt.s32.totalorder %v193, 0
      %v382 = vsub.s32 0, %v193
      %v383 = vsel %vm381, %v382, %v193
      %v384 = vmul.u32.u64.compose %v383, 3817748708
      %v385 = vextract.low.u32 %v384
      %v386 = vextract.high.u32 %v384
      %v387 = vshrl.u32 %v386, 6
      %v388 = vmul.u32 %v387, 72
      %v389 = vsub.s32 %v383, %v388
      %v390 = vsub.s32 0, %v389
      %v391 = vsel %vm381, %v390, %v389
      %vm392 = vcmp.ne.s32.totalorder %v204, 0
      %vm393 = vcmp.ne.s32.totalorder %v215, 0
      %vm394 = vcmp.ne.s32.totalorder %v226, 0
      %vm395 = vcmp.ne.s32.totalorder %v237, 0
      %vm396 = vcmp.ne.s32.totalorder %v248, 0
      %vm397 = vcmp.ne.s32.totalorder %v259, 0
      %vm398 = vcmp.ne.s32.totalorder %v270, 0
      %vm399 = vcmp.ne.s32.totalorder %v281, 0
      %vm400 = vcmp.ne.s32.totalorder %v292, 0
      %vm401 = vcmp.ne.s32.totalorder %v303, 0
      %vm402 = vcmp.ne.s32.totalorder %v314, 0
      %vm403 = vcmp.ne.s32.totalorder %v325, 0
      %vm404 = vcmp.ne.s32.totalorder %v336, 0
      %vm405 = vcmp.ne.s32.totalorder %v347, 0
      %vm406 = vcmp.ne.s32.totalorder %v358, 0
      %vm407 = vcmp.ne.s32.totalorder %v369, 0
      %vm408 = vcmp.ne.s32.totalorder %v380, 0
      %vm409 = vcmp.ne.s32.totalorder %v391, 0
      %vm410 = vcmp.lt.s32.totalorder %v204, 0
      %vm411 = vcmp.lt.s32.totalorder %v215, 0
      %vm412 = vcmp.lt.s32.totalorder %v226, 0
      %vm413 = vcmp.lt.s32.totalorder %v237, 0
      %vm414 = vcmp.lt.s32.totalorder %v248, 0
      %vm415 = vcmp.lt.s32.totalorder %v259, 0
      %vm416 = vcmp.lt.s32.totalorder %v270, 0
      %vm417 = vcmp.lt.s32.totalorder %v281, 0
      %vm418 = vcmp.lt.s32.totalorder %v292, 0
      %vm419 = vcmp.lt.s32.totalorder %v303, 0
      %vm420 = vcmp.lt.s32.totalorder %v314, 0
      %vm421 = vcmp.lt.s32.totalorder %v325, 0
      %vm422 = vcmp.lt.s32.totalorder %v336, 0
      %vm423 = vcmp.lt.s32.totalorder %v347, 0
      %vm424 = vcmp.lt.s32.totalorder %v358, 0
      %vm425 = vcmp.lt.s32.totalorder %v369, 0
      %vm426 = vcmp.lt.s32.totalorder %v380, 0
      %vm427 = vcmp.lt.s32.totalorder %v391, 0
      %vm428 = vmand %vm410, %vm392
      %vm429 = vmand %vm411, %vm393
      %vm430 = vmand %vm412, %vm394
      %vm431 = vmand %vm413, %vm395
      %vm432 = vmand %vm414, %vm396
      %vm433 = vmand %vm415, %vm397
      %vm434 = vmand %vm416, %vm398
      %vm435 = vmand %vm417, %vm399
      %vm436 = vmand %vm418, %vm400
      %vm437 = vmand %vm419, %vm401
      %vm438 = vmand %vm420, %vm402
      %vm439 = vmand %vm421, %vm403
      %vm440 = vmand %vm422, %vm404
      %vm441 = vmand %vm423, %vm405
      %vm442 = vmand %vm424, %vm406
      %vm443 = vmand %vm425, %vm407
      %vm444 = vmand %vm426, %vm408
      %vm445 = vmand %vm427, %vm409
      %v446 = vadd.s32 %v204, 72
      %v447 = vadd.s32 %v215, 72
      %v448 = vadd.s32 %v226, 72
      %v449 = vadd.s32 %v237, 72
      %v450 = vadd.s32 %v248, 72
      %v451 = vadd.s32 %v259, 72
      %v452 = vadd.s32 %v270, 72
      %v453 = vadd.s32 %v281, 72
      %v454 = vadd.s32 %v292, 72
      %v455 = vadd.s32 %v303, 72
      %v456 = vadd.s32 %v314, 72
      %v457 = vadd.s32 %v325, 72
      %v458 = vadd.s32 %v336, 72
      %v459 = vadd.s32 %v347, 72
      %v460 = vadd.s32 %v358, 72
      %v461 = vadd.s32 %v369, 72
      %v462 = vadd.s32 %v380, 72
      %v463 = vadd.s32 %v391, 72
      %v464 = vsel %vm428, %v446, %v204
      %v465 = vsel %vm429, %v447, %v215
      %v466 = vsel %vm430, %v448, %v226
      %v467 = vsel %vm431, %v449, %v237
      %v468 = vsel %vm432, %v450, %v248
      %v469 = vsel %vm433, %v451, %v259
      %v470 = vsel %vm434, %v452, %v270
      %v471 = vsel %vm435, %v453, %v281
      %v472 = vsel %vm436, %v454, %v292
      %v473 = vsel %vm437, %v455, %v303
      %v474 = vsel %vm438, %v456, %v314
      %v475 = vsel %vm439, %v457, %v325
      %v476 = vsel %vm440, %v458, %v336
      %v477 = vsel %vm441, %v459, %v347
      %v478 = vsel %vm442, %v460, %v358
      %v479 = vsel %vm443, %v461, %v369
      %v480 = vsel %vm444, %v462, %v380
      %v481 = vsel %vm445, %v463, %v391
      %v482 = vld [vmem:[%s166] sm:$0xff]
      %v483 = vld [vmem:[%s166 + $0x8] sm:$0xff]
      %v484 = vld [vmem:[%s166 + $0x10] sm:$0xff]
      %v485 = vld [vmem:[%s166 + $0x18] sm:$0xff]
      %v486 = vld [vmem:[%s166 + $0x20] sm:$0xff]
      %v487 = vld [vmem:[%s166 + $0x28] sm:$0xff]
      %v488 = vld [vmem:[%s166 + $0x30] sm:$0xff]
      %v489 = vld [vmem:[%s166 + $0x38] sm:$0xff]
      %v490 = vld [vmem:[%s166 + $0x40] sm:$0xff]
      %v491 = vld [vmem:[%s166 + $0x48] sm:$0xff]
      %v492 = vld [vmem:[%s166 + $0x50] sm:$0xff]
      %v493 = vld [vmem:[%s166 + $0x58] sm:$0xff]
      %v494 = vld [vmem:[%s166 + $0x60] sm:$0xff]
      %v495 = vld [vmem:[%s166 + $0x68] sm:$0xff]
      %v496 = vld [vmem:[%s166 + $0x70] sm:$0xff]
      %v497 = vld [vmem:[%s166 + $0x78] sm:$0xff]
      %v498 = vld [vmem:[%s166 + $0x80] sm:$0xff]
      %v499 = vld [vmem:[%s166 + $0x88] sm:$0xff]
      %vm500 = vcmp.ge.s32.totalorder %v464, 2
      %vm501 = vcmp.ge.s32.totalorder %v465, 2
      %vm502 = vcmp.ge.s32.totalorder %v466, 2
      %vm503 = vcmp.ge.s32.totalorder %v467, 2
      %vm504 = vcmp.ge.s32.totalorder %v468, 2
      %vm505 = vcmp.ge.s32.totalorder %v469, 2
      %vm506 = vcmp.ge.s32.totalorder %v470, 2
      %vm507 = vcmp.ge.s32.totalorder %v471, 2
      %vm508 = vcmp.ge.s32.totalorder %v472, 2
      %vm509 = vcmp.ge.s32.totalorder %v473, 2
      %vm510 = vcmp.ge.s32.totalorder %v474, 2
      %vm511 = vcmp.ge.s32.totalorder %v475, 2
      %vm512 = vcmp.ge.s32.totalorder %v476, 2
      %vm513 = vcmp.ge.s32.totalorder %v477, 2
      %vm514 = vcmp.ge.s32.totalorder %v478, 2
      %vm515 = vcmp.ge.s32.totalorder %v479, 2
      %vm516 = vcmp.ge.s32.totalorder %v480, 2
      %vm517 = vcmp.ge.s32.totalorder %v481, 2
      %v518 = vrot.slane %v482, 6
      %v519 = vrot.slane %v483, 6
      %v520 = vrot.slane %v484, 6
      %v521 = vrot.slane %v485, 6
      %v522 = vrot.slane %v486, 6
      %v523 = vrot.slane %v487, 6
      %v524 = vrot.slane %v488, 6
      %v525 = vrot.slane %v489, 6
      %v526 = vrot.slane %v490, 6
      %v527 = vrot.slane %v491, 6
      %v528 = vrot.slane %v492, 6
      %v529 = vrot.slane %v493, 6
      %v530 = vrot.slane %v494, 6
      %v531 = vrot.slane %v495, 6
      %v532 = vrot.slane %v496, 6
      %v533 = vrot.slane %v497, 6
      %v534 = vrot.slane %v498, 6
      %v535 = vrot.slane %v499, 6
      %vm536 = vcmp.lt.s32.totalorder %v176, 2
      %v537 = vsel %vm536, %v534, %v535
      %v538 = vsel %vm536, %v533, %v534
      %v539 = vsel %vm536, %v532, %v533
      %v540 = vsel %vm536, %v531, %v532
      %v541 = vsel %vm536, %v530, %v531
      %v542 = vsel %vm536, %v529, %v530
      %v543 = vsel %vm536, %v528, %v529
      %v544 = vsel %vm536, %v527, %v528
      %v545 = vsel %vm536, %v526, %v527
      %v546 = vsel %vm536, %v525, %v526
      %v547 = vsel %vm536, %v524, %v525
      %v548 = vsel %vm536, %v523, %v524
      %v549 = vsel %vm536, %v522, %v523
      %v550 = vsel %vm536, %v521, %v522
      %v551 = vsel %vm536, %v520, %v521
      %v552 = vsel %vm536, %v519, %v520
      %v553 = vsel %vm536, %v518, %v519
      %v554 = vsel %vm536, %v535, %v518
      %v555 = vsel %vm500, 1, 0
      %v556 = vsel %vm501, 1, 0
      %v557 = vsel %vm502, 1, 0
      %v558 = vsel %vm503, 1, 0
      %v559 = vsel %vm504, 1, 0
      %v560 = vsel %vm505, 1, 0
      %v561 = vsel %vm506, 1, 0
      %v562 = vsel %vm507, 1, 0
      %v563 = vsel %vm508, 1, 0
      %v564 = vsel %vm509, 1, 0
      %v565 = vsel %vm510, 1, 0
      %v566 = vsel %vm511, 1, 0
      %v567 = vsel %vm512, 1, 0
      %v568 = vsel %vm513, 1, 0
      %v569 = vsel %vm514, 1, 0
      %v570 = vsel %vm515, 1, 0
      %v571 = vsel %vm516, 1, 0
      %v572 = vsel %vm517, 1, 0
      %vm573 = vcmp.eq.s32.totalorder %v555, 1
      %vm574 = vcmp.eq.s32.totalorder %v556, 1
      %vm575 = vcmp.eq.s32.totalorder %v557, 1
      %vm576 = vcmp.eq.s32.totalorder %v558, 1
      %vm577 = vcmp.eq.s32.totalorder %v559, 1
      %vm578 = vcmp.eq.s32.totalorder %v560, 1
      %vm579 = vcmp.eq.s32.totalorder %v561, 1
      %vm580 = vcmp.eq.s32.totalorder %v562, 1
      %vm581 = vcmp.eq.s32.totalorder %v563, 1
      %vm582 = vcmp.eq.s32.totalorder %v564, 1
      %vm583 = vcmp.eq.s32.totalorder %v565, 1
      %vm584 = vcmp.eq.s32.totalorder %v566, 1
      %vm585 = vcmp.eq.s32.totalorder %v567, 1
      %vm586 = vcmp.eq.s32.totalorder %v568, 1
      %vm587 = vcmp.eq.s32.totalorder %v569, 1
      %vm588 = vcmp.eq.s32.totalorder %v570, 1
      %vm589 = vcmp.eq.s32.totalorder %v571, 1
      %vm590 = vcmp.eq.s32.totalorder %v572, 1
      %v591 = vsel %vm573, %v554, 0.0
      %v592 = vsel %vm574, %v553, 0.0
      %v593 = vsel %vm575, %v552, 0.0
      %v594 = vsel %vm576, %v551, 0.0
      %v595 = vsel %vm577, %v550, 0.0
      %v596 = vsel %vm578, %v549, 0.0
      %v597 = vsel %vm579, %v548, 0.0
      %v598 = vsel %vm580, %v547, 0.0
      %v599 = vsel %vm581, %v546, 0.0
      %v600 = vsel %vm582, %v545, 0.0
      %v601 = vsel %vm583, %v544, 0.0
      %v602 = vsel %vm584, %v543, 0.0
      %v603 = vsel %vm585, %v542, 0.0
      %v604 = vsel %vm586, %v541, 0.0
      %v605 = vsel %vm587, %v540, 0.0
      %v606 = vsel %vm588, %v539, 0.0
      %v607 = vsel %vm589, %v538, 0.0
      %v608 = vsel %vm590, %v537, 0.0
      %627 = vrot.lane.b32.xlu0 %v591, 16
      %v628 = vpop.permute.xlu0 %627
      %629 = vrot.lane.b32.xlu0 %v592, 16
      %v630 = vpop.permute.xlu0 %629
      %631 = vrot.lane.b32.xlu0 %v593, 16
      %v632 = vpop.permute.xlu0 %631
      %633 = vrot.lane.b32.xlu0 %v594, 16
      %v634 = vpop.permute.xlu0 %633
      %635 = vrot.lane.b32.xlu0 %v595, 16
      %v636 = vpop.permute.xlu0 %635
      %637 = vrot.lane.b32.xlu0 %v596, 16
      %v638 = vpop.permute.xlu0 %637
      %639 = vrot.lane.b32.xlu0 %v597, 16
      %v640 = vpop.permute.xlu0 %639
      %641 = vrot.lane.b32.xlu0 %v598, 16
      %v642 = vpop.permute.xlu0 %641
      %643 = vrot.lane.b32.xlu0 %v599, 16
      %v644 = vpop.permute.xlu0 %643
      %645 = vrot.lane.b32.xlu0 %v600, 16
      %v646 = vpop.permute.xlu0 %645
      %647 = vrot.lane.b32.xlu0 %v601, 16
      %v648 = vpop.permute.xlu0 %647
      %649 = vrot.lane.b32.xlu0 %v602, 16
      %v650 = vpop.permute.xlu0 %649
      %651 = vrot.lane.b32.xlu0 %v603, 16
      %v652 = vpop.permute.xlu0 %651
      %653 = vrot.lane.b32.xlu0 %v604, 16
      %v654 = vpop.permute.xlu0 %653
      %655 = vrot.lane.b32.xlu0 %v605, 16
      %v656 = vpop.permute.xlu0 %655
      %657 = vrot.lane.b32.xlu0 %v606, 16
      %v658 = vpop.permute.xlu0 %657
      %659 = vrot.lane.b32.xlu0 %v607, 16
      %v660 = vpop.permute.xlu0 %659
      %661 = vrot.lane.b32.xlu0 %v608, 16
      %v662 = vpop.permute.xlu0 %661
      %vm681 = vcmask 130048
      %v682 = vsel %vm681, %v482, %v628
      %v683 = vsel %vm681, %v483, %v630
      %v684 = vsel %vm681, %v484, %v632
      %v685 = vsel %vm681, %v485, %v634
      %v686 = vsel %vm681, %v486, %v636
      %v687 = vsel %vm681, %v487, %v638
      %v688 = vsel %vm681, %v488, %v640
      %v689 = vsel %vm681, %v489, %v642
      %v690 = vsel %vm681, %v490, %v644
      %v691 = vsel %vm681, %v491, %v646
      %v692 = vsel %vm681, %v492, %v648
      %v693 = vsel %vm681, %v493, %v650
      %v694 = vsel %vm681, %v494, %v652
      %v695 = vsel %vm681, %v495, %v654
      %v696 = vsel %vm681, %v496, %v656
      %v697 = vsel %vm681, %v497, %v658
      %v698 = vsel %vm681, %v498, %v660
      %v699 = vsel %vm681, %v499, %v662
      %v700 = vld [vmem:[%s1] sm:$0xf]
      %v701 = vld [vmem:[%s1 + $0x10] sm:$0xf]
      %v702 = vld [vmem:[%s1 + $0x20] sm:$0xf]
      %v703 = vld [vmem:[%s1 + $0x30] sm:$0xf]
      %v704 = vpack.c.bf16 %v683, %v682
      %v705 = vpack.c.bf16 %v685, %v684
      %v706 = vpack.c.bf16 %v687, %v686
      %v707 = vpack.c.bf16 %v689, %v688
      %v708 = vpack.c.bf16 %v691, %v690
      %v709 = vpack.c.bf16 %v693, %v692
      %v710 = vpack.c.bf16 %v695, %v694
      %v711 = vpack.c.bf16 %v697, %v696
      %v712 = vpack.c.bf16 %v699, %v698
      %v713 = vld [vmem:[%s2] sm:$0x1]
      %v715 = vlaneseq
      %v716 = vshrl.u32 %v715, 7
      %v717 = vsub.s32 0, %v716
      %v718 = vrot.slane %v713, %v717
      %v724 = vunpack.c.l.b16 %v700
      %v725 = vunpack.c.l.b16 %v701
      %v726 = vunpack.c.l.b16 %v702
      %v727 = vunpack.c.l.b16 %v703
      %v728 = vpack.c.b16 %v725, %v724
      %v729 = vpack.c.b16 %v727, %v726
      %vm732 = vcmask 261120
      %v734 = vsel %vm732, %v704, 0
      %v737 = vsel %vm732, %v705, 0
      %v740 = vsel %vm732, %v706, 0
      %v743 = vsel %vm732, %v707, 0
      %v746 = vsel %vm732, %v708, 0
      %v749 = vsel %vm732, %v709, 0
      %v752 = vsel %vm732, %v710, 0
      %v755 = vsel %vm732, %v711, 0
      %v758 = vsel %vm732, %v712, 0
      %760 = vmatprep.subr.bf16.mxu0 0
      %761 = vmatpush1.bf16.msra.mxu0 %v728
      %762 = vmatprep.subr.bf16.mxu0 0
      %763 = vmatpush1.bf16.msra.mxu0 %v729
      %764 = vmatprep.subr.bf16.mxu0 0
      %765 = vmatpush1.bf16.msra.mxu0 0
      %766 = vmatprep.subr.bf16.mxu0 0
      %767 = vmatpush1.bf16.msra.mxu0 0
      %768 = vmatprep.subr.bf16.mxu0 0
      %769 = vmatpush1.bf16.msra.mxu0 0
      %770 = vmatprep.subr.bf16.mxu0 0
      %771 = vmatpush1.bf16.msra.mxu0 0
      %772 = vmatprep.subr.bf16.mxu0 0
      %773 = vmatpush1.bf16.msra.mxu0 0
      %774 = vmatprep.subr.bf16.mxu0 0
      %775 = vmatpush1.bf16.msra.mxu0 0
      %776 = vmatprep.subr.bf16.mxu0 0
      %777 = vmatpush1.bf16.msra.mxu0 0
      %778 = vmatprep.subr.bf16.mxu0 0
      %779 = vmatpush1.bf16.msra.mxu0 0
      %780 = vmatprep.subr.bf16.mxu0 0
      %781 = vmatpush1.bf16.msra.mxu0 0
      %782 = vmatprep.subr.bf16.mxu0 0
      %783 = vmatpush1.bf16.msra.mxu0 0
      %784 = vmatprep.subr.bf16.mxu0 0
      %785 = vmatpush1.bf16.msra.mxu0 0
      %786 = vmatprep.subr.bf16.mxu0 0
      %787 = vmatpush1.bf16.msra.mxu0 0
      %788 = vmatprep.subr.bf16.mxu0 0
      %789 = vmatpush1.bf16.msra.mxu0 0
      %790 = vmatprep.subr.bf16.mxu0 0
      %791 = vmatpush1.bf16.msra.mxu0 0
      %792 = vmatprep.mubr.bf16.mxu0 0
      %793 = vmatmul.mubr.bf16.gmra.mrb[0].mxu0 %v734
      %v794 = vpop.f32.mrb[0].mxu0
      %v795 = vadd.f32 %v718, %v794
      %v796 = vpop.f32.mrb[0].mxu0
      %v797 = vpop.f32.mrb[0].mxu0
      %v798 = vadd.f32 %v718, %v797
      %v799 = vpop.f32.mrb[0].mxu0
      %800 = vmatprep.mubr.bf16.mxu0 0
      %801 = vmatmul.mubr.bf16.gmra.mrb[0].mxu0 %v737
      %v802 = vpop.f32.mrb[0].mxu0
      %v803 = vadd.f32 %v718, %v802
      %v804 = vpop.f32.mrb[0].mxu0
      %v805 = vpop.f32.mrb[0].mxu0
      %v806 = vadd.f32 %v718, %v805
      %v807 = vpop.f32.mrb[0].mxu0
      %808 = vmatprep.mubr.bf16.mxu0 0
      %809 = vmatmul.mubr.bf16.gmra.mrb[0].mxu0 %v740
      %v810 = vpop.f32.mrb[0].mxu0
      %v811 = vadd.f32 %v718, %v810
      %v812 = vpop.f32.mrb[0].mxu0
      %v813 = vpop.f32.mrb[0].mxu0
      %v814 = vadd.f32 %v718, %v813
      %v815 = vpop.f32.mrb[0].mxu0
      %816 = vmatprep.mubr.bf16.mxu0 0
      %817 = vmatmul.mubr.bf16.gmra.mrb[0].mxu0 %v743
      %v818 = vpop.f32.mrb[0].mxu0
      %v819 = vadd.f32 %v718, %v818
      %v820 = vpop.f32.mrb[0].mxu0
      %v821 = vpop.f32.mrb[0].mxu0
      %v822 = vadd.f32 %v718, %v821
      %v823 = vpop.f32.mrb[0].mxu0
      %824 = vmatprep.mubr.bf16.mxu0 0
      %825 = vmatmul.mubr.bf16.gmra.mrb[0].mxu0 %v746
      %v826 = vpop.f32.mrb[0].mxu0
      %v827 = vadd.f32 %v718, %v826
      %v828 = vpop.f32.mrb[0].mxu0
      %v829 = vpop.f32.mrb[0].mxu0
      %v830 = vadd.f32 %v718, %v829
      %v831 = vpop.f32.mrb[0].mxu0
      %832 = vmatprep.mubr.bf16.mxu0 0
      %833 = vmatmul.mubr.bf16.gmra.mrb[0].mxu0 %v749
      %v834 = vpop.f32.mrb[0].mxu0
      %v835 = vadd.f32 %v718, %v834
      %v836 = vpop.f32.mrb[0].mxu0
      %v837 = vpop.f32.mrb[0].mxu0
      %v838 = vadd.f32 %v718, %v837
      %v839 = vpop.f32.mrb[0].mxu0
      %840 = vmatprep.mubr.bf16.mxu0 0
      %841 = vmatmul.mubr.bf16.gmra.mrb[0].mxu0 %v752
      %v842 = vpop.f32.mrb[0].mxu0
      %v843 = vadd.f32 %v718, %v842
      %v844 = vpop.f32.mrb[0].mxu0
      %v845 = vpop.f32.mrb[0].mxu0
      %v846 = vadd.f32 %v718, %v845
      %v847 = vpop.f32.mrb[0].mxu0
      %848 = vmatprep.mubr.bf16.mxu0 0
      %849 = vmatmul.mubr.bf16.gmra.mrb[0].mxu0 %v755
      %v850 = vpop.f32.mrb[0].mxu0
      %v851 = vadd.f32 %v718, %v850
      %v852 = vpop.f32.mrb[0].mxu0
      %v853 = vpop.f32.mrb[0].mxu0
      %v854 = vadd.f32 %v718, %v853
      %v855 = vpop.f32.mrb[0].mxu0
      %856 = vmatprep.mubr.bf16.mxu0 0
      %857 = vmatmul.mubr.bf16.gmra.mrb[0].mxu0 %v758
      %v858 = vpop.f32.mrb[0].mxu0
      %v859 = vadd.f32 %v718, %v858
      %v860 = vpop.f32.mrb[0].mxu0
      %v861 = vpop.f32.mrb[0].mxu0
      %v862 = vadd.f32 %v718, %v861
      %v863 = vpop.f32.mrb[0].mxu0
      %864 = vdwg.mxu0
      %v865 = vmax.f32 %v795, 0.0
      %v866 = vmax.f32 %v798, 0.0
      %v867 = vmax.f32 %v803, 0.0
      %v868 = vmax.f32 %v806, 0.0
      %v869 = vmax.f32 %v811, 0.0
      %v870 = vmax.f32 %v814, 0.0
      %v871 = vmax.f32 %v819, 0.0
      %v872 = vmax.f32 %v822, 0.0
      %v873 = vmax.f32 %v827, 0.0
      %v874 = vmax.f32 %v830, 0.0
      %v875 = vmax.f32 %v835, 0.0
      %v876 = vmax.f32 %v838, 0.0
      %v877 = vmax.f32 %v843, 0.0
      %v878 = vmax.f32 %v846, 0.0
      %v879 = vmax.f32 %v851, 0.0
      %v880 = vmax.f32 %v854, 0.0
      %v881 = vmax.f32 %v859, 0.0
      %v882 = vmax.f32 %v862, 0.0
      %v883 = vrot.slane %v865, 6
      %v884 = vrot.slane %v866, 6
      %v885 = vrot.slane %v867, 6
      %v886 = vrot.slane %v868, 6
      %v887 = vrot.slane %v869, 6
      %v888 = vrot.slane %v870, 6
      %v889 = vrot.slane %v871, 6
      %v890 = vrot.slane %v872, 6
      %v891 = vrot.slane %v873, 6
      %v892 = vrot.slane %v874, 6
      %v893 = vrot.slane %v875, 6
      %v894 = vrot.slane %v876, 6
      %v895 = vrot.slane %v877, 6
      %v896 = vrot.slane %v878, 6
      %v897 = vrot.slane %v879, 6
      %v898 = vrot.slane %v880, 6
      %v899 = vrot.slane %v881, 6
      %v900 = vrot.slane %v882, 6
      %v901 = vsel %vm536, %v899, %v900
      %v902 = vsel %vm536, %v898, %v899
      %v903 = vsel %vm536, %v897, %v898
      %v904 = vsel %vm536, %v896, %v897
      %v905 = vsel %vm536, %v895, %v896
      %v906 = vsel %vm536, %v894, %v895
      %v907 = vsel %vm536, %v893, %v894
      %v908 = vsel %vm536, %v892, %v893
      %v909 = vsel %vm536, %v891, %v892
      %v910 = vsel %vm536, %v890, %v891
      %v911 = vsel %vm536, %v889, %v890
      %v912 = vsel %vm536, %v888, %v889
      %v913 = vsel %vm536, %v887, %v888
      %v914 = vsel %vm536, %v886, %v887
      %v915 = vsel %vm536, %v885, %v886
      %v916 = vsel %vm536, %v884, %v885
      %v917 = vsel %vm536, %v883, %v884
      %v918 = vsel %vm536, %v900, %v883
      %v919 = vsel %vm573, %v918, 0.0
      %v920 = vsel %vm574, %v917, 0.0
      %v921 = vsel %vm575, %v916, 0.0
      %v922 = vsel %vm576, %v915, 0.0
      %v923 = vsel %vm577, %v914, 0.0
      %v924 = vsel %vm578, %v913, 0.0
      %v925 = vsel %vm579, %v912, 0.0
      %v926 = vsel %vm580, %v911, 0.0
      %v927 = vsel %vm581, %v910, 0.0
      %v928 = vsel %vm582, %v909, 0.0
      %v929 = vsel %vm583, %v908, 0.0
      %v930 = vsel %vm584, %v907, 0.0
      %v931 = vsel %vm585, %v906, 0.0
      %v932 = vsel %vm586, %v905, 0.0
      %v933 = vsel %vm587, %v904, 0.0
      %v934 = vsel %vm588, %v903, 0.0
      %v935 = vsel %vm589, %v902, 0.0
      %v936 = vsel %vm590, %v901, 0.0
      %955 = vrot.lane.b32.xlu0 %v919, 16
      %v956 = vpop.permute.xlu0 %955
      %957 = vrot.lane.b32.xlu0 %v920, 16
      %v958 = vpop.permute.xlu0 %957
      %959 = vrot.lane.b32.xlu0 %v921, 16
      %v960 = vpop.permute.xlu0 %959
      %961 = vrot.lane.b32.xlu0 %v922, 16
      %v962 = vpop.permute.xlu0 %961
      %963 = vrot.lane.b32.xlu0 %v923, 16
      %v964 = vpop.permute.xlu0 %963
      %965 = vrot.lane.b32.xlu0 %v924, 16
      %v966 = vpop.permute.xlu0 %965
      %967 = vrot.lane.b32.xlu0 %v925, 16
      %v968 = vpop.permute.xlu0 %967
      %969 = vrot.lane.b32.xlu0 %v926, 16
      %v970 = vpop.permute.xlu0 %969
      %971 = vrot.lane.b32.xlu0 %v927, 16
      %v972 = vpop.permute.xlu0 %971
      %973 = vrot.lane.b32.xlu0 %v928, 16
      %v974 = vpop.permute.xlu0 %973
      %975 = vrot.lane.b32.xlu0 %v929, 16
      %v976 = vpop.permute.xlu0 %975
      %977 = vrot.lane.b32.xlu0 %v930, 16
      %v978 = vpop.permute.xlu0 %977
      %979 = vrot.lane.b32.xlu0 %v931, 16
      %v980 = vpop.permute.xlu0 %979
      %981 = vrot.lane.b32.xlu0 %v932, 16
      %v982 = vpop.permute.xlu0 %981
      %983 = vrot.lane.b32.xlu0 %v933, 16
      %v984 = vpop.permute.xlu0 %983
      %985 = vrot.lane.b32.xlu0 %v934, 16
      %v986 = vpop.permute.xlu0 %985
      %987 = vrot.lane.b32.xlu0 %v935, 16
      %v988 = vpop.permute.xlu0 %987
      %989 = vrot.lane.b32.xlu0 %v936, 16
      %v990 = vpop.permute.xlu0 %989
      %v1009 = vsel %vm681, %v865, %v956
      %v1010 = vsel %vm681, %v866, %v958
      %v1011 = vsel %vm681, %v867, %v960
      %v1012 = vsel %vm681, %v868, %v962
      %v1013 = vsel %vm681, %v869, %v964
      %v1014 = vsel %vm681, %v870, %v966
      %v1015 = vsel %vm681, %v871, %v968
      %v1016 = vsel %vm681, %v872, %v970
      %v1017 = vsel %vm681, %v873, %v972
      %v1018 = vsel %vm681, %v874, %v974
      %v1019 = vsel %vm681, %v875, %v976
      %v1020 = vsel %vm681, %v876, %v978
      %v1021 = vsel %vm681, %v877, %v980
      %v1022 = vsel %vm681, %v878, %v982
      %v1023 = vsel %vm681, %v879, %v984
      %v1024 = vsel %vm681, %v880, %v986
      %v1025 = vsel %vm681, %v881, %v988
      %v1026 = vsel %vm681, %v882, %v990
      %v1027 = vld [vmem:[%s1 + $0x4] sm:$0xf]
      %v1028 = vld [vmem:[%s1 + $0x14] sm:$0xf]
      %v1029 = vld [vmem:[%s1 + $0x24] sm:$0xf]
      %v1030 = vld [vmem:[%s1 + $0x34] sm:$0xf]
      %v1031 = vpack.c.bf16 %v1010, %v1009
      %v1032 = vpack.c.bf16 %v1012, %v1011
      %v1033 = vpack.c.bf16 %v1014, %v1013
      %v1034 = vpack.c.bf16 %v1016, %v1015
      %v1035 = vpack.c.bf16 %v1018, %v1017
      %v1036 = vpack.c.bf16 %v1020, %v1019
      %v1037 = vpack.c.bf16 %v1022, %v1021
      %v1038 = vpack.c.bf16 %v1024, %v1023
      %v1039 = vpack.c.bf16 %v1026, %v1025
      %v1040 = vld [vmem:[%s2 + $0x1] sm:$0x1]
      %v1042 = vlaneseq
      %v1043 = vshrl.u32 %v1042, 7
      %v1044 = vsub.s32 0, %v1043
      %v1045 = vrot.slane %v1040, %v1044
      %v1051 = vunpack.c.l.b16 %v1027
      %v1052 = vunpack.c.l.b16 %v1028
      %v1053 = vunpack.c.l.b16 %v1029
      %v1054 = vunpack.c.l.b16 %v1030
      %v1055 = vpack.c.b16 %v1052, %v1051
      %v1056 = vpack.c.b16 %v1054, %v1053
      %v1060 = vsel %vm732, %v1031, 0
      %v1063 = vsel %vm732, %v1032, 0
      %v1066 = vsel %vm732, %v1033, 0
      %v1069 = vsel %vm732, %v1034, 0
      %v1072 = vsel %vm732, %v1035, 0
      %v1075 = vsel %vm732, %v1036, 0
      %v1078 = vsel %vm732, %v1037, 0
      %v1081 = vsel %vm732, %v1038, 0
      %v1084 = vsel %vm732, %v1039, 0
      %1086 = vmatprep.subr.bf16.mxu0 0
      %1087 = vmatpush1.bf16.msra.mxu0 %v1055
      %1088 = vmatprep.subr.bf16.mxu0 0
      %1089 = vmatpush1.bf16.msra.mxu0 %v1056
      %1090 = vmatprep.subr.bf16.mxu0 0
      %1091 = vmatpush1.bf16.msra.mxu0 0
      %1092 = vmatprep.subr.bf16.mxu0 0
      %1093 = vmatpush1.bf16.msra.mxu0 0
      %1094 = vmatprep.subr.bf16.mxu0 0
      %1095 = vmatpush1.bf16.msra.mxu0 0
      %1096 = vmatprep.subr.bf16.mxu0 0
      %1097 = vmatpush1.bf16.msra.mxu0 0
      %1098 = vmatprep.subr.bf16.mxu0 0
      %1099 = vmatpush1.bf16.msra.mxu0 0
      %1100 = vmatprep.subr.bf16.mxu0 0
      %1101 = vmatpush1.bf16.msra.mxu0 0
      %1102 = vmatprep.subr.bf16.mxu0 0
      %1103 = vmatpush1.bf16.msra.mxu0 0
      %1104 = vmatprep.subr.bf16.mxu0 0
      %1105 = vmatpush1.bf16.msra.mxu0 0
      %1106 = vmatprep.subr.bf16.mxu0 0
      %1107 = vmatpush1.bf16.msra.mxu0 0
      %1108 = vmatprep.subr.bf16.mxu0 0
      %1109 = vmatpush1.bf16.msra.mxu0 0
      %1110 = vmatprep.subr.bf16.mxu0 0
      %1111 = vmatpush1.bf16.msra.mxu0 0
      %1112 = vmatprep.subr.bf16.mxu0 0
      %1113 = vmatpush1.bf16.msra.mxu0 0
      %1114 = vmatprep.subr.bf16.mxu0 0
      %1115 = vmatpush1.bf16.msra.mxu0 0
      %1116 = vmatprep.subr.bf16.mxu0 0
      %1117 = vmatpush1.bf16.msra.mxu0 0
      %1118 = vmatprep.mubr.bf16.mxu0 0
      %1119 = vmatmul.mubr.bf16.gmra.mrb[0].mxu0 %v1060
      %v1120 = vpop.f32.mrb[0].mxu0
      %v1121 = vadd.f32 %v1045, %v1120
      %v1122 = vpop.f32.mrb[0].mxu0
      %v1123 = vpop.f32.mrb[0].mxu0
      %v1124 = vadd.f32 %v1045, %v1123
      %v1125 = vpop.f32.mrb[0].mxu0
      %1126 = vmatprep.mubr.bf16.mxu0 0
      %1127 = vmatmul.mubr.bf16.gmra.mrb[0].mxu0 %v1063
      %v1128 = vpop.f32.mrb[0].mxu0
      %v1129 = vadd.f32 %v1045, %v1128
      %v1130 = vpop.f32.mrb[0].mxu0
      %v1131 = vpop.f32.mrb[0].mxu0
      %v1132 = vadd.f32 %v1045, %v1131
      %v1133 = vpop.f32.mrb[0].mxu0
      %1134 = vmatprep.mubr.bf16.mxu0 0
      %1135 = vmatmul.mubr.bf16.gmra.mrb[0].mxu0 %v1066
      %v1136 = vpop.f32.mrb[0].mxu0
      %v1137 = vadd.f32 %v1045, %v1136
      %v1138 = vpop.f32.mrb[0].mxu0
      %v1139 = vpop.f32.mrb[0].mxu0
      %v1140 = vadd.f32 %v1045, %v1139
      %v1141 = vpop.f32.mrb[0].mxu0
      %1142 = vmatprep.mubr.bf16.mxu0 0
      %1143 = vmatmul.mubr.bf16.gmra.mrb[0].mxu0 %v1069
      %v1144 = vpop.f32.mrb[0].mxu0
      %v1145 = vadd.f32 %v1045, %v1144
      %v1146 = vpop.f32.mrb[0].mxu0
      %v1147 = vpop.f32.mrb[0].mxu0
      %v1148 = vadd.f32 %v1045, %v1147
      %v1149 = vpop.f32.mrb[0].mxu0
      %1150 = vmatprep.mubr.bf16.mxu0 0
      %1151 = vmatmul.mubr.bf16.gmra.mrb[0].mxu0 %v1072
      %v1152 = vpop.f32.mrb[0].mxu0
      %v1153 = vadd.f32 %v1045, %v1152
      %v1154 = vpop.f32.mrb[0].mxu0
      %v1155 = vpop.f32.mrb[0].mxu0
      %v1156 = vadd.f32 %v1045, %v1155
      %v1157 = vpop.f32.mrb[0].mxu0
      %1158 = vmatprep.mubr.bf16.mxu0 0
      %1159 = vmatmul.mubr.bf16.gmra.mrb[0].mxu0 %v1075
      %v1160 = vpop.f32.mrb[0].mxu0
      %v1161 = vadd.f32 %v1045, %v1160
      %v1162 = vpop.f32.mrb[0].mxu0
      %v1163 = vpop.f32.mrb[0].mxu0
      %v1164 = vadd.f32 %v1045, %v1163
      %v1165 = vpop.f32.mrb[0].mxu0
      %1166 = vmatprep.mubr.bf16.mxu0 0
      %1167 = vmatmul.mubr.bf16.gmra.mrb[0].mxu0 %v1078
      %v1168 = vpop.f32.mrb[0].mxu0
      %v1169 = vadd.f32 %v1045, %v1168
      %v1170 = vpop.f32.mrb[0].mxu0
      %v1171 = vpop.f32.mrb[0].mxu0
      %v1172 = vadd.f32 %v1045, %v1171
      %v1173 = vpop.f32.mrb[0].mxu0
      %1174 = vmatprep.mubr.bf16.mxu0 0
      %1175 = vmatmul.mubr.bf16.gmra.mrb[0].mxu0 %v1081
      %v1176 = vpop.f32.mrb[0].mxu0
      %v1177 = vadd.f32 %v1045, %v1176
      %v1178 = vpop.f32.mrb[0].mxu0
      %v1179 = vpop.f32.mrb[0].mxu0
      %v1180 = vadd.f32 %v1045, %v1179
      %v1181 = vpop.f32.mrb[0].mxu0
      %1182 = vmatprep.mubr.bf16.mxu0 0
      %1183 = vmatmul.mubr.bf16.gmra.mrb[0].mxu0 %v1084
      %v1184 = vpop.f32.mrb[0].mxu0
      %v1185 = vadd.f32 %v1045, %v1184
      %v1186 = vpop.f32.mrb[0].mxu0
      %v1187 = vpop.f32.mrb[0].mxu0
      %v1188 = vadd.f32 %v1045, %v1187
      %v1189 = vpop.f32.mrb[0].mxu0
      %1190 = vdwg.mxu0
      %v1191 = vadd.f32 %v1121, %v482
      %v1192 = vadd.f32 %v1124, %v483
      %v1193 = vadd.f32 %v1129, %v484
      %v1194 = vadd.f32 %v1132, %v485
      %v1195 = vadd.f32 %v1137, %v486
      %v1196 = vadd.f32 %v1140, %v487
      %v1197 = vadd.f32 %v1145, %v488
      %v1198 = vadd.f32 %v1148, %v489
      %v1199 = vadd.f32 %v1153, %v490
      %v1200 = vadd.f32 %v1156, %v491
      %v1201 = vadd.f32 %v1161, %v492
      %v1202 = vadd.f32 %v1164, %v493
      %v1203 = vadd.f32 %v1169, %v494
      %v1204 = vadd.f32 %v1172, %v495
      %v1205 = vadd.f32 %v1177, %v496
      %v1206 = vadd.f32 %v1180, %v497
      %v1207 = vadd.f32 %v1185, %v498
      %v1208 = vadd.f32 %v1188, %v499
      %v1209 = vmax.f32 %v1191, 0.0
      %v1210 = vmax.f32 %v1192, 0.0
      %v1211 = vmax.f32 %v1193, 0.0
      %v1212 = vmax.f32 %v1194, 0.0
      %v1213 = vmax.f32 %v1195, 0.0
      %v1214 = vmax.f32 %v1196, 0.0
      %v1215 = vmax.f32 %v1197, 0.0
      %v1216 = vmax.f32 %v1198, 0.0
      %v1217 = vmax.f32 %v1199, 0.0
      %v1218 = vmax.f32 %v1200, 0.0
      %v1219 = vmax.f32 %v1201, 0.0
      %v1220 = vmax.f32 %v1202, 0.0
      %v1221 = vmax.f32 %v1203, 0.0
      %v1222 = vmax.f32 %v1204, 0.0
      %v1223 = vmax.f32 %v1205, 0.0
      %v1224 = vmax.f32 %v1206, 0.0
      %v1225 = vmax.f32 %v1207, 0.0
      %v1226 = vmax.f32 %v1208, 0.0
      %vm1227 = vcmp.ge.s32.totalorder %v464, 1
      %vm1228 = vcmp.ge.s32.totalorder %v465, 1
      %vm1229 = vcmp.ge.s32.totalorder %v466, 1
      %vm1230 = vcmp.ge.s32.totalorder %v467, 1
      %vm1231 = vcmp.ge.s32.totalorder %v468, 1
      %vm1232 = vcmp.ge.s32.totalorder %v469, 1
      %vm1233 = vcmp.ge.s32.totalorder %v470, 1
      %vm1234 = vcmp.ge.s32.totalorder %v471, 1
      %vm1235 = vcmp.ge.s32.totalorder %v472, 1
      %vm1236 = vcmp.ge.s32.totalorder %v473, 1
      %vm1237 = vcmp.ge.s32.totalorder %v474, 1
      %vm1238 = vcmp.ge.s32.totalorder %v475, 1
      %vm1239 = vcmp.ge.s32.totalorder %v476, 1
      %vm1240 = vcmp.ge.s32.totalorder %v477, 1
      %vm1241 = vcmp.ge.s32.totalorder %v478, 1
      %vm1242 = vcmp.ge.s32.totalorder %v479, 1
      %vm1243 = vcmp.ge.s32.totalorder %v480, 1
      %vm1244 = vcmp.ge.s32.totalorder %v481, 1
      %v1245 = vrot.slane %v1209, 7
      %v1246 = vrot.slane %v1210, 7
      %v1247 = vrot.slane %v1211, 7
      %v1248 = vrot.slane %v1212, 7
      %v1249 = vrot.slane %v1213, 7
      %v1250 = vrot.slane %v1214, 7
      %v1251 = vrot.slane %v1215, 7
      %v1252 = vrot.slane %v1216, 7
      %v1253 = vrot.slane %v1217, 7
      %v1254 = vrot.slane %v1218, 7
      %v1255 = vrot.slane %v1219, 7
      %v1256 = vrot.slane %v1220, 7
      %v1257 = vrot.slane %v1221, 7
      %v1258 = vrot.slane %v1222, 7
      %v1259 = vrot.slane %v1223, 7
      %v1260 = vrot.slane %v1224, 7
      %v1261 = vrot.slane %v1225, 7
      %v1262 = vrot.slane %v1226, 7
      %vm1263 = vcmp.lt.s32.totalorder %v176, 1
      %v1264 = vsel %vm1263, %v1261, %v1262
      %v1265 = vsel %vm1263, %v1260, %v1261
      %v1266 = vsel %vm1263, %v1259, %v1260
      %v1267 = vsel %vm1263, %v1258, %v1259
      %v1268 = vsel %vm1263, %v1257, %v1258
      %v1269 = vsel %vm1263, %v1256, %v1257
      %v1270 = vsel %vm1263, %v1255, %v1256
      %v1271 = vsel %vm1263, %v1254, %v1255
      %v1272 = vsel %vm1263, %v1253, %v1254
      %v1273 = vsel %vm1263, %v1252, %v1253
      %v1274 = vsel %vm1263, %v1251, %v1252
      %v1275 = vsel %vm1263, %v1250, %v1251
      %v1276 = vsel %vm1263, %v1249, %v1250
      %v1277 = vsel %vm1263, %v1248, %v1249
      %v1278 = vsel %vm1263, %v1247, %v1248
      %v1279 = vsel %vm1263, %v1246, %v1247
      %v1280 = vsel %vm1263, %v1245, %v1246
      %v1281 = vsel %vm1263, %v1262, %v1245
      %v1282 = vsel %vm1227, 1, 0
      %v1283 = vsel %vm1228, 1, 0
      %v1284 = vsel %vm1229, 1, 0
      %v1285 = vsel %vm1230, 1, 0
      %v1286 = vsel %vm1231, 1, 0
      %v1287 = vsel %vm1232, 1, 0
      %v1288 = vsel %vm1233, 1, 0
      %v1289 = vsel %vm1234, 1, 0
      %v1290 = vsel %vm1235, 1, 0
      %v1291 = vsel %vm1236, 1, 0
      %v1292 = vsel %vm1237, 1, 0
      %v1293 = vsel %vm1238, 1, 0
      %v1294 = vsel %vm1239, 1, 0
      %v1295 = vsel %vm1240, 1, 0
      %v1296 = vsel %vm1241, 1, 0
      %v1297 = vsel %vm1242, 1, 0
      %v1298 = vsel %vm1243, 1, 0
      %v1299 = vsel %vm1244, 1, 0
      %vm1300 = vcmp.eq.s32.totalorder %v1282, 1
      %vm1301 = vcmp.eq.s32.totalorder %v1283, 1
      %vm1302 = vcmp.eq.s32.totalorder %v1284, 1
      %vm1303 = vcmp.eq.s32.totalorder %v1285, 1
      %vm1304 = vcmp.eq.s32.totalorder %v1286, 1
      %vm1305 = vcmp.eq.s32.totalorder %v1287, 1
      %vm1306 = vcmp.eq.s32.totalorder %v1288, 1
      %vm1307 = vcmp.eq.s32.totalorder %v1289, 1
      %vm1308 = vcmp.eq.s32.totalorder %v1290, 1
      %vm1309 = vcmp.eq.s32.totalorder %v1291, 1
      %vm1310 = vcmp.eq.s32.totalorder %v1292, 1
      %vm1311 = vcmp.eq.s32.totalorder %v1293, 1
      %vm1312 = vcmp.eq.s32.totalorder %v1294, 1
      %vm1313 = vcmp.eq.s32.totalorder %v1295, 1
      %vm1314 = vcmp.eq.s32.totalorder %v1296, 1
      %vm1315 = vcmp.eq.s32.totalorder %v1297, 1
      %vm1316 = vcmp.eq.s32.totalorder %v1298, 1
      %vm1317 = vcmp.eq.s32.totalorder %v1299, 1
      %v1318 = vsel %vm1300, %v1281, 0.0
      %v1319 = vsel %vm1301, %v1280, 0.0
      %v1320 = vsel %vm1302, %v1279, 0.0
      %v1321 = vsel %vm1303, %v1278, 0.0
      %v1322 = vsel %vm1304, %v1277, 0.0
      %v1323 = vsel %vm1305, %v1276, 0.0
      %v1324 = vsel %vm1306, %v1275, 0.0
      %v1325 = vsel %vm1307, %v1274, 0.0
      %v1326 = vsel %vm1308, %v1273, 0.0
      %v1327 = vsel %vm1309, %v1272, 0.0
      %v1328 = vsel %vm1310, %v1271, 0.0
      %v1329 = vsel %vm1311, %v1270, 0.0
      %v1330 = vsel %vm1312, %v1269, 0.0
      %v1331 = vsel %vm1313, %v1268, 0.0
      %v1332 = vsel %vm1314, %v1267, 0.0
      %v1333 = vsel %vm1315, %v1266, 0.0
      %v1334 = vsel %vm1316, %v1265, 0.0
      %v1335 = vsel %vm1317, %v1264, 0.0
      %1354 = vrot.lane.b32.xlu0 %v1318, 16
      %v1355 = vpop.permute.xlu0 %1354
      %1356 = vrot.lane.b32.xlu0 %v1319, 16
      %v1357 = vpop.permute.xlu0 %1356
      %1358 = vrot.lane.b32.xlu0 %v1320, 16
      %v1359 = vpop.permute.xlu0 %1358
      %1360 = vrot.lane.b32.xlu0 %v1321, 16
      %v1361 = vpop.permute.xlu0 %1360
      %1362 = vrot.lane.b32.xlu0 %v1322, 16
      %v1363 = vpop.permute.xlu0 %1362
      %1364 = vrot.lane.b32.xlu0 %v1323, 16
      %v1365 = vpop.permute.xlu0 %1364
      %1366 = vrot.lane.b32.xlu0 %v1324, 16
      %v1367 = vpop.permute.xlu0 %1366
      %1368 = vrot.lane.b32.xlu0 %v1325, 16
      %v1369 = vpop.permute.xlu0 %1368
      %1370 = vrot.lane.b32.xlu0 %v1326, 16
      %v1371 = vpop.permute.xlu0 %1370
      %1372 = vrot.lane.b32.xlu0 %v1327, 16
      %v1373 = vpop.permute.xlu0 %1372
      %1374 = vrot.lane.b32.xlu0 %v1328, 16
      %v1375 = vpop.permute.xlu0 %1374
      %1376 = vrot.lane.b32.xlu0 %v1329, 16
      %v1377 = vpop.permute.xlu0 %1376
      %1378 = vrot.lane.b32.xlu0 %v1330, 16
      %v1379 = vpop.permute.xlu0 %1378
      %1380 = vrot.lane.b32.xlu0 %v1331, 16
      %v1381 = vpop.permute.xlu0 %1380
      %1382 = vrot.lane.b32.xlu0 %v1332, 16
      %v1383 = vpop.permute.xlu0 %1382
      %1384 = vrot.lane.b32.xlu0 %v1333, 16
      %v1385 = vpop.permute.xlu0 %1384
      %1386 = vrot.lane.b32.xlu0 %v1334, 16
      %v1387 = vpop.permute.xlu0 %1386
      %1388 = vrot.lane.b32.xlu0 %v1335, 16
      %v1389 = vpop.permute.xlu0 %1388
      %v1408 = vsel %vm681, %v1209, %v1355
      %v1409 = vsel %vm681, %v1210, %v1357
      %v1410 = vsel %vm681, %v1211, %v1359
      %v1411 = vsel %vm681, %v1212, %v1361
      %v1412 = vsel %vm681, %v1213, %v1363
      %v1413 = vsel %vm681, %v1214, %v1365
      %v1414 = vsel %vm681, %v1215, %v1367
      %v1415 = vsel %vm681, %v1216, %v1369
      %v1416 = vsel %vm681, %v1217, %v1371
      %v1417 = vsel %vm681, %v1218, %v1373
      %v1418 = vsel %vm681, %v1219, %v1375
      %v1419 = vsel %vm681, %v1220, %v1377
      %v1420 = vsel %vm681, %v1221, %v1379
      %v1421 = vsel %vm681, %v1222, %v1381
      %v1422 = vsel %vm681, %v1223, %v1383
      %v1423 = vsel %vm681, %v1224, %v1385
      %v1424 = vsel %vm681, %v1225, %v1387
      %v1425 = vsel %vm681, %v1226, %v1389
      %v1426 = vld [vmem:[%s1 + $0x8] sm:$0xf]
      %v1427 = vld [vmem:[%s1 + $0x18] sm:$0xf]
      %v1428 = vld [vmem:[%s1 + $0x28] sm:$0xf]
      %v1429 = vld [vmem:[%s1 + $0x38] sm:$0xf]
      %v1430 = vpack.c.bf16 %v1409, %v1408
      %v1431 = vpack.c.bf16 %v1411, %v1410
      %v1432 = vpack.c.bf16 %v1413, %v1412
      %v1433 = vpack.c.bf16 %v1415, %v1414
      %v1434 = vpack.c.bf16 %v1417, %v1416
      %v1435 = vpack.c.bf16 %v1419, %v1418
      %v1436 = vpack.c.bf16 %v1421, %v1420
      %v1437 = vpack.c.bf16 %v1423, %v1422
      %v1438 = vpack.c.bf16 %v1425, %v1424
      %v1439 = vld [vmem:[%s2 + $0x2] sm:$0x1]
      %v1441 = vlaneseq
      %v1442 = vshrl.u32 %v1441, 7
      %v1443 = vsub.s32 0, %v1442
      %v1444 = vrot.slane %v1439, %v1443
      %v1450 = vunpack.c.l.b16 %v1426
      %v1451 = vunpack.c.l.b16 %v1427
      %v1452 = vunpack.c.l.b16 %v1428
      %v1453 = vunpack.c.l.b16 %v1429
      %v1454 = vpack.c.b16 %v1451, %v1450
      %v1455 = vpack.c.b16 %v1453, %v1452
      %v1459 = vsel %vm732, %v1430, 0
      %v1462 = vsel %vm732, %v1431, 0
      %v1465 = vsel %vm732, %v1432, 0
      %v1468 = vsel %vm732, %v1433, 0
      %v1471 = vsel %vm732, %v1434, 0
      %v1474 = vsel %vm732, %v1435, 0
      %v1477 = vsel %vm732, %v1436, 0
      %v1480 = vsel %vm732, %v1437, 0
      %v1483 = vsel %vm732, %v1438, 0
      %1485 = vmatprep.subr.bf16.mxu0 0
      %1486 = vmatpush1.bf16.msra.mxu0 %v1454
      %1487 = vmatprep.subr.bf16.mxu0 0
      %1488 = vmatpush1.bf16.msra.mxu0 %v1455
      %1489 = vmatprep.subr.bf16.mxu0 0
      %1490 = vmatpush1.bf16.msra.mxu0 0
      %1491 = vmatprep.subr.bf16.mxu0 0
      %1492 = vmatpush1.bf16.msra.mxu0 0
      %1493 = vmatprep.subr.bf16.mxu0 0
      %1494 = vmatpush1.bf16.msra.mxu0 0
      %1495 = vmatprep.subr.bf16.mxu0 0
      %1496 = vmatpush1.bf16.msra.mxu0 0
      %1497 = vmatprep.subr.bf16.mxu0 0
      %1498 = vmatpush1.bf16.msra.mxu0 0
      %1499 = vmatprep.subr.bf16.mxu0 0
      %1500 = vmatpush1.bf16.msra.mxu0 0
      %1501 = vmatprep.subr.bf16.mxu0 0
      %1502 = vmatpush1.bf16.msra.mxu0 0
      %1503 = vmatprep.subr.bf16.mxu0 0
      %1504 = vmatpush1.bf16.msra.mxu0 0
      %1505 = vmatprep.subr.bf16.mxu0 0
      %1506 = vmatpush1.bf16.msra.mxu0 0
      %1507 = vmatprep.subr.bf16.mxu0 0
      %1508 = vmatpush1.bf16.msra.mxu0 0
      %1509 = vmatprep.subr.bf16.mxu0 0
      %1510 = vmatpush1.bf16.msra.mxu0 0
      %1511 = vmatprep.subr.bf16.mxu0 0
      %1512 = vmatpush1.bf16.msra.mxu0 0
      %1513 = vmatprep.subr.bf16.mxu0 0
      %1514 = vmatpush1.bf16.msra.mxu0 0
      %1515 = vmatprep.subr.bf16.mxu0 0
      %1516 = vmatpush1.bf16.msra.mxu0 0
      %1517 = vmatprep.mubr.bf16.mxu0 0
      %1518 = vmatmul.mubr.bf16.gmra.mrb[0].mxu0 %v1459
      %v1519 = vpop.f32.mrb[0].mxu0
      %v1520 = vadd.f32 %v1444, %v1519
      %v1521 = vpop.f32.mrb[0].mxu0
      %v1522 = vpop.f32.mrb[0].mxu0
      %v1523 = vadd.f32 %v1444, %v1522
      %v1524 = vpop.f32.mrb[0].mxu0
      %1525 = vmatprep.mubr.bf16.mxu0 0
      %1526 = vmatmul.mubr.bf16.gmra.mrb[0].mxu0 %v1462
      %v1527 = vpop.f32.mrb[0].mxu0
      %v1528 = vadd.f32 %v1444, %v1527
      %v1529 = vpop.f32.mrb[0].mxu0
      %v1530 = vpop.f32.mrb[0].mxu0
      %v1531 = vadd.f32 %v1444, %v1530
      %v1532 = vpop.f32.mrb[0].mxu0
      %1533 = vmatprep.mubr.bf16.mxu0 0
      %1534 = vmatmul.mubr.bf16.gmra.mrb[0].mxu0 %v1465
      %v1535 = vpop.f32.mrb[0].mxu0
      %v1536 = vadd.f32 %v1444, %v1535
      %v1537 = vpop.f32.mrb[0].mxu0
      %v1538 = vpop.f32.mrb[0].mxu0
      %v1539 = vadd.f32 %v1444, %v1538
      %v1540 = vpop.f32.mrb[0].mxu0
      %1541 = vmatprep.mubr.bf16.mxu0 0
      %1542 = vmatmul.mubr.bf16.gmra.mrb[0].mxu0 %v1468
      %v1543 = vpop.f32.mrb[0].mxu0
      %v1544 = vadd.f32 %v1444, %v1543
      %v1545 = vpop.f32.mrb[0].mxu0
      %v1546 = vpop.f32.mrb[0].mxu0
      %v1547 = vadd.f32 %v1444, %v1546
      %v1548 = vpop.f32.mrb[0].mxu0
      %1549 = vmatprep.mubr.bf16.mxu0 0
      %1550 = vmatmul.mubr.bf16.gmra.mrb[0].mxu0 %v1471
      %v1551 = vpop.f32.mrb[0].mxu0
      %v1552 = vadd.f32 %v1444, %v1551
      %v1553 = vpop.f32.mrb[0].mxu0
      %v1554 = vpop.f32.mrb[0].mxu0
      %v1555 = vadd.f32 %v1444, %v1554
      %v1556 = vpop.f32.mrb[0].mxu0
      %1557 = vmatprep.mubr.bf16.mxu0 0
      %1558 = vmatmul.mubr.bf16.gmra.mrb[0].mxu0 %v1474
      %v1559 = vpop.f32.mrb[0].mxu0
      %v1560 = vadd.f32 %v1444, %v1559
      %v1561 = vpop.f32.mrb[0].mxu0
      %v1562 = vpop.f32.mrb[0].mxu0
      %v1563 = vadd.f32 %v1444, %v1562
      %v1564 = vpop.f32.mrb[0].mxu0
      %1565 = vmatprep.mubr.bf16.mxu0 0
      %1566 = vmatmul.mubr.bf16.gmra.mrb[0].mxu0 %v1477
      %v1567 = vpop.f32.mrb[0].mxu0
      %v1568 = vadd.f32 %v1444, %v1567
      %v1569 = vpop.f32.mrb[0].mxu0
      %v1570 = vpop.f32.mrb[0].mxu0
      %v1571 = vadd.f32 %v1444, %v1570
      %v1572 = vpop.f32.mrb[0].mxu0
      %1573 = vmatprep.mubr.bf16.mxu0 0
      %1574 = vmatmul.mubr.bf16.gmra.mrb[0].mxu0 %v1480
      %v1575 = vpop.f32.mrb[0].mxu0
      %v1576 = vadd.f32 %v1444, %v1575
      %v1577 = vpop.f32.mrb[0].mxu0
      %v1578 = vpop.f32.mrb[0].mxu0
      %v1579 = vadd.f32 %v1444, %v1578
      %v1580 = vpop.f32.mrb[0].mxu0
      %1581 = vmatprep.mubr.bf16.mxu0 0
      %1582 = vmatmul.mubr.bf16.gmra.mrb[0].mxu0 %v1483
      %v1583 = vpop.f32.mrb[0].mxu0
      %v1584 = vadd.f32 %v1444, %v1583
      %v1585 = vpop.f32.mrb[0].mxu0
      %v1586 = vpop.f32.mrb[0].mxu0
      %v1587 = vadd.f32 %v1444, %v1586
      %v1588 = vpop.f32.mrb[0].mxu0
      %1589 = vdwg.mxu0
      %v1590 = vmax.f32 %v1520, 0.0
      %v1591 = vmax.f32 %v1523, 0.0
      %v1592 = vmax.f32 %v1528, 0.0
      %v1593 = vmax.f32 %v1531, 0.0
      %v1594 = vmax.f32 %v1536, 0.0
      %v1595 = vmax.f32 %v1539, 0.0
      %v1596 = vmax.f32 %v1544, 0.0
      %v1597 = vmax.f32 %v1547, 0.0
      %v1598 = vmax.f32 %v1552, 0.0
      %v1599 = vmax.f32 %v1555, 0.0
      %v1600 = vmax.f32 %v1560, 0.0
      %v1601 = vmax.f32 %v1563, 0.0
      %v1602 = vmax.f32 %v1568, 0.0
      %v1603 = vmax.f32 %v1571, 0.0
      %v1604 = vmax.f32 %v1576, 0.0
      %v1605 = vmax.f32 %v1579, 0.0
      %v1606 = vmax.f32 %v1584, 0.0
      %v1607 = vmax.f32 %v1587, 0.0
      %v1608 = vrot.slane %v1590, 7
      %v1609 = vrot.slane %v1591, 7
      %v1610 = vrot.slane %v1592, 7
      %v1611 = vrot.slane %v1593, 7
      %v1612 = vrot.slane %v1594, 7
      %v1613 = vrot.slane %v1595, 7
      %v1614 = vrot.slane %v1596, 7
      %v1615 = vrot.slane %v1597, 7
      %v1616 = vrot.slane %v1598, 7
      %v1617 = vrot.slane %v1599, 7
      %v1618 = vrot.slane %v1600, 7
      %v1619 = vrot.slane %v1601, 7
      %v1620 = vrot.slane %v1602, 7
      %v1621 = vrot.slane %v1603, 7
      %v1622 = vrot.slane %v1604, 7
      %v1623 = vrot.slane %v1605, 7
      %v1624 = vrot.slane %v1606, 7
      %v1625 = vrot.slane %v1607, 7
      %v1626 = vsel %vm1263, %v1624, %v1625
      %v1627 = vsel %vm1263, %v1623, %v1624
      %v1628 = vsel %vm1263, %v1622, %v1623
      %v1629 = vsel %vm1263, %v1621, %v1622
      %v1630 = vsel %vm1263, %v1620, %v1621
      %v1631 = vsel %vm1263, %v1619, %v1620
      %v1632 = vsel %vm1263, %v1618, %v1619
      %v1633 = vsel %vm1263, %v1617, %v1618
      %v1634 = vsel %vm1263, %v1616, %v1617
      %v1635 = vsel %vm1263, %v1615, %v1616
      %v1636 = vsel %vm1263, %v1614, %v1615
      %v1637 = vsel %vm1263, %v1613, %v1614
      %v1638 = vsel %vm1263, %v1612, %v1613
      %v1639 = vsel %vm1263, %v1611, %v1612
      %v1640 = vsel %vm1263, %v1610, %v1611
      %v1641 = vsel %vm1263, %v1609, %v1610
      %v1642 = vsel %vm1263, %v1608, %v1609
      %v1643 = vsel %vm1263, %v1625, %v1608
      %v1644 = vsel %vm1300, %v1643, 0.0
      %v1645 = vsel %vm1301, %v1642, 0.0
      %v1646 = vsel %vm1302, %v1641, 0.0
      %v1647 = vsel %vm1303, %v1640, 0.0
      %v1648 = vsel %vm1304, %v1639, 0.0
      %v1649 = vsel %vm1305, %v1638, 0.0
      %v1650 = vsel %vm1306, %v1637, 0.0
      %v1651 = vsel %vm1307, %v1636, 0.0
      %v1652 = vsel %vm1308, %v1635, 0.0
      %v1653 = vsel %vm1309, %v1634, 0.0
      %v1654 = vsel %vm1310, %v1633, 0.0
      %v1655 = vsel %vm1311, %v1632, 0.0
      %v1656 = vsel %vm1312, %v1631, 0.0
      %v1657 = vsel %vm1313, %v1630, 0.0
      %v1658 = vsel %vm1314, %v1629, 0.0
      %v1659 = vsel %vm1315, %v1628, 0.0
      %v1660 = vsel %vm1316, %v1627, 0.0
      %v1661 = vsel %vm1317, %v1626, 0.0
      %1680 = vrot.lane.b32.xlu0 %v1644, 8
      %v1681 = vpop.permute.xlu0 %1680
      %1682 = vrot.lane.b32.xlu0 %v1645, 8
      %v1683 = vpop.permute.xlu0 %1682
      %1684 = vrot.lane.b32.xlu0 %v1646, 8
      %v1685 = vpop.permute.xlu0 %1684
      %1686 = vrot.lane.b32.xlu0 %v1647, 8
      %v1687 = vpop.permute.xlu0 %1686
      %1688 = vrot.lane.b32.xlu0 %v1648, 8
      %v1689 = vpop.permute.xlu0 %1688
      %1690 = vrot.lane.b32.xlu0 %v1649, 8
      %v1691 = vpop.permute.xlu0 %1690
      %1692 = vrot.lane.b32.xlu0 %v1650, 8
      %v1693 = vpop.permute.xlu0 %1692
      %1694 = vrot.lane.b32.xlu0 %v1651, 8
      %v1695 = vpop.permute.xlu0 %1694
      %1696 = vrot.lane.b32.xlu0 %v1652, 8
      %v1697 = vpop.permute.xlu0 %1696
      %1698 = vrot.lane.b32.xlu0 %v1653, 8
      %v1699 = vpop.permute.xlu0 %1698
      %1700 = vrot.lane.b32.xlu0 %v1654, 8
      %v1701 = vpop.permute.xlu0 %1700
      %1702 = vrot.lane.b32.xlu0 %v1655, 8
      %v1703 = vpop.permute.xlu0 %1702
      %1704 = vrot.lane.b32.xlu0 %v1656, 8
      %v1705 = vpop.permute.xlu0 %1704
      %1706 = vrot.lane.b32.xlu0 %v1657, 8
      %v1707 = vpop.permute.xlu0 %1706
      %1708 = vrot.lane.b32.xlu0 %v1658, 8
      %v1709 = vpop.permute.xlu0 %1708
      %1710 = vrot.lane.b32.xlu0 %v1659, 8
      %v1711 = vpop.permute.xlu0 %1710
      %1712 = vrot.lane.b32.xlu0 %v1660, 8
      %v1713 = vpop.permute.xlu0 %1712
      %1714 = vrot.lane.b32.xlu0 %v1661, 8
      %v1715 = vpop.permute.xlu0 %1714
      %vm1734 = vcmask 64512
      %v1735 = vsel %vm1734, %v1590, %v1681
      %v1736 = vsel %vm1734, %v1591, %v1683
      %v1737 = vsel %vm1734, %v1592, %v1685
      %v1738 = vsel %vm1734, %v1593, %v1687
      %v1739 = vsel %vm1734, %v1594, %v1689
      %v1740 = vsel %vm1734, %v1595, %v1691
      %v1741 = vsel %vm1734, %v1596, %v1693
      %v1742 = vsel %vm1734, %v1597, %v1695
      %v1743 = vsel %vm1734, %v1598, %v1697
      %v1744 = vsel %vm1734, %v1599, %v1699
      %v1745 = vsel %vm1734, %v1600, %v1701
      %v1746 = vsel %vm1734, %v1601, %v1703
      %v1747 = vsel %vm1734, %v1602, %v1705
      %v1748 = vsel %vm1734, %v1603, %v1707
      %v1749 = vsel %vm1734, %v1604, %v1709
      %v1750 = vsel %vm1734, %v1605, %v1711
      %v1751 = vsel %vm1734, %v1606, %v1713
      %v1752 = vsel %vm1734, %v1607, %v1715
      %v1753 = vld [vmem:[%s1 + $0xc] sm:$0xf]
      %v1754 = vld [vmem:[%s1 + $0x1c] sm:$0xf]
      %v1755 = vpack.c.bf16 %v1736, %v1735
      %v1756 = vpack.c.bf16 %v1738, %v1737
      %v1757 = vpack.c.bf16 %v1740, %v1739
      %v1758 = vpack.c.bf16 %v1742, %v1741
      %v1759 = vpack.c.bf16 %v1744, %v1743
      %v1760 = vpack.c.bf16 %v1746, %v1745
      %v1761 = vpack.c.bf16 %v1748, %v1747
      %v1762 = vpack.c.bf16 %v1750, %v1749
      %v1763 = vpack.c.bf16 %v1752, %v1751
      %v1764 = vld [vmem:[%s2 + $0x3] sm:$0x1]
      %v1766 = vlaneseq
      %v1767 = vshrl.u32 %v1766, 7
      %v1768 = vsub.s32 0, %v1767
      %v1769 = vrot.slane %v1764, %v1768
      %v1773 = vunpack.c.l.b16 %v1753
      %v1774 = vunpack.c.l.b16 %v1754
      %v1775 = vpack.c.b16 %v1774, %v1773
      %v1778 = vsel %vm681, %v1755, 0
      %v1781 = vsel %vm681, %v1756, 0
      %v1784 = vsel %vm681, %v1757, 0
      %v1787 = vsel %vm681, %v1758, 0
      %v1790 = vsel %vm681, %v1759, 0
      %v1793 = vsel %vm681, %v1760, 0
      %v1796 = vsel %vm681, %v1761, 0
      %v1799 = vsel %vm681, %v1762, 0
      %v1802 = vsel %vm681, %v1763, 0
      %1804 = vmatprep.subr.bf16.mxu0 0
      %1805 = vmatpush1.bf16.msra.mxu0 %v1775
      %1806 = vmatprep.subr.bf16.mxu0 0
      %1807 = vmatpush1.bf16.msra.mxu0 0
      %1808 = vmatprep.subr.bf16.mxu0 0
      %1809 = vmatpush1.bf16.msra.mxu0 0
      %1810 = vmatprep.subr.bf16.mxu0 0
      %1811 = vmatpush1.bf16.msra.mxu0 0
      %1812 = vmatprep.subr.bf16.mxu0 0
      %1813 = vmatpush1.bf16.msra.mxu0 0
      %1814 = vmatprep.subr.bf16.mxu0 0
      %1815 = vmatpush1.bf16.msra.mxu0 0
      %1816 = vmatprep.subr.bf16.mxu0 0
      %1817 = vmatpush1.bf16.msra.mxu0 0
      %1818 = vmatprep.subr.bf16.mxu0 0
      %1819 = vmatpush1.bf16.msra.mxu0 0
      %1820 = vmatprep.subr.bf16.mxu0 0
      %1821 = vmatpush1.bf16.msra.mxu0 0
      %1822 = vmatprep.subr.bf16.mxu0 0
      %1823 = vmatpush1.bf16.msra.mxu0 0
      %1824 = vmatprep.subr.bf16.mxu0 0
      %1825 = vmatpush1.bf16.msra.mxu0 0
      %1826 = vmatprep.subr.bf16.mxu0 0
      %1827 = vmatpush1.bf16.msra.mxu0 0
      %1828 = vmatprep.subr.bf16.mxu0 0
      %1829 = vmatpush1.bf16.msra.mxu0 0
      %1830 = vmatprep.subr.bf16.mxu0 0
      %1831 = vmatpush1.bf16.msra.mxu0 0
      %1832 = vmatprep.subr.bf16.mxu0 0
      %1833 = vmatpush1.bf16.msra.mxu0 0
      %1834 = vmatprep.subr.bf16.mxu0 0
      %1835 = vmatpush1.bf16.msra.mxu0 0
      %1836 = vmatprep.mubr.bf16.mxu0 0
      %1837 = vmatmul.mubr.bf16.gmra.mrb[0].mxu0 %v1778
      %v1838 = vpop.f32.mrb[0].mxu0
      %v1839 = vadd.f32 %v1769, %v1838
      %v1840 = vpop.f32.mrb[0].mxu0
      %v1841 = vpop.f32.mrb[0].mxu0
      %v1842 = vadd.f32 %v1769, %v1841
      %v1843 = vpop.f32.mrb[0].mxu0
      %1844 = vmatprep.mubr.bf16.mxu0 0
      %1845 = vmatmul.mubr.bf16.gmra.mrb[0].mxu0 %v1781
      %v1846 = vpop.f32.mrb[0].mxu0
      %v1847 = vadd.f32 %v1769, %v1846
      %v1848 = vpop.f32.mrb[0].mxu0
      %v1849 = vpop.f32.mrb[0].mxu0
      %v1850 = vadd.f32 %v1769, %v1849
      %v1851 = vpop.f32.mrb[0].mxu0
      %1852 = vmatprep.mubr.bf16.mxu0 0
      %1853 = vmatmul.mubr.bf16.gmra.mrb[0].mxu0 %v1784
      %v1854 = vpop.f32.mrb[0].mxu0
      %v1855 = vadd.f32 %v1769, %v1854
      %v1856 = vpop.f32.mrb[0].mxu0
      %v1857 = vpop.f32.mrb[0].mxu0
      %v1858 = vadd.f32 %v1769, %v1857
      %v1859 = vpop.f32.mrb[0].mxu0
      %1860 = vmatprep.mubr.bf16.mxu0 0
      %1861 = vmatmul.mubr.bf16.gmra.mrb[0].mxu0 %v1787
      %v1862 = vpop.f32.mrb[0].mxu0
      %v1863 = vadd.f32 %v1769, %v1862
      %v1864 = vpop.f32.mrb[0].mxu0
      %v1865 = vpop.f32.mrb[0].mxu0
      %v1866 = vadd.f32 %v1769, %v1865
      %v1867 = vpop.f32.mrb[0].mxu0
      %1868 = vmatprep.mubr.bf16.mxu0 0
      %1869 = vmatmul.mubr.bf16.gmra.mrb[0].mxu0 %v1790
      %v1870 = vpop.f32.mrb[0].mxu0
      %v1871 = vadd.f32 %v1769, %v1870
      %v1872 = vpop.f32.mrb[0].mxu0
      %v1873 = vpop.f32.mrb[0].mxu0
      %v1874 = vadd.f32 %v1769, %v1873
      %v1875 = vpop.f32.mrb[0].mxu0
      %1876 = vmatprep.mubr.bf16.mxu0 0
      %1877 = vmatmul.mubr.bf16.gmra.mrb[0].mxu0 %v1793
      %v1878 = vpop.f32.mrb[0].mxu0
      %v1879 = vadd.f32 %v1769, %v1878
      %v1880 = vpop.f32.mrb[0].mxu0
      %v1881 = vpop.f32.mrb[0].mxu0
      %v1882 = vadd.f32 %v1769, %v1881
      %v1883 = vpop.f32.mrb[0].mxu0
      %1884 = vmatprep.mubr.bf16.mxu0 0
      %1885 = vmatmul.mubr.bf16.gmra.mrb[0].mxu0 %v1796
      %v1886 = vpop.f32.mrb[0].mxu0
      %v1887 = vadd.f32 %v1769, %v1886
      %v1888 = vpop.f32.mrb[0].mxu0
      %v1889 = vpop.f32.mrb[0].mxu0
      %v1890 = vadd.f32 %v1769, %v1889
      %v1891 = vpop.f32.mrb[0].mxu0
      %1892 = vmatprep.mubr.bf16.mxu0 0
      %1893 = vmatmul.mubr.bf16.gmra.mrb[0].mxu0 %v1799
      %v1894 = vpop.f32.mrb[0].mxu0
      %v1895 = vadd.f32 %v1769, %v1894
      %v1896 = vpop.f32.mrb[0].mxu0
      %v1897 = vpop.f32.mrb[0].mxu0
      %v1898 = vadd.f32 %v1769, %v1897
      %v1899 = vpop.f32.mrb[0].mxu0
      %1900 = vmatprep.mubr.bf16.mxu0 0
      %1901 = vmatmul.mubr.bf16.gmra.mrb[0].mxu0 %v1802
      %v1902 = vpop.f32.mrb[0].mxu0
      %v1903 = vadd.f32 %v1769, %v1902
      %v1904 = vpop.f32.mrb[0].mxu0
      %v1905 = vpop.f32.mrb[0].mxu0
      %v1906 = vadd.f32 %v1769, %v1905
      %v1907 = vpop.f32.mrb[0].mxu0
      %1908 = vdwg.mxu0
      %1927 = vrot.lane.b32.xlu0 %v1520, 120
      %v1928 = vpop.permute.xlu0 %1927
      %1929 = vrot.lane.b32.xlu0 %v1523, 120
      %v1930 = vpop.permute.xlu0 %1929
      %1931 = vrot.lane.b32.xlu0 %v1528, 120
      %v1932 = vpop.permute.xlu0 %1931
      %1933 = vrot.lane.b32.xlu0 %v1531, 120
      %v1934 = vpop.permute.xlu0 %1933
      %1935 = vrot.lane.b32.xlu0 %v1536, 120
      %v1936 = vpop.permute.xlu0 %1935
      %1937 = vrot.lane.b32.xlu0 %v1539, 120
      %v1938 = vpop.permute.xlu0 %1937
      %1939 = vrot.lane.b32.xlu0 %v1544, 120
      %v1940 = vpop.permute.xlu0 %1939
      %1941 = vrot.lane.b32.xlu0 %v1547, 120
      %v1942 = vpop.permute.xlu0 %1941
      %1943 = vrot.lane.b32.xlu0 %v1552, 120
      %v1944 = vpop.permute.xlu0 %1943
      %1945 = vrot.lane.b32.xlu0 %v1555, 120
      %v1946 = vpop.permute.xlu0 %1945
      %1947 = vrot.lane.b32.xlu0 %v1560, 120
      %v1948 = vpop.permute.xlu0 %1947
      %1949 = vrot.lane.b32.xlu0 %v1563, 120
      %v1950 = vpop.permute.xlu0 %1949
      %1951 = vrot.lane.b32.xlu0 %v1568, 120
      %v1952 = vpop.permute.xlu0 %1951
      %1953 = vrot.lane.b32.xlu0 %v1571, 120
      %v1954 = vpop.permute.xlu0 %1953
      %1955 = vrot.lane.b32.xlu0 %v1576, 120
      %v1956 = vpop.permute.xlu0 %1955
      %1957 = vrot.lane.b32.xlu0 %v1579, 120
      %v1958 = vpop.permute.xlu0 %1957
      %1959 = vrot.lane.b32.xlu0 %v1584, 120
      %v1960 = vpop.permute.xlu0 %1959
      %1961 = vrot.lane.b32.xlu0 %v1587, 120
      %v1962 = vpop.permute.xlu0 %1961
      %v1981 = vadd.f32 %v1839, %v1928
      %v1982 = vadd.f32 %v1842, %v1930
      %v1983 = vadd.f32 %v1847, %v1932
      %v1984 = vadd.f32 %v1850, %v1934
      %v1985 = vadd.f32 %v1855, %v1936
      %v1986 = vadd.f32 %v1858, %v1938
      %v1987 = vadd.f32 %v1863, %v1940
      %v1988 = vadd.f32 %v1866, %v1942
      %v1989 = vadd.f32 %v1871, %v1944
      %v1990 = vadd.f32 %v1874, %v1946
      %v1991 = vadd.f32 %v1879, %v1948
      %v1992 = vadd.f32 %v1882, %v1950
      %v1993 = vadd.f32 %v1887, %v1952
      %v1994 = vadd.f32 %v1890, %v1954
      %v1995 = vadd.f32 %v1895, %v1956
      %v1996 = vadd.f32 %v1898, %v1958
      %v1997 = vadd.f32 %v1903, %v1960
      %v1998 = vadd.f32 %v1906, %v1962
      %v1999 = vmax.f32 %v1981, 0.0
      %v2000 = vmax.f32 %v1982, 0.0
      %v2001 = vmax.f32 %v1983, 0.0
      %v2002 = vmax.f32 %v1984, 0.0
      %v2003 = vmax.f32 %v1985, 0.0
      %v2004 = vmax.f32 %v1986, 0.0
      %v2005 = vmax.f32 %v1987, 0.0
      %v2006 = vmax.f32 %v1988, 0.0
      %v2007 = vmax.f32 %v1989, 0.0
      %v2008 = vmax.f32 %v1990, 0.0
      %v2009 = vmax.f32 %v1991, 0.0
      %v2010 = vmax.f32 %v1992, 0.0
      %v2011 = vmax.f32 %v1993, 0.0
      %v2012 = vmax.f32 %v1994, 0.0
      %v2013 = vmax.f32 %v1995, 0.0
      %v2014 = vmax.f32 %v1996, 0.0
      %v2015 = vmax.f32 %v1997, 0.0
      %v2016 = vmax.f32 %v1998, 0.0
      %2017 = vst.msk [vmem:[%s172] sm:$0xff] %vm1734, %v1999
      %2018 = vst.msk [vmem:[%s172 + $0x8] sm:$0xff] %vm1734, %v2000
      %2019 = vst.msk [vmem:[%s172 + $0x10] sm:$0xff] %vm1734, %v2001
      %2020 = vst.msk [vmem:[%s172 + $0x18] sm:$0xff] %vm1734, %v2002
      %2021 = vst.msk [vmem:[%s172 + $0x20] sm:$0xff] %vm1734, %v2003
      %2022 = vst.msk [vmem:[%s172 + $0x28] sm:$0xff] %vm1734, %v2004
      %2023 = vst.msk [vmem:[%s172 + $0x30] sm:$0xff] %vm1734, %v2005
      %2024 = vst.msk [vmem:[%s172 + $0x38] sm:$0xff] %vm1734, %v2006
      %2025 = vst.msk [vmem:[%s172 + $0x40] sm:$0xff] %vm1734, %v2007
      %2026 = vst.msk [vmem:[%s172 + $0x48] sm:$0xff] %vm1734, %v2008
      %2027 = vst.msk [vmem:[%s172 + $0x50] sm:$0xff] %vm1734, %v2009
      %2028 = vst.msk [vmem:[%s172 + $0x58] sm:$0xff] %vm1734, %v2010
      %2029 = vst.msk [vmem:[%s172 + $0x60] sm:$0xff] %vm1734, %v2011
      %2030 = vst.msk [vmem:[%s172 + $0x68] sm:$0xff] %vm1734, %v2012
      %2031 = vst.msk [vmem:[%s172 + $0x70] sm:$0xff] %vm1734, %v2013
      %2032 = vst.msk [vmem:[%s172 + $0x78] sm:$0xff] %vm1734, %v2014
      %2033 = vst.msk [vmem:[%s172 + $0x80] sm:$0xff] %vm1734, %v2015
      %2034 = vst.msk [vmem:[%s172 + $0x88] sm:$0xff] %vm1734, %v2016
      %s2035 = smul.u32 18, %s14
      %p2036 = scmp.lt.s32.totalorder %s2035, 35
      %s2037 = scalar_select %p2036, %s2035, 35
      %s2038 = smul.addr %s2037, 8
      %s2039 = scalar_lea.vmem %s3, %s2038
      // Predicated region
      $region33: #{_lambda_.3} parent=31 // pred_check
        %p2040 = pneg %p100
      $region34: #{_lambda_.3} parent=31 // pred_check_branch
        %2042 = sbr.rel (%p2040) target = $region36
      $region35: #{_lambda_.3} parent=31 // pred_region
        %s2043 = smul.u32 18, %s14
      $region36: #{_lambda_.3} parent=31 // pred_fallthru
        _
    $region32: #{_lambda_.3} parent=5 // pred_fallthru
      _
    %p2044 = scmp.le.s32.totalorder 2, %s9
    // Predicated region
    $region37: #{_lambda_.3} parent=5 // pred_check
      %p2045 = pneg %p2044
    $region38: #{_lambda_.3} parent=5 // pred_check_branch
      %2047 = sbr.rel (%p2045) target = $region40
    $region39: #{_lambda_.3} parent=5 // pred_region
      %s2048 = ssub.s32 %s9, 2
      // Predicated region
      $region41: #{_lambda_.3} parent=39 // pred_check
        %p2049 = pneg %p106
      $region42: #{_lambda_.3} parent=39 // pred_check_branch
        %2051 = sbr.rel (%p2049) target = $region44
      $region43: #{_lambda_.3} parent=39 // pred_region
        %s2052 = smul.u32 18, %s15
        %p2053 = scmp.lt.s32.totalorder %s2052, 35
        %s2054 = scalar_select %p2053, %s2052, 35
        %s2055 = smul.addr %s2054, 8
        %s2056 = scalar_lea.vmem %s3, %s2055
      $region44: #{_lambda_.3} parent=39 // pred_fallthru
        _
    $region40: #{_lambda_.3} parent=5 // pred_fallthru
      _
  $region6: #{_lambda_.3} parent=0 // loop_footer
    %s13 = sadd.s32 1, %s9
  $region7: #{_lambda_.3} parent=0 // loop_footer_branch
    %8 = sbr.rel target = $region3
  $region8: #{_lambda_.3} parent=0 // loop_exit
    _

// kernel: _lambda_.2
$region0: #{_lambda_.2}
  #allocation0 [shape = 'u32[]', space=smem, size = 0x4, offset = 0x4, fixed_abs, tag = 'smem constant byte address 0x4 - core index']
  #allocation1 [shape = 'u32[144,128]{1,0:T(1,128)}', space=vmem, size = 0x12000, scoped, tag = 'internal scratch']
  %s0 = inlined_call_operand.vmem [shape: f32[288,8], index: 0, kind: input, shape index: {}]
  %s1 = inlined_call_operand.vmem [shape: f32[288,2], index: 1, kind: input, shape index: {}]
  %s2 = inlined_call_operand.vmem [shape: bf16[32,512], index: 2, kind: input, shape index: {}]
  %s3 = inlined_call_operand.vmem [shape: f32[1,512], index: 3, kind: input, shape index: {}]
  %s4 = inlined_call_operand.vmem [shape: f32[288,16], index: 4, kind: output, shape index: {}]
  %s5 = sld [smem:[#allocation0]]
  $region49: #{_lambda_.2} parent=0
    _
  %s7 = ssub.s32 1, %s5
  %s8 = scalar_select 0, %s7, %s5
  loop: start=0, step=1, limit=4
  $region2: #{_lambda_.2} parent=0 // loop_pre_header
    _
  $region3: #{_lambda_.2} parent=0 // loop_header
    %s10 = sphi 0, %s14
    %p11 = scmp.ge.s32.totalorder %s10, 4
    %s20 = sphi 0, %s22
    %s23 = sphi 0, %s20
    %s24 = sphi 0, %s23
    %s40 = sphi 0, %s24
    %s46 = sphi 0, %s48
    %s49 = sphi 0, %s46
    %s50 = sphi 0, %s49
    %s66 = sphi 0, %s50
    %s70 = sphi 0, %s70
    %s72 = sphi 0, %s70
    %s73 = sphi 0, %s72
    %s87 = sphi 0, %s73
    %s91 = sphi 0, %s91
    %s93 = sphi 0, %s91
    %s94 = sphi 0, %s93
    %s108 = sphi 0, %s94
    %s114 = sphi 0, %s116
    %s117 = sphi 0, %s114
    %s118 = sphi 0, %s117
    %s134 = sphi 0, %s118
  $region4: #{_lambda_.2} parent=0 // loop_header_branch
    %13 = sbr.rel (%p11) target = $region8
  $region5: #{_lambda_.2} parent=0 // loop_body
    %s15 = ssub.s32 %s10, 1
    %s16 = ssub.s32 %s10, 2
    %s17 = sadd.s32 %s10, 1
    %s18 = ssub.s32 %s10, %s17
    %p19 = scmp.eq.s32.totalorder %s18, 0
    %s21 = sadd.s32 %s20, 1
    %s22 = scalar_select %p19, %s20, %s21
    %p25 = pneg %p19
    %p26 = scmp.eq.s32.totalorder %s10, 1
    %p27 = por %p25, %p26
    %p28 = scmp.ne.s32.totalorder %s20, %s23
    %p29 = scmp.eq.s32.totalorder %s10, 0
    %p30 = por %p28, %p29
    %p31 = scmp.ne.s32.totalorder %s20, %s23
    %p32 = scmp.eq.s32.totalorder %s15, 1
    %p33 = por %p31, %p32
    %p34 = scmp.ne.s32.totalorder %s23, %s24
    %p35 = scmp.eq.s32.totalorder %s15, 0
    %p36 = por %p34, %p35
    %p37 = scmp.ne.s32.totalorder %s23, %s24
    %p38 = scmp.eq.s32.totalorder %s16, 1
    %p39 = por %p37, %p38
    %p41 = scmp.ne.s32.totalorder %s24, %s40
    %p42 = scmp.eq.s32.totalorder %s16, 0
    %p43 = por %p41, %p42
    %s44 = ssub.s32 %s10, %s17
    %p45 = scmp.eq.s32.totalorder %s44, 0
    %s47 = sadd.s32 %s46, 1
    %s48 = scalar_select %p45, %s46, %s47
    %p51 = pneg %p45
    %p52 = scmp.eq.s32.totalorder %s10, 1
    %p53 = por %p51, %p52
    %p54 = scmp.ne.s32.totalorder %s46, %s49
    %p55 = scmp.eq.s32.totalorder %s10, 0
    %p56 = por %p54, %p55
    %p57 = scmp.ne.s32.totalorder %s46, %s49
    %p58 = scmp.eq.s32.totalorder %s15, 1
    %p59 = por %p57, %p58
    %p60 = scmp.ne.s32.totalorder %s49, %s50
    %p61 = scmp.eq.s32.totalorder %s15, 0
    %p62 = por %p60, %p61
    %p63 = scmp.ne.s32.totalorder %s49, %s50
    %p64 = scmp.eq.s32.totalorder %s16, 1
    %p65 = por %p63, %p64
    %p67 = scmp.ne.s32.totalorder %s50, %s66
    %p68 = scmp.eq.s32.totalorder %s16, 0
    %p69 = por %p67, %p68
    %s71 = sadd.s32 %s70, 1
    %p74 = scmp.eq.s32.totalorder %s10, 1
    %p75 = scmp.ne.s32.totalorder %s70, %s72
    %p76 = scmp.eq.s32.totalorder %s10, 0
    %p77 = por %p75, %p76
    %p78 = scmp.ne.s32.totalorder %s70, %s72
    %p79 = scmp.eq.s32.totalorder %s15, 1
    %p80 = por %p78, %p79
    %p81 = scmp.ne.s32.totalorder %s72, %s73
    %p82 = scmp.eq.s32.totalorder %s15, 0
    %p83 = por %p81, %p82
    %p84 = scmp.ne.s32.totalorder %s72, %s73
    %p85 = scmp.eq.s32.totalorder %s16, 1
    %p86 = por %p84, %p85
    %p88 = scmp.ne.s32.totalorder %s73, %s87
    %p89 = scmp.eq.s32.totalorder %s16, 0
    %p90 = por %p88, %p89
    %s92 = sadd.s32 %s91, 1
    %p95 = scmp.eq.s32.totalorder %s10, 1
    %p96 = scmp.ne.s32.totalorder %s91, %s93
    %p97 = scmp.eq.s32.totalorder %s10, 0
    %p98 = por %p96, %p97
    %p99 = scmp.ne.s32.totalorder %s91, %s93
    %p100 = scmp.eq.s32.totalorder %s15, 1
    %p101 = por %p99, %p100
    %p102 = scmp.ne.s32.totalorder %s93, %s94
    %p103 = scmp.eq.s32.totalorder %s15, 0
    %p104 = por %p102, %p103
    %p105 = scmp.ne.s32.totalorder %s93, %s94
    %p106 = scmp.eq.s32.totalorder %s16, 1
    %p107 = por %p105, %p106
    %p109 = scmp.ne.s32.totalorder %s94, %s108
    %p110 = scmp.eq.s32.totalorder %s16, 0
    %p111 = por %p109, %p110
    %s112 = ssub.s32 %s10, %s17
    %p113 = scmp.eq.s32.totalorder %s112, 0
    %s115 = sadd.s32 %s114, 1
    %s116 = scalar_select %p113, %s114, %s115
    %p119 = pneg %p113
    %p120 = scmp.eq.s32.totalorder %s10, 1
    %p121 = por %p119, %p120
    %p122 = scmp.ne.s32.totalorder %s114, %s117
    %p123 = scmp.eq.s32.totalorder %s10, 0
    %p124 = por %p122, %p123
    %p125 = scmp.ne.s32.totalorder %s114, %s117
    %p126 = scmp.eq.s32.totalorder %s15, 1
    %p127 = por %p125, %p126
    %p128 = scmp.ne.s32.totalorder %s117, %s118
    %p129 = scmp.eq.s32.totalorder %s15, 0
    %p130 = por %p128, %p129
    %p131 = scmp.ne.s32.totalorder %s117, %s118
    %p132 = scmp.eq.s32.totalorder %s16, 1
    %p133 = por %p131, %p132
    %p135 = scmp.ne.s32.totalorder %s118, %s134
    %p136 = scmp.eq.s32.totalorder %s16, 0
    %p137 = por %p135, %p136
    %p138 = scmp.le.s32.totalorder 1, %s10
    %p139 = scmp.lt.s32.totalorder %s10, 3
    %p140 = pnand %p138, %p139
    %p141 = pneg %p140
    // Predicated region
    $region9: #{_lambda_.2} parent=5 // pred_check
      _
    $region10: #{_lambda_.2} parent=5 // pred_check_branch
      %143 = sbr.rel (%p140) target = $region12
    $region11: #{_lambda_.2} parent=5 // pred_region
      %s144 = ssub.s32 %s10, 1
      // Predicated region
      $region13: #{_lambda_.2} parent=11 // pred_check
        %p145 = pneg %p83
      $region14: #{_lambda_.2} parent=11 // pred_check_branch
        %147 = sbr.rel (%p145) target = $region16
      $region15: #{_lambda_.2} parent=11 // pred_region
        _
      $region16: #{_lambda_.2} parent=11 // pred_fallthru
        _
      // Predicated region
      $region17: #{_lambda_.2} parent=11 // pred_check
        %p148 = pneg %p104
      $region18: #{_lambda_.2} parent=11 // pred_check_branch
        %150 = sbr.rel (%p148) target = $region20
      $region19: #{_lambda_.2} parent=11 // pred_region
        _
      $region20: #{_lambda_.2} parent=11 // pred_fallthru
        _
    $region12: #{_lambda_.2} parent=5 // pred_fallthru
      _
    %p151 = scmp.lt.s32.totalorder %s10, 2
    // Predicated region
    $region21: #{_lambda_.2} parent=5 // pred_check
      %p152 = pneg %p151
    $region22: #{_lambda_.2} parent=5 // pred_check_branch
      %154 = sbr.rel (%p152) target = $region24
    $region23: #{_lambda_.2} parent=5 // pred_region
      // Predicated region
      $region25: #{_lambda_.2} parent=23 // pred_check
        %p155 = pneg %p30
      $region26: #{_lambda_.2} parent=23 // pred_check_branch
        %157 = sbr.rel (%p155) target = $region28
      $region27: #{_lambda_.2} parent=23 // pred_region
        %s158 = smul.u32 18, %s10
        %p159 = scmp.lt.s32.totalorder %s158, 35
        %s160 = scalar_select %p159, %s158, 35
        %s161 = smul.addr %s160, 8
        %s162 = scalar_lea.vmem %s0, %s161
        %s163 = smul.u32 18, %s10
      $region28: #{_lambda_.2} parent=23 // pred_fallthru
        _
      // Predicated region
      $region29: #{_lambda_.2} parent=23 // pred_check
        %p164 = pneg %p56
      $region30: #{_lambda_.2} parent=23 // pred_check_branch
        %166 = sbr.rel (%p164) target = $region32
      $region31: #{_lambda_.2} parent=23 // pred_region
        %s167 = smul.u32 18, %s10
        %p168 = scmp.lt.s32.totalorder %s167, 35
        %s169 = scalar_select %p168, %s167, 35
        %s170 = smul.addr %s169, 8
        %s171 = scalar_lea.vmem %s1, %s170
        %s172 = smul.u32 18, %s10
      $region32: #{_lambda_.2} parent=23 // pred_fallthru
        _
    $region24: #{_lambda_.2} parent=5 // pred_fallthru
      _
    %p173 = scmp.le.s32.totalorder 1, %s10
    %p174 = scmp.lt.s32.totalorder %s10, 3
    %p175 = pnand %p173, %p174
    %p176 = pneg %p175
    // Predicated region
    $region33: #{_lambda_.2} parent=5 // pred_check
      _
    $region34: #{_lambda_.2} parent=5 // pred_check_branch
      %178 = sbr.rel (%p175) target = $region36
    $region35: #{_lambda_.2} parent=5 // pred_region
      %s179 = ssub.s32 %s10, 1
      %s180 = smul.u32 18, %s15
      %p181 = scmp.lt.s32.totalorder %s180, 35
      %s182 = scalar_select %p181, %s180, 35
      %s183 = smul.addr %s182, 8
      %s184 = scalar_lea.vmem %s0, %s183
      %p185 = pneg %p36
      %p186 = pneg %p33
      %s187 = smul.u32 18, %s15
      %p188 = scmp.lt.s32.totalorder %s187, 35
      %s189 = scalar_select %p188, %s187, 35
      %s190 = smul.addr %s189, 8
      %s191 = scalar_lea.vmem %s1, %s190
      %p192 = pneg %p62
      %p193 = pneg %p59
      %p194 = pneg %p83
      %p195 = pneg %p80
      %p196 = pneg %p104
      %p197 = pneg %p101
      %p198 = pneg %p130
      %p199 = pneg %p127
      %s200 = smul.u32 18, %s15
      %p201 = scmp.lt.s32.totalorder %s200, 35
      %s202 = scalar_select %p201, %s200, 35
      %s203 = smul.addr %s202, 8
      %s204 = scalar_lea.vmem %s4, %s203
      %s205 = smul.u32 18, %s15
      %p206 = scmp.lt.s32.totalorder %s205, 35
      %s207 = scalar_select %p206, %s205, 35
      %s208 = smul.addr %s207, 8
      %s209 = scalar_lea.vmem %s0, %s208
      %s210 = smul.u32 18, %s15
      %s211 = smul.u32 18, %s15
      %p212 = scmp.lt.s32.totalorder %s211, 35
      %s213 = scalar_select %p212, %s211, 35
      %s214 = smul.addr %s213, 8
      %s215 = scalar_lea.vmem %s1, %s214
      %s216 = smul.u32 18, %s15
      %s217 = smul.u32 18, %s15
      %p218 = scmp.lt.s32.totalorder %s217, 35
      %s219 = scalar_select %p218, %s217, 35
      %s220 = smul.addr %s219, 8
      %s221 = scalar_lea.vmem %s4, %s220
      %s222 = smul.u32 18, %s15
      %v224 = vlaneseq
      %v225 = vshrl.u32 %v224, 7
      %v226 = vadd.s32 %v225, 8
      %v227 = vadd.s32 %v225, 16
      %v228 = vadd.s32 %v225, 24
      %v229 = vadd.s32 %v225, 32
      %v230 = vadd.s32 %v225, 40
      %v231 = vadd.s32 %v225, 48
      %v232 = vadd.s32 %v225, 56
      %v233 = vadd.s32 %v225, 64
      %v234 = vadd.s32 %v225, 72
      %v235 = vadd.s32 %v225, 80
      %v236 = vadd.s32 %v225, 88
      %v237 = vadd.s32 %v225, 96
      %v238 = vadd.s32 %v225, 104
      %v239 = vadd.s32 %v225, 112
      %v240 = vadd.s32 %v225, 120
      %v241 = vadd.s32 %v225, 128
      %v242 = vadd.s32 %v225, 136
      %vm243 = vcmp.lt.s32.totalorder %v225, 0
      %v244 = vsub.s32 0, %v225
      %v245 = vsel %vm243, %v244, %v225
      %v246 = vmul.u32.u64.compose %v245, 3817748708
      %v247 = vextract.low.u32 %v246
      %v248 = vextract.high.u32 %v246
      %v249 = vshrl.u32 %v248, 6
      %v250 = vmul.u32 %v249, 72
      %v251 = vsub.s32 %v245, %v250
      %v252 = vsub.s32 0, %v251
      %v253 = vsel %vm243, %v252, %v251
      %vm254 = vcmp.lt.s32.totalorder %v226, 0
      %v255 = vsub.s32 0, %v226
      %v256 = vsel %vm254, %v255, %v226
      %v257 = vmul.u32.u64.compose %v256, 3817748708
      %v258 = vextract.low.u32 %v257
      %v259 = vextract.high.u32 %v257
      %v260 = vshrl.u32 %v259, 6
      %v261 = vmul.u32 %v260, 72
      %v262 = vsub.s32 %v256, %v261
      %v263 = vsub.s32 0, %v262
      %v264 = vsel %vm254, %v263, %v262
      %vm265 = vcmp.lt.s32.totalorder %v227, 0
      %v266 = vsub.s32 0, %v227
      %v267 = vsel %vm265, %v266, %v227
      %v268 = vmul.u32.u64.compose %v267, 3817748708
      %v269 = vextract.low.u32 %v268
      %v270 = vextract.high.u32 %v268
      %v271 = vshrl.u32 %v270, 6
      %v272 = vmul.u32 %v271, 72
      %v273 = vsub.s32 %v267, %v272
      %v274 = vsub.s32 0, %v273
      %v275 = vsel %vm265, %v274, %v273
      %vm276 = vcmp.lt.s32.totalorder %v228, 0
      %v277 = vsub.s32 0, %v228
      %v278 = vsel %vm276, %v277, %v228
      %v279 = vmul.u32.u64.compose %v278, 3817748708
      %v280 = vextract.low.u32 %v279
      %v281 = vextract.high.u32 %v279
      %v282 = vshrl.u32 %v281, 6
      %v283 = vmul.u32 %v282, 72
      %v284 = vsub.s32 %v278, %v283
      %v285 = vsub.s32 0, %v284
      %v286 = vsel %vm276, %v285, %v284
      %vm287 = vcmp.lt.s32.totalorder %v229, 0
      %v288 = vsub.s32 0, %v229
      %v289 = vsel %vm287, %v288, %v229
      %v290 = vmul.u32.u64.compose %v289, 3817748708
      %v291 = vextract.low.u32 %v290
      %v292 = vextract.high.u32 %v290
      %v293 = vshrl.u32 %v292, 6
      %v294 = vmul.u32 %v293, 72
      %v295 = vsub.s32 %v289, %v294
      %v296 = vsub.s32 0, %v295
      %v297 = vsel %vm287, %v296, %v295
      %vm298 = vcmp.lt.s32.totalorder %v230, 0
      %v299 = vsub.s32 0, %v230
      %v300 = vsel %vm298, %v299, %v230
      %v301 = vmul.u32.u64.compose %v300, 3817748708
      %v302 = vextract.low.u32 %v301
      %v303 = vextract.high.u32 %v301
      %v304 = vshrl.u32 %v303, 6
      %v305 = vmul.u32 %v304, 72
      %v306 = vsub.s32 %v300, %v305
      %v307 = vsub.s32 0, %v306
      %v308 = vsel %vm298, %v307, %v306
      %vm309 = vcmp.lt.s32.totalorder %v231, 0
      %v310 = vsub.s32 0, %v231
      %v311 = vsel %vm309, %v310, %v231
      %v312 = vmul.u32.u64.compose %v311, 3817748708
      %v313 = vextract.low.u32 %v312
      %v314 = vextract.high.u32 %v312
      %v315 = vshrl.u32 %v314, 6
      %v316 = vmul.u32 %v315, 72
      %v317 = vsub.s32 %v311, %v316
      %v318 = vsub.s32 0, %v317
      %v319 = vsel %vm309, %v318, %v317
      %vm320 = vcmp.lt.s32.totalorder %v232, 0
      %v321 = vsub.s32 0, %v232
      %v322 = vsel %vm320, %v321, %v232
      %v323 = vmul.u32.u64.compose %v322, 3817748708
      %v324 = vextract.low.u32 %v323
      %v325 = vextract.high.u32 %v323
      %v326 = vshrl.u32 %v325, 6
      %v327 = vmul.u32 %v326, 72
      %v328 = vsub.s32 %v322, %v327
      %v329 = vsub.s32 0, %v328
      %v330 = vsel %vm320, %v329, %v328
      %vm331 = vcmp.lt.s32.totalorder %v233, 0
      %v332 = vsub.s32 0, %v233
      %v333 = vsel %vm331, %v332, %v233
      %v334 = vmul.u32.u64.compose %v333, 3817748708
      %v335 = vextract.low.u32 %v334
      %v336 = vextract.high.u32 %v334
      %v337 = vshrl.u32 %v336, 6
      %v338 = vmul.u32 %v337, 72
      %v339 = vsub.s32 %v333, %v338
      %v340 = vsub.s32 0, %v339
      %v341 = vsel %vm331, %v340, %v339
      %vm342 = vcmp.lt.s32.totalorder %v234, 0
      %v343 = vsub.s32 0, %v234
      %v344 = vsel %vm342, %v343, %v234
      %v345 = vmul.u32.u64.compose %v344, 3817748708
      %v346 = vextract.low.u32 %v345
      %v347 = vextract.high.u32 %v345
      %v348 = vshrl.u32 %v347, 6
      %v349 = vmul.u32 %v348, 72
      %v350 = vsub.s32 %v344, %v349
      %v351 = vsub.s32 0, %v350
      %v352 = vsel %vm342, %v351, %v350
      %vm353 = vcmp.lt.s32.totalorder %v235, 0
      %v354 = vsub.s32 0, %v235
      %v355 = vsel %vm353, %v354, %v235
      %v356 = vmul.u32.u64.compose %v355, 3817748708
      %v357 = vextract.low.u32 %v356
      %v358 = vextract.high.u32 %v356
      %v359 = vshrl.u32 %v358, 6
      %v360 = vmul.u32 %v359, 72
      %v361 = vsub.s32 %v355, %v360
      %v362 = vsub.s32 0, %v361
      %v363 = vsel %vm353, %v362, %v361
      %vm364 = vcmp.lt.s32.totalorder %v236, 0
      %v365 = vsub.s32 0, %v236
      %v366 = vsel %vm364, %v365, %v236
      %v367 = vmul.u32.u64.compose %v366, 3817748708
      %v368 = vextract.low.u32 %v367
      %v369 = vextract.high.u32 %v367
      %v370 = vshrl.u32 %v369, 6
      %v371 = vmul.u32 %v370, 72
      %v372 = vsub.s32 %v366, %v371
      %v373 = vsub.s32 0, %v372
      %v374 = vsel %vm364, %v373, %v372
      %vm375 = vcmp.lt.s32.totalorder %v237, 0
      %v376 = vsub.s32 0, %v237
      %v377 = vsel %vm375, %v376, %v237
      %v378 = vmul.u32.u64.compose %v377, 3817748708
      %v379 = vextract.low.u32 %v378
      %v380 = vextract.high.u32 %v378
      %v381 = vshrl.u32 %v380, 6
      %v382 = vmul.u32 %v381, 72
      %v383 = vsub.s32 %v377, %v382
      %v384 = vsub.s32 0, %v383
      %v385 = vsel %vm375, %v384, %v383
      %vm386 = vcmp.lt.s32.totalorder %v238, 0
      %v387 = vsub.s32 0, %v238
      %v388 = vsel %vm386, %v387, %v238
      %v389 = vmul.u32.u64.compose %v388, 3817748708
      %v390 = vextract.low.u32 %v389
      %v391 = vextract.high.u32 %v389
      %v392 = vshrl.u32 %v391, 6
      %v393 = vmul.u32 %v392, 72
      %v394 = vsub.s32 %v388, %v393
      %v395 = vsub.s32 0, %v394
      %v396 = vsel %vm386, %v395, %v394
      %vm397 = vcmp.lt.s32.totalorder %v239, 0
      %v398 = vsub.s32 0, %v239
      %v399 = vsel %vm397, %v398, %v239
      %v400 = vmul.u32.u64.compose %v399, 3817748708
      %v401 = vextract.low.u32 %v400
      %v402 = vextract.high.u32 %v400
      %v403 = vshrl.u32 %v402, 6
      %v404 = vmul.u32 %v403, 72
      %v405 = vsub.s32 %v399, %v404
      %v406 = vsub.s32 0, %v405
      %v407 = vsel %vm397, %v406, %v405
      %vm408 = vcmp.lt.s32.totalorder %v240, 0
      %v409 = vsub.s32 0, %v240
      %v410 = vsel %vm408, %v409, %v240
      %v411 = vmul.u32.u64.compose %v410, 3817748708
      %v412 = vextract.low.u32 %v411
      %v413 = vextract.high.u32 %v411
      %v414 = vshrl.u32 %v413, 6
      %v415 = vmul.u32 %v414, 72
      %v416 = vsub.s32 %v410, %v415
      %v417 = vsub.s32 0, %v416
      %v418 = vsel %vm408, %v417, %v416
      %vm419 = vcmp.lt.s32.totalorder %v241, 0
      %v420 = vsub.s32 0, %v241
      %v421 = vsel %vm419, %v420, %v241
      %v422 = vmul.u32.u64.compose %v421, 3817748708
      %v423 = vextract.low.u32 %v422
      %v424 = vextract.high.u32 %v422
      %v425 = vshrl.u32 %v424, 6
      %v426 = vmul.u32 %v425, 72
      %v427 = vsub.s32 %v421, %v426
      %v428 = vsub.s32 0, %v427
      %v429 = vsel %vm419, %v428, %v427
      %vm430 = vcmp.lt.s32.totalorder %v242, 0
      %v431 = vsub.s32 0, %v242
      %v432 = vsel %vm430, %v431, %v242
      %v433 = vmul.u32.u64.compose %v432, 3817748708
      %v434 = vextract.low.u32 %v433
      %v435 = vextract.high.u32 %v433
      %v436 = vshrl.u32 %v435, 6
      %v437 = vmul.u32 %v436, 72
      %v438 = vsub.s32 %v432, %v437
      %v439 = vsub.s32 0, %v438
      %v440 = vsel %vm430, %v439, %v438
      %vm441 = vcmp.ne.s32.totalorder %v253, 0
      %vm442 = vcmp.ne.s32.totalorder %v264, 0
      %vm443 = vcmp.ne.s32.totalorder %v275, 0
      %vm444 = vcmp.ne.s32.totalorder %v286, 0
      %vm445 = vcmp.ne.s32.totalorder %v297, 0
      %vm446 = vcmp.ne.s32.totalorder %v308, 0
      %vm447 = vcmp.ne.s32.totalorder %v319, 0
      %vm448 = vcmp.ne.s32.totalorder %v330, 0
      %vm449 = vcmp.ne.s32.totalorder %v341, 0
      %vm450 = vcmp.ne.s32.totalorder %v352, 0
      %vm451 = vcmp.ne.s32.totalorder %v363, 0
      %vm452 = vcmp.ne.s32.totalorder %v374, 0
      %vm453 = vcmp.ne.s32.totalorder %v385, 0
      %vm454 = vcmp.ne.s32.totalorder %v396, 0
      %vm455 = vcmp.ne.s32.totalorder %v407, 0
      %vm456 = vcmp.ne.s32.totalorder %v418, 0
      %vm457 = vcmp.ne.s32.totalorder %v429, 0
      %vm458 = vcmp.ne.s32.totalorder %v440, 0
      %vm459 = vcmp.lt.s32.totalorder %v253, 0
      %vm460 = vcmp.lt.s32.totalorder %v264, 0
      %vm461 = vcmp.lt.s32.totalorder %v275, 0
      %vm462 = vcmp.lt.s32.totalorder %v286, 0
      %vm463 = vcmp.lt.s32.totalorder %v297, 0
      %vm464 = vcmp.lt.s32.totalorder %v308, 0
      %vm465 = vcmp.lt.s32.totalorder %v319, 0
      %vm466 = vcmp.lt.s32.totalorder %v330, 0
      %vm467 = vcmp.lt.s32.totalorder %v341, 0
      %vm468 = vcmp.lt.s32.totalorder %v352, 0
      %vm469 = vcmp.lt.s32.totalorder %v363, 0
      %vm470 = vcmp.lt.s32.totalorder %v374, 0
      %vm471 = vcmp.lt.s32.totalorder %v385, 0
      %vm472 = vcmp.lt.s32.totalorder %v396, 0
      %vm473 = vcmp.lt.s32.totalorder %v407, 0
      %vm474 = vcmp.lt.s32.totalorder %v418, 0
      %vm475 = vcmp.lt.s32.totalorder %v429, 0
      %vm476 = vcmp.lt.s32.totalorder %v440, 0
      %vm477 = vmand %vm459, %vm441
      %vm478 = vmand %vm460, %vm442
      %vm479 = vmand %vm461, %vm443
      %vm480 = vmand %vm462, %vm444
      %vm481 = vmand %vm463, %vm445
      %vm482 = vmand %vm464, %vm446
      %vm483 = vmand %vm465, %vm447
      %vm484 = vmand %vm466, %vm448
      %vm485 = vmand %vm467, %vm449
      %vm486 = vmand %vm468, %vm450
      %vm487 = vmand %vm469, %vm451
      %vm488 = vmand %vm470, %vm452
      %vm489 = vmand %vm471, %vm453
      %vm490 = vmand %vm472, %vm454
      %vm491 = vmand %vm473, %vm455
      %vm492 = vmand %vm474, %vm456
      %vm493 = vmand %vm475, %vm457
      %vm494 = vmand %vm476, %vm458
      %v495 = vadd.s32 %v253, 72
      %v496 = vadd.s32 %v264, 72
      %v497 = vadd.s32 %v275, 72
      %v498 = vadd.s32 %v286, 72
      %v499 = vadd.s32 %v297, 72
      %v500 = vadd.s32 %v308, 72
      %v501 = vadd.s32 %v319, 72
      %v502 = vadd.s32 %v330, 72
      %v503 = vadd.s32 %v341, 72
      %v504 = vadd.s32 %v352, 72
      %v505 = vadd.s32 %v363, 72
      %v506 = vadd.s32 %v374, 72
      %v507 = vadd.s32 %v385, 72
      %v508 = vadd.s32 %v396, 72
      %v509 = vadd.s32 %v407, 72
      %v510 = vadd.s32 %v418, 72
      %v511 = vadd.s32 %v429, 72
      %v512 = vadd.s32 %v440, 72
      %v513 = vsel %vm477, %v495, %v253
      %v514 = vsel %vm478, %v496, %v264
      %v515 = vsel %vm479, %v497, %v275
      %v516 = vsel %vm480, %v498, %v286
      %v517 = vsel %vm481, %v499, %v297
      %v518 = vsel %vm482, %v500, %v308
      %v519 = vsel %vm483, %v501, %v319
      %v520 = vsel %vm484, %v502, %v330
      %v521 = vsel %vm485, %v503, %v341
      %v522 = vsel %vm486, %v504, %v352
      %v523 = vsel %vm487, %v505, %v363
      %v524 = vsel %vm488, %v506, %v374
      %v525 = vsel %vm489, %v507, %v385
      %v526 = vsel %vm490, %v508, %v396
      %v527 = vsel %vm491, %v509, %v407
      %v528 = vsel %vm492, %v510, %v418
      %v529 = vsel %vm493, %v511, %v429
      %v530 = vsel %vm494, %v512, %v440
      %v531 = vld [vmem:[%s209] sm:$0xff]
      %v532 = vld [vmem:[%s209 + $0x8] sm:$0xff]
      %v533 = vld [vmem:[%s209 + $0x10] sm:$0xff]
      %v534 = vld [vmem:[%s209 + $0x18] sm:$0xff]
      %v535 = vld [vmem:[%s209 + $0x20] sm:$0xff]
      %v536 = vld [vmem:[%s209 + $0x28] sm:$0xff]
      %v537 = vld [vmem:[%s209 + $0x30] sm:$0xff]
      %v538 = vld [vmem:[%s209 + $0x38] sm:$0xff]
      %v539 = vld [vmem:[%s209 + $0x40] sm:$0xff]
      %v540 = vld [vmem:[%s209 + $0x48] sm:$0xff]
      %v541 = vld [vmem:[%s209 + $0x50] sm:$0xff]
      %v542 = vld [vmem:[%s209 + $0x58] sm:$0xff]
      %v543 = vld [vmem:[%s209 + $0x60] sm:$0xff]
      %v544 = vld [vmem:[%s209 + $0x68] sm:$0xff]
      %v545 = vld [vmem:[%s209 + $0x70] sm:$0xff]
      %v546 = vld [vmem:[%s209 + $0x78] sm:$0xff]
      %v547 = vld [vmem:[%s209 + $0x80] sm:$0xff]
      %v548 = vld [vmem:[%s209 + $0x88] sm:$0xff]
      %v549 = vld [vmem:[%s215] sm:$0xff]
      %v550 = vld [vmem:[%s215 + $0x8] sm:$0xff]
      %v551 = vld [vmem:[%s215 + $0x10] sm:$0xff]
      %v552 = vld [vmem:[%s215 + $0x18] sm:$0xff]
      %v553 = vld [vmem:[%s215 + $0x20] sm:$0xff]
      %v554 = vld [vmem:[%s215 + $0x28] sm:$0xff]
      %v555 = vld [vmem:[%s215 + $0x30] sm:$0xff]
      %v556 = vld [vmem:[%s215 + $0x38] sm:$0xff]
      %v557 = vld [vmem:[%s215 + $0x40] sm:$0xff]
      %v558 = vld [vmem:[%s215 + $0x48] sm:$0xff]
      %v559 = vld [vmem:[%s215 + $0x50] sm:$0xff]
      %v560 = vld [vmem:[%s215 + $0x58] sm:$0xff]
      %v561 = vld [vmem:[%s215 + $0x60] sm:$0xff]
      %v562 = vld [vmem:[%s215 + $0x68] sm:$0xff]
      %v563 = vld [vmem:[%s215 + $0x70] sm:$0xff]
      %v564 = vld [vmem:[%s215 + $0x78] sm:$0xff]
      %v565 = vld [vmem:[%s215 + $0x80] sm:$0xff]
      %v566 = vld [vmem:[%s215 + $0x88] sm:$0xff]
      %568 = vset.pattern.permute.xlu0 0
      %569 = vperm.xlu0 %568, %v549
      %v570 = vpop.permute.xlu0 %569
      %573 = vset.pattern.permute.xlu0 0
      %574 = vperm.xlu0 %573, %v550
      %v575 = vpop.permute.xlu0 %574
      %578 = vset.pattern.permute.xlu0 0
      %579 = vperm.xlu0 %578, %v551
      %v580 = vpop.permute.xlu0 %579
      %583 = vset.pattern.permute.xlu0 0
      %584 = vperm.xlu0 %583, %v552
      %v585 = vpop.permute.xlu0 %584
      %588 = vset.pattern.permute.xlu0 0
      %589 = vperm.xlu0 %588, %v553
      %v590 = vpop.permute.xlu0 %589
      %593 = vset.pattern.permute.xlu0 0
      %594 = vperm.xlu0 %593, %v554
      %v595 = vpop.permute.xlu0 %594
      %598 = vset.pattern.permute.xlu0 0
      %599 = vperm.xlu0 %598, %v555
      %v600 = vpop.permute.xlu0 %599
      %603 = vset.pattern.permute.xlu0 0
      %604 = vperm.xlu0 %603, %v556
      %v605 = vpop.permute.xlu0 %604
      %608 = vset.pattern.permute.xlu0 0
      %609 = vperm.xlu0 %608, %v557
      %v610 = vpop.permute.xlu0 %609
      %613 = vset.pattern.permute.xlu0 0
      %614 = vperm.xlu0 %613, %v558
      %v615 = vpop.permute.xlu0 %614
      %618 = vset.pattern.permute.xlu0 0
      %619 = vperm.xlu0 %618, %v559
      %v620 = vpop.permute.xlu0 %619
      %623 = vset.pattern.permute.xlu0 0
      %624 = vperm.xlu0 %623, %v560
      %v625 = vpop.permute.xlu0 %624
      %628 = vset.pattern.permute.xlu0 0
      %629 = vperm.xlu0 %628, %v561
      %v630 = vpop.permute.xlu0 %629
      %633 = vset.pattern.permute.xlu0 0
      %634 = vperm.xlu0 %633, %v562
      %v635 = vpop.permute.xlu0 %634
      %638 = vset.pattern.permute.xlu0 0
      %639 = vperm.xlu0 %638, %v563
      %v640 = vpop.permute.xlu0 %639
      %643 = vset.pattern.permute.xlu0 0
      %644 = vperm.xlu0 %643, %v564
      %v645 = vpop.permute.xlu0 %644
      %648 = vset.pattern.permute.xlu0 0
      %649 = vperm.xlu0 %648, %v565
      %v650 = vpop.permute.xlu0 %649
      %653 = vset.pattern.permute.xlu0 0
      %654 = vperm.xlu0 %653, %v566
      %v655 = vpop.permute.xlu0 %654
      %v657 = vmul.f32 %v531, %v570
      %v658 = vmul.f32 %v532, %v575
      %v659 = vmul.f32 %v533, %v580
      %v660 = vmul.f32 %v534, %v585
      %v661 = vmul.f32 %v535, %v590
      %v662 = vmul.f32 %v536, %v595
      %v663 = vmul.f32 %v537, %v600
      %v664 = vmul.f32 %v538, %v605
      %v665 = vmul.f32 %v539, %v610
      %v666 = vmul.f32 %v540, %v615
      %v667 = vmul.f32 %v541, %v620
      %v668 = vmul.f32 %v542, %v625
      %v669 = vmul.f32 %v543, %v630
      %v670 = vmul.f32 %v544, %v635
      %v671 = vmul.f32 %v545, %v640
      %v672 = vmul.f32 %v546, %v645
      %v673 = vmul.f32 %v547, %v650
      %v674 = vmul.f32 %v548, %v655
      %675 = vset.pattern.permute.xlu0 1
      %676 = vperm.xlu0 %675, %v549
      %v677 = vpop.permute.xlu0 %676
      %679 = vset.pattern.permute.xlu0 1
      %680 = vperm.xlu0 %679, %v550
      %v681 = vpop.permute.xlu0 %680
      %683 = vset.pattern.permute.xlu0 1
      %684 = vperm.xlu0 %683, %v551
      %v685 = vpop.permute.xlu0 %684
      %687 = vset.pattern.permute.xlu0 1
      %688 = vperm.xlu0 %687, %v552
      %v689 = vpop.permute.xlu0 %688
      %691 = vset.pattern.permute.xlu0 1
      %692 = vperm.xlu0 %691, %v553
      %v693 = vpop.permute.xlu0 %692
      %695 = vset.pattern.permute.xlu0 1
      %696 = vperm.xlu0 %695, %v554
      %v697 = vpop.permute.xlu0 %696
      %699 = vset.pattern.permute.xlu0 1
      %700 = vperm.xlu0 %699, %v555
      %v701 = vpop.permute.xlu0 %700
      %703 = vset.pattern.permute.xlu0 1
      %704 = vperm.xlu0 %703, %v556
      %v705 = vpop.permute.xlu0 %704
      %707 = vset.pattern.permute.xlu0 1
      %708 = vperm.xlu0 %707, %v557
      %v709 = vpop.permute.xlu0 %708
      %711 = vset.pattern.permute.xlu0 1
      %712 = vperm.xlu0 %711, %v558
      %v713 = vpop.permute.xlu0 %712
      %715 = vset.pattern.permute.xlu0 1
      %716 = vperm.xlu0 %715, %v559
      %v717 = vpop.permute.xlu0 %716
      %719 = vset.pattern.permute.xlu0 1
      %720 = vperm.xlu0 %719, %v560
      %v721 = vpop.permute.xlu0 %720
      %723 = vset.pattern.permute.xlu0 1
      %724 = vperm.xlu0 %723, %v561
      %v725 = vpop.permute.xlu0 %724
      %727 = vset.pattern.permute.xlu0 1
      %728 = vperm.xlu0 %727, %v562
      %v729 = vpop.permute.xlu0 %728
      %731 = vset.pattern.permute.xlu0 1
      %732 = vperm.xlu0 %731, %v563
      %v733 = vpop.permute.xlu0 %732
      %735 = vset.pattern.permute.xlu0 1
      %736 = vperm.xlu0 %735, %v564
      %v737 = vpop.permute.xlu0 %736
      %739 = vset.pattern.permute.xlu0 1
      %740 = vperm.xlu0 %739, %v565
      %v741 = vpop.permute.xlu0 %740
      %743 = vset.pattern.permute.xlu0 1
      %744 = vperm.xlu0 %743, %v566
      %v745 = vpop.permute.xlu0 %744
      %v747 = vadd.f32 %v657, %v677
      %v748 = vadd.f32 %v658, %v681
      %v749 = vadd.f32 %v659, %v685
      %v750 = vadd.f32 %v660, %v689
      %v751 = vadd.f32 %v661, %v693
      %v752 = vadd.f32 %v662, %v697
      %v753 = vadd.f32 %v663, %v701
      %v754 = vadd.f32 %v664, %v705
      %v755 = vadd.f32 %v665, %v709
      %v756 = vadd.f32 %v666, %v713
      %v757 = vadd.f32 %v667, %v717
      %v758 = vadd.f32 %v668, %v721
      %v759 = vadd.f32 %v669, %v725
      %v760 = vadd.f32 %v670, %v729
      %v761 = vadd.f32 %v671, %v733
      %v762 = vadd.f32 %v672, %v737
      %v763 = vadd.f32 %v673, %v741
      %v764 = vadd.f32 %v674, %v745
      %vm765 = vcmp.ge.s32.totalorder %v513, 1
      %vm766 = vcmp.ge.s32.totalorder %v514, 1
      %vm767 = vcmp.ge.s32.totalorder %v515, 1
      %vm768 = vcmp.ge.s32.totalorder %v516, 1
      %vm769 = vcmp.ge.s32.totalorder %v517, 1
      %vm770 = vcmp.ge.s32.totalorder %v518, 1
      %vm771 = vcmp.ge.s32.totalorder %v519, 1
      %vm772 = vcmp.ge.s32.totalorder %v520, 1
      %vm773 = vcmp.ge.s32.totalorder %v521, 1
      %vm774 = vcmp.ge.s32.totalorder %v522, 1
      %vm775 = vcmp.ge.s32.totalorder %v523, 1
      %vm776 = vcmp.ge.s32.totalorder %v524, 1
      %vm777 = vcmp.ge.s32.totalorder %v525, 1
      %vm778 = vcmp.ge.s32.totalorder %v526, 1
      %vm779 = vcmp.ge.s32.totalorder %v527, 1
      %vm780 = vcmp.ge.s32.totalorder %v528, 1
      %vm781 = vcmp.ge.s32.totalorder %v529, 1
      %vm782 = vcmp.ge.s32.totalorder %v530, 1
      %v783 = vrot.slane %v747, 7
      %v784 = vrot.slane %v748, 7
      %v785 = vrot.slane %v749, 7
      %v786 = vrot.slane %v750, 7
      %v787 = vrot.slane %v751, 7
      %v788 = vrot.slane %v752, 7
      %v789 = vrot.slane %v753, 7
      %v790 = vrot.slane %v754, 7
      %v791 = vrot.slane %v755, 7
      %v792 = vrot.slane %v756, 7
      %v793 = vrot.slane %v757, 7
      %v794 = vrot.slane %v758, 7
      %v795 = vrot.slane %v759, 7
      %v796 = vrot.slane %v760, 7
      %v797 = vrot.slane %v761, 7
      %v798 = vrot.slane %v762, 7
      %v799 = vrot.slane %v763, 7
      %v800 = vrot.slane %v764, 7
      %vm801 = vcmp.lt.s32.totalorder %v225, 1
      %v802 = vsel %vm801, %v799, %v800
      %v803 = vsel %vm801, %v798, %v799
      %v804 = vsel %vm801, %v797, %v798
      %v805 = vsel %vm801, %v796, %v797
      %v806 = vsel %vm801, %v795, %v796
      %v807 = vsel %vm801, %v794, %v795
      %v808 = vsel %vm801, %v793, %v794
      %v809 = vsel %vm801, %v792, %v793
      %v810 = vsel %vm801, %v791, %v792
      %v811 = vsel %vm801, %v790, %v791
      %v812 = vsel %vm801, %v789, %v790
      %v813 = vsel %vm801, %v788, %v789
      %v814 = vsel %vm801, %v787, %v788
      %v815 = vsel %vm801, %v786, %v787
      %v816 = vsel %vm801, %v785, %v786
      %v817 = vsel %vm801, %v784, %v785
      %v818 = vsel %vm801, %v783, %v784
      %v819 = vsel %vm801, %v800, %v783
      %v820 = vsel %vm765, 1, 0
      %v821 = vsel %vm766, 1, 0
      %v822 = vsel %vm767, 1, 0
      %v823 = vsel %vm768, 1, 0
      %v824 = vsel %vm769, 1, 0
      %v825 = vsel %vm770, 1, 0
      %v826 = vsel %vm771, 1, 0
      %v827 = vsel %vm772, 1, 0
      %v828 = vsel %vm773, 1, 0
      %v829 = vsel %vm774, 1, 0
      %v830 = vsel %vm775, 1, 0
      %v831 = vsel %vm776, 1, 0
      %v832 = vsel %vm777, 1, 0
      %v833 = vsel %vm778, 1, 0
      %v834 = vsel %vm779, 1, 0
      %v835 = vsel %vm780, 1, 0
      %v836 = vsel %vm781, 1, 0
      %v837 = vsel %vm782, 1, 0
      %vm838 = vcmp.eq.s32.totalorder %v820, 1
      %vm839 = vcmp.eq.s32.totalorder %v821, 1
      %vm840 = vcmp.eq.s32.totalorder %v822, 1
      %vm841 = vcmp.eq.s32.totalorder %v823, 1
      %vm842 = vcmp.eq.s32.totalorder %v824, 1
      %vm843 = vcmp.eq.s32.totalorder %v825, 1
      %vm844 = vcmp.eq.s32.totalorder %v826, 1
      %vm845 = vcmp.eq.s32.totalorder %v827, 1
      %vm846 = vcmp.eq.s32.totalorder %v828, 1
      %vm847 = vcmp.eq.s32.totalorder %v829, 1
      %vm848 = vcmp.eq.s32.totalorder %v830, 1
      %vm849 = vcmp.eq.s32.totalorder %v831, 1
      %vm850 = vcmp.eq.s32.totalorder %v832, 1
      %vm851 = vcmp.eq.s32.totalorder %v833, 1
      %vm852 = vcmp.eq.s32.totalorder %v834, 1
      %vm853 = vcmp.eq.s32.totalorder %v835, 1
      %vm854 = vcmp.eq.s32.totalorder %v836, 1
      %vm855 = vcmp.eq.s32.totalorder %v837, 1
      %v856 = vsel %vm838, %v819, 0.0
      %v857 = vsel %vm839, %v818, 0.0
      %v858 = vsel %vm840, %v817, 0.0
      %v859 = vsel %vm841, %v816, 0.0
      %v860 = vsel %vm842, %v815, 0.0
      %v861 = vsel %vm843, %v814, 0.0
      %v862 = vsel %vm844, %v813, 0.0
      %v863 = vsel %vm845, %v812, 0.0
      %v864 = vsel %vm846, %v811, 0.0
      %v865 = vsel %vm847, %v810, 0.0
      %v866 = vsel %vm848, %v809, 0.0
      %v867 = vsel %vm849, %v808, 0.0
      %v868 = vsel %vm850, %v807, 0.0
      %v869 = vsel %vm851, %v806, 0.0
      %v870 = vsel %vm852, %v805, 0.0
      %v871 = vsel %vm853, %v804, 0.0
      %v872 = vsel %vm854, %v803, 0.0
      %v873 = vsel %vm855, %v802, 0.0
      %892 = vrot.lane.b32.xlu0 %v856, 8
      %v893 = vpop.permute.xlu0 %892
      %894 = vrot.lane.b32.xlu0 %v857, 8
      %v895 = vpop.permute.xlu0 %894
      %896 = vrot.lane.b32.xlu0 %v858, 8
      %v897 = vpop.permute.xlu0 %896
      %898 = vrot.lane.b32.xlu0 %v859, 8
      %v899 = vpop.permute.xlu0 %898
      %900 = vrot.lane.b32.xlu0 %v860, 8
      %v901 = vpop.permute.xlu0 %900
      %902 = vrot.lane.b32.xlu0 %v861, 8
      %v903 = vpop.permute.xlu0 %902
      %904 = vrot.lane.b32.xlu0 %v862, 8
      %v905 = vpop.permute.xlu0 %904
      %906 = vrot.lane.b32.xlu0 %v863, 8
      %v907 = vpop.permute.xlu0 %906
      %908 = vrot.lane.b32.xlu0 %v864, 8
      %v909 = vpop.permute.xlu0 %908
      %910 = vrot.lane.b32.xlu0 %v865, 8
      %v911 = vpop.permute.xlu0 %910
      %912 = vrot.lane.b32.xlu0 %v866, 8
      %v913 = vpop.permute.xlu0 %912
      %914 = vrot.lane.b32.xlu0 %v867, 8
      %v915 = vpop.permute.xlu0 %914
      %916 = vrot.lane.b32.xlu0 %v868, 8
      %v917 = vpop.permute.xlu0 %916
      %918 = vrot.lane.b32.xlu0 %v869, 8
      %v919 = vpop.permute.xlu0 %918
      %920 = vrot.lane.b32.xlu0 %v870, 8
      %v921 = vpop.permute.xlu0 %920
      %922 = vrot.lane.b32.xlu0 %v871, 8
      %v923 = vpop.permute.xlu0 %922
      %924 = vrot.lane.b32.xlu0 %v872, 8
      %v925 = vpop.permute.xlu0 %924
      %926 = vrot.lane.b32.xlu0 %v873, 8
      %v927 = vpop.permute.xlu0 %926
      %vm946 = vcmask 64512
      %v947 = vsel %vm946, %v747, %v893
      %v948 = vsel %vm946, %v748, %v895
      %v949 = vsel %vm946, %v749, %v897
      %v950 = vsel %vm946, %v750, %v899
      %v951 = vsel %vm946, %v751, %v901
      %v952 = vsel %vm946, %v752, %v903
      %v953 = vsel %vm946, %v753, %v905
      %v954 = vsel %vm946, %v754, %v907
      %v955 = vsel %vm946, %v755, %v909
      %v956 = vsel %vm946, %v756, %v911
      %v957 = vsel %vm946, %v757, %v913
      %v958 = vsel %vm946, %v758, %v915
      %v959 = vsel %vm946, %v759, %v917
      %v960 = vsel %vm946, %v760, %v919
      %v961 = vsel %vm946, %v761, %v921
      %v962 = vsel %vm946, %v762, %v923
      %v963 = vsel %vm946, %v763, %v925
      %v964 = vsel %vm946, %v764, %v927
      %v965 = vld [vmem:[%s2] sm:$0xf]
      %v966 = vld [vmem:[%s2 + $0x10] sm:$0xf]
      %v967 = vpack.c.bf16 %v948, %v947
      %v968 = vpack.c.bf16 %v950, %v949
      %v969 = vpack.c.bf16 %v952, %v951
      %v970 = vpack.c.bf16 %v954, %v953
      %v971 = vpack.c.bf16 %v956, %v955
      %v972 = vpack.c.bf16 %v958, %v957
      %v973 = vpack.c.bf16 %v960, %v959
      %v974 = vpack.c.bf16 %v962, %v961
      %v975 = vpack.c.bf16 %v964, %v963
      %v976 = vld [vmem:[%s3] sm:$0x1]
      %v978 = vlaneseq
      %v979 = vshrl.u32 %v978, 7
      %v980 = vsub.s32 0, %v979
      %v981 = vrot.slane %v976, %v980
      %v985 = vunpack.c.l.b16 %v965
      %v986 = vunpack.c.l.b16 %v966
      %v987 = vpack.c.b16 %v986, %v985
      %vm989 = vcmask 130048
      %v991 = vsel %vm989, %v967, 0
      %v994 = vsel %vm989, %v968, 0
      %v997 = vsel %vm989, %v969, 0
      %v1000 = vsel %vm989, %v970, 0
      %v1003 = vsel %vm989, %v971, 0
      %v1006 = vsel %vm989, %v972, 0
      %v1009 = vsel %vm989, %v973, 0
      %v1012 = vsel %vm989, %v974, 0
      %v1015 = vsel %vm989, %v975, 0
      %1017 = vmatprep.subr.bf16.mxu0 0
      %1018 = vmatpush1.bf16.msra.mxu0 %v987
      %1019 = vmatprep.subr.bf16.mxu0 0
      %1020 = vmatpush1.bf16.msra.mxu0 0
      %1021 = vmatprep.subr.bf16.mxu0 0
      %1022 = vmatpush1.bf16.msra.mxu0 0
      %1023 = vmatprep.subr.bf16.mxu0 0
      %1024 = vmatpush1.bf16.msra.mxu0 0
      %1025 = vmatprep.subr.bf16.mxu0 0
      %1026 = vmatpush1.bf16.msra.mxu0 0
      %1027 = vmatprep.subr.bf16.mxu0 0
      %1028 = vmatpush1.bf16.msra.mxu0 0
      %1029 = vmatprep.subr.bf16.mxu0 0
      %1030 = vmatpush1.bf16.msra.mxu0 0
      %1031 = vmatprep.subr.bf16.mxu0 0
      %1032 = vmatpush1.bf16.msra.mxu0 0
      %1033 = vmatprep.subr.bf16.mxu0 0
      %1034 = vmatpush1.bf16.msra.mxu0 0
      %1035 = vmatprep.subr.bf16.mxu0 0
      %1036 = vmatpush1.bf16.msra.mxu0 0
      %1037 = vmatprep.subr.bf16.mxu0 0
      %1038 = vmatpush1.bf16.msra.mxu0 0
      %1039 = vmatprep.subr.bf16.mxu0 0
      %1040 = vmatpush1.bf16.msra.mxu0 0
      %1041 = vmatprep.subr.bf16.mxu0 0
      %1042 = vmatpush1.bf16.msra.mxu0 0
      %1043 = vmatprep.subr.bf16.mxu0 0
      %1044 = vmatpush1.bf16.msra.mxu0 0
      %1045 = vmatprep.subr.bf16.mxu0 0
      %1046 = vmatpush1.bf16.msra.mxu0 0
      %1047 = vmatprep.subr.bf16.mxu0 0
      %1048 = vmatpush1.bf16.msra.mxu0 0
      %1049 = vmatprep.mubr.bf16.mxu0 0
      %1050 = vmatmul.mubr.bf16.gmra.mrb[0].mxu0 %v991
      %v1051 = vpop.f32.mrb[0].mxu0
      %v1052 = vadd.f32 %v981, %v1051
      %v1053 = vpop.f32.mrb[0].mxu0
      %v1054 = vpop.f32.mrb[0].mxu0
      %v1055 = vadd.f32 %v981, %v1054
      %v1056 = vpop.f32.mrb[0].mxu0
      %1057 = vmatprep.mubr.bf16.mxu0 0
      %1058 = vmatmul.mubr.bf16.gmra.mrb[0].mxu0 %v994
      %v1059 = vpop.f32.mrb[0].mxu0
      %v1060 = vadd.f32 %v981, %v1059
      %v1061 = vpop.f32.mrb[0].mxu0
      %v1062 = vpop.f32.mrb[0].mxu0
      %v1063 = vadd.f32 %v981, %v1062
      %v1064 = vpop.f32.mrb[0].mxu0
      %1065 = vmatprep.mubr.bf16.mxu0 0
      %1066 = vmatmul.mubr.bf16.gmra.mrb[0].mxu0 %v997
      %v1067 = vpop.f32.mrb[0].mxu0
      %v1068 = vadd.f32 %v981, %v1067
      %v1069 = vpop.f32.mrb[0].mxu0
      %v1070 = vpop.f32.mrb[0].mxu0
      %v1071 = vadd.f32 %v981, %v1070
      %v1072 = vpop.f32.mrb[0].mxu0
      %1073 = vmatprep.mubr.bf16.mxu0 0
      %1074 = vmatmul.mubr.bf16.gmra.mrb[0].mxu0 %v1000
      %v1075 = vpop.f32.mrb[0].mxu0
      %v1076 = vadd.f32 %v981, %v1075
      %v1077 = vpop.f32.mrb[0].mxu0
      %v1078 = vpop.f32.mrb[0].mxu0
      %v1079 = vadd.f32 %v981, %v1078
      %v1080 = vpop.f32.mrb[0].mxu0
      %1081 = vmatprep.mubr.bf16.mxu0 0
      %1082 = vmatmul.mubr.bf16.gmra.mrb[0].mxu0 %v1003
      %v1083 = vpop.f32.mrb[0].mxu0
      %v1084 = vadd.f32 %v981, %v1083
      %v1085 = vpop.f32.mrb[0].mxu0
      %v1086 = vpop.f32.mrb[0].mxu0
      %v1087 = vadd.f32 %v981, %v1086
      %v1088 = vpop.f32.mrb[0].mxu0
      %1089 = vmatprep.mubr.bf16.mxu0 0
      %1090 = vmatmul.mubr.bf16.gmra.mrb[0].mxu0 %v1006
      %v1091 = vpop.f32.mrb[0].mxu0
      %v1092 = vadd.f32 %v981, %v1091
      %v1093 = vpop.f32.mrb[0].mxu0
      %v1094 = vpop.f32.mrb[0].mxu0
      %v1095 = vadd.f32 %v981, %v1094
      %v1096 = vpop.f32.mrb[0].mxu0
      %1097 = vmatprep.mubr.bf16.mxu0 0
      %1098 = vmatmul.mubr.bf16.gmra.mrb[0].mxu0 %v1009
      %v1099 = vpop.f32.mrb[0].mxu0
      %v1100 = vadd.f32 %v981, %v1099
      %v1101 = vpop.f32.mrb[0].mxu0
      %v1102 = vpop.f32.mrb[0].mxu0
      %v1103 = vadd.f32 %v981, %v1102
      %v1104 = vpop.f32.mrb[0].mxu0
      %1105 = vmatprep.mubr.bf16.mxu0 0
      %1106 = vmatmul.mubr.bf16.gmra.mrb[0].mxu0 %v1012
      %v1107 = vpop.f32.mrb[0].mxu0
      %v1108 = vadd.f32 %v981, %v1107
      %v1109 = vpop.f32.mrb[0].mxu0
      %v1110 = vpop.f32.mrb[0].mxu0
      %v1111 = vadd.f32 %v981, %v1110
      %v1112 = vpop.f32.mrb[0].mxu0
      %1113 = vmatprep.mubr.bf16.mxu0 0
      %1114 = vmatmul.mubr.bf16.gmra.mrb[0].mxu0 %v1015
      %v1115 = vpop.f32.mrb[0].mxu0
      %v1116 = vadd.f32 %v981, %v1115
      %v1117 = vpop.f32.mrb[0].mxu0
      %v1118 = vpop.f32.mrb[0].mxu0
      %v1119 = vadd.f32 %v981, %v1118
      %v1120 = vpop.f32.mrb[0].mxu0
      %1121 = vdwg.mxu0
      %v1122 = vmax.f32 %v1052, 0.0
      %v1123 = vmax.f32 %v1055, 0.0
      %v1124 = vmax.f32 %v1060, 0.0
      %v1125 = vmax.f32 %v1063, 0.0
      %v1126 = vmax.f32 %v1068, 0.0
      %v1127 = vmax.f32 %v1071, 0.0
      %v1128 = vmax.f32 %v1076, 0.0
      %v1129 = vmax.f32 %v1079, 0.0
      %v1130 = vmax.f32 %v1084, 0.0
      %v1131 = vmax.f32 %v1087, 0.0
      %v1132 = vmax.f32 %v1092, 0.0
      %v1133 = vmax.f32 %v1095, 0.0
      %v1134 = vmax.f32 %v1100, 0.0
      %v1135 = vmax.f32 %v1103, 0.0
      %v1136 = vmax.f32 %v1108, 0.0
      %v1137 = vmax.f32 %v1111, 0.0
      %v1138 = vmax.f32 %v1116, 0.0
      %v1139 = vmax.f32 %v1119, 0.0
      %v1140 = vrot.slane %v1122, 7
      %v1141 = vrot.slane %v1123, 7
      %v1142 = vrot.slane %v1124, 7
      %v1143 = vrot.slane %v1125, 7
      %v1144 = vrot.slane %v1126, 7
      %v1145 = vrot.slane %v1127, 7
      %v1146 = vrot.slane %v1128, 7
      %v1147 = vrot.slane %v1129, 7
      %v1148 = vrot.slane %v1130, 7
      %v1149 = vrot.slane %v1131, 7
      %v1150 = vrot.slane %v1132, 7
      %v1151 = vrot.slane %v1133, 7
      %v1152 = vrot.slane %v1134, 7
      %v1153 = vrot.slane %v1135, 7
      %v1154 = vrot.slane %v1136, 7
      %v1155 = vrot.slane %v1137, 7
      %v1156 = vrot.slane %v1138, 7
      %v1157 = vrot.slane %v1139, 7
      %v1158 = vsel %vm801, %v1156, %v1157
      %v1159 = vsel %vm801, %v1155, %v1156
      %v1160 = vsel %vm801, %v1154, %v1155
      %v1161 = vsel %vm801, %v1153, %v1154
      %v1162 = vsel %vm801, %v1152, %v1153
      %v1163 = vsel %vm801, %v1151, %v1152
      %v1164 = vsel %vm801, %v1150, %v1151
      %v1165 = vsel %vm801, %v1149, %v1150
      %v1166 = vsel %vm801, %v1148, %v1149
      %v1167 = vsel %vm801, %v1147, %v1148
      %v1168 = vsel %vm801, %v1146, %v1147
      %v1169 = vsel %vm801, %v1145, %v1146
      %v1170 = vsel %vm801, %v1144, %v1145
      %v1171 = vsel %vm801, %v1143, %v1144
      %v1172 = vsel %vm801, %v1142, %v1143
      %v1173 = vsel %vm801, %v1141, %v1142
      %v1174 = vsel %vm801, %v1140, %v1141
      %v1175 = vsel %vm801, %v1157, %v1140
      %v1176 = vsel %vm838, %v1175, 0.0
      %v1177 = vsel %vm839, %v1174, 0.0
      %v1178 = vsel %vm840, %v1173, 0.0
      %v1179 = vsel %vm841, %v1172, 0.0
      %v1180 = vsel %vm842, %v1171, 0.0
      %v1181 = vsel %vm843, %v1170, 0.0
      %v1182 = vsel %vm844, %v1169, 0.0
      %v1183 = vsel %vm845, %v1168, 0.0
      %v1184 = vsel %vm846, %v1167, 0.0
      %v1185 = vsel %vm847, %v1166, 0.0
      %v1186 = vsel %vm848, %v1165, 0.0
      %v1187 = vsel %vm849, %v1164, 0.0
      %v1188 = vsel %vm850, %v1163, 0.0
      %v1189 = vsel %vm851, %v1162, 0.0
      %v1190 = vsel %vm852, %v1161, 0.0
      %v1191 = vsel %vm853, %v1160, 0.0
      %v1192 = vsel %vm854, %v1159, 0.0
      %v1193 = vsel %vm855, %v1158, 0.0
      %1212 = vrot.lane.b32.xlu0 %v1176, 16
      %v1213 = vpop.permute.xlu0 %1212
      %1214 = vrot.lane.b32.xlu0 %v1177, 16
      %v1215 = vpop.permute.xlu0 %1214
      %1216 = vrot.lane.b32.xlu0 %v1178, 16
      %v1217 = vpop.permute.xlu0 %1216
      %1218 = vrot.lane.b32.xlu0 %v1179, 16
      %v1219 = vpop.permute.xlu0 %1218
      %1220 = vrot.lane.b32.xlu0 %v1180, 16
      %v1221 = vpop.permute.xlu0 %1220
      %1222 = vrot.lane.b32.xlu0 %v1181, 16
      %v1223 = vpop.permute.xlu0 %1222
      %1224 = vrot.lane.b32.xlu0 %v1182, 16
      %v1225 = vpop.permute.xlu0 %1224
      %1226 = vrot.lane.b32.xlu0 %v1183, 16
      %v1227 = vpop.permute.xlu0 %1226
      %1228 = vrot.lane.b32.xlu0 %v1184, 16
      %v1229 = vpop.permute.xlu0 %1228
      %1230 = vrot.lane.b32.xlu0 %v1185, 16
      %v1231 = vpop.permute.xlu0 %1230
      %1232 = vrot.lane.b32.xlu0 %v1186, 16
      %v1233 = vpop.permute.xlu0 %1232
      %1234 = vrot.lane.b32.xlu0 %v1187, 16
      %v1235 = vpop.permute.xlu0 %1234
      %1236 = vrot.lane.b32.xlu0 %v1188, 16
      %v1237 = vpop.permute.xlu0 %1236
      %1238 = vrot.lane.b32.xlu0 %v1189, 16
      %v1239 = vpop.permute.xlu0 %1238
      %1240 = vrot.lane.b32.xlu0 %v1190, 16
      %v1241 = vpop.permute.xlu0 %1240
      %1242 = vrot.lane.b32.xlu0 %v1191, 16
      %v1243 = vpop.permute.xlu0 %1242
      %1244 = vrot.lane.b32.xlu0 %v1192, 16
      %v1245 = vpop.permute.xlu0 %1244
      %1246 = vrot.lane.b32.xlu0 %v1193, 16
      %v1247 = vpop.permute.xlu0 %1246
      %v1266 = vsel %vm989, %v1122, %v1213
      %v1267 = vsel %vm989, %v1123, %v1215
      %v1268 = vsel %vm989, %v1124, %v1217
      %v1269 = vsel %vm989, %v1125, %v1219
      %v1270 = vsel %vm989, %v1126, %v1221
      %v1271 = vsel %vm989, %v1127, %v1223
      %v1272 = vsel %vm989, %v1128, %v1225
      %v1273 = vsel %vm989, %v1129, %v1227
      %v1274 = vsel %vm989, %v1130, %v1229
      %v1275 = vsel %vm989, %v1131, %v1231
      %v1276 = vsel %vm989, %v1132, %v1233
      %v1277 = vsel %vm989, %v1133, %v1235
      %v1278 = vsel %vm989, %v1134, %v1237
      %v1279 = vsel %vm989, %v1135, %v1239
      %v1280 = vsel %vm989, %v1136, %v1241
      %v1281 = vsel %vm989, %v1137, %v1243
      %v1282 = vsel %vm989, %v1138, %v1245
      %v1283 = vsel %vm989, %v1139, %v1247
      %v1284 = vld [vmem:[%s2 + $0x4] sm:$0xf]
      %v1285 = vld [vmem:[%s2 + $0x14] sm:$0xf]
      %v1286 = vld [vmem:[%s2 + $0x24] sm:$0xf]
      %v1287 = vld [vmem:[%s2 + $0x34] sm:$0xf]
      %v1288 = vpack.c.bf16 %v1267, %v1266
      %v1289 = vpack.c.bf16 %v1269, %v1268
      %v1290 = vpack.c.bf16 %v1271, %v1270
      %v1291 = vpack.c.bf16 %v1273, %v1272
      %v1292 = vpack.c.bf16 %v1275, %v1274
      %v1293 = vpack.c.bf16 %v1277, %v1276
      %v1294 = vpack.c.bf16 %v1279, %v1278
      %v1295 = vpack.c.bf16 %v1281, %v1280
      %v1296 = vpack.c.bf16 %v1283, %v1282
      %v1297 = vld [vmem:[%s3 + $0x1] sm:$0x1]
      %v1299 = vlaneseq
      %v1300 = vshrl.u32 %v1299, 7
      %v1301 = vsub.s32 0, %v1300
      %v1302 = vrot.slane %v1297, %v1301
      %v1308 = vunpack.c.l.b16 %v1284
      %v1309 = vunpack.c.l.b16 %v1285
      %v1310 = vunpack.c.l.b16 %v1286
      %v1311 = vunpack.c.l.b16 %v1287
      %v1312 = vpack.c.b16 %v1309, %v1308
      %v1313 = vpack.c.b16 %v1311, %v1310
      %vm1316 = vcmask 261120
      %v1318 = vsel %vm1316, %v1288, 0
      %v1321 = vsel %vm1316, %v1289, 0
      %v1324 = vsel %vm1316, %v1290, 0
      %v1327 = vsel %vm1316, %v1291, 0
      %v1330 = vsel %vm1316, %v1292, 0
      %v1333 = vsel %vm1316, %v1293, 0
      %v1336 = vsel %vm1316, %v1294, 0
      %v1339 = vsel %vm1316, %v1295, 0
      %v1342 = vsel %vm1316, %v1296, 0
      %1344 = vmatprep.subr.bf16.mxu0 0
      %1345 = vmatpush1.bf16.msra.mxu0 %v1312
      %1346 = vmatprep.subr.bf16.mxu0 0
      %1347 = vmatpush1.bf16.msra.mxu0 %v1313
      %1348 = vmatprep.subr.bf16.mxu0 0
      %1349 = vmatpush1.bf16.msra.mxu0 0
      %1350 = vmatprep.subr.bf16.mxu0 0
      %1351 = vmatpush1.bf16.msra.mxu0 0
      %1352 = vmatprep.subr.bf16.mxu0 0
      %1353 = vmatpush1.bf16.msra.mxu0 0
      %1354 = vmatprep.subr.bf16.mxu0 0
      %1355 = vmatpush1.bf16.msra.mxu0 0
      %1356 = vmatprep.subr.bf16.mxu0 0
      %1357 = vmatpush1.bf16.msra.mxu0 0
      %1358 = vmatprep.subr.bf16.mxu0 0
      %1359 = vmatpush1.bf16.msra.mxu0 0
      %1360 = vmatprep.subr.bf16.mxu0 0
      %1361 = vmatpush1.bf16.msra.mxu0 0
      %1362 = vmatprep.subr.bf16.mxu0 0
      %1363 = vmatpush1.bf16.msra.mxu0 0
      %1364 = vmatprep.subr.bf16.mxu0 0
      %1365 = vmatpush1.bf16.msra.mxu0 0
      %1366 = vmatprep.subr.bf16.mxu0 0
      %1367 = vmatpush1.bf16.msra.mxu0 0
      %1368 = vmatprep.subr.bf16.mxu0 0
      %1369 = vmatpush1.bf16.msra.mxu0 0
      %1370 = vmatprep.subr.bf16.mxu0 0
      %1371 = vmatpush1.bf16.msra.mxu0 0
      %1372 = vmatprep.subr.bf16.mxu0 0
      %1373 = vmatpush1.bf16.msra.mxu0 0
      %1374 = vmatprep.subr.bf16.mxu0 0
      %1375 = vmatpush1.bf16.msra.mxu0 0
      %1376 = vmatprep.mubr.bf16.mxu0 0
      %1377 = vmatmul.mubr.bf16.gmra.mrb[0].mxu0 %v1318
      %v1378 = vpop.f32.mrb[0].mxu0
      %v1379 = vadd.f32 %v1302, %v1378
      %v1380 = vpop.f32.mrb[0].mxu0
      %v1381 = vpop.f32.mrb[0].mxu0
      %v1382 = vadd.f32 %v1302, %v1381
      %v1383 = vpop.f32.mrb[0].mxu0
      %1384 = vmatprep.mubr.bf16.mxu0 0
      %1385 = vmatmul.mubr.bf16.gmra.mrb[0].mxu0 %v1321
      %v1386 = vpop.f32.mrb[0].mxu0
      %v1387 = vadd.f32 %v1302, %v1386
      %v1388 = vpop.f32.mrb[0].mxu0
      %v1389 = vpop.f32.mrb[0].mxu0
      %v1390 = vadd.f32 %v1302, %v1389
      %v1391 = vpop.f32.mrb[0].mxu0
      %1392 = vmatprep.mubr.bf16.mxu0 0
      %1393 = vmatmul.mubr.bf16.gmra.mrb[0].mxu0 %v1324
      %v1394 = vpop.f32.mrb[0].mxu0
      %v1395 = vadd.f32 %v1302, %v1394
      %v1396 = vpop.f32.mrb[0].mxu0
      %v1397 = vpop.f32.mrb[0].mxu0
      %v1398 = vadd.f32 %v1302, %v1397
      %v1399 = vpop.f32.mrb[0].mxu0
      %1400 = vmatprep.mubr.bf16.mxu0 0
      %1401 = vmatmul.mubr.bf16.gmra.mrb[0].mxu0 %v1327
      %v1402 = vpop.f32.mrb[0].mxu0
      %v1403 = vadd.f32 %v1302, %v1402
      %v1404 = vpop.f32.mrb[0].mxu0
      %v1405 = vpop.f32.mrb[0].mxu0
      %v1406 = vadd.f32 %v1302, %v1405
      %v1407 = vpop.f32.mrb[0].mxu0
      %1408 = vmatprep.mubr.bf16.mxu0 0
      %1409 = vmatmul.mubr.bf16.gmra.mrb[0].mxu0 %v1330
      %v1410 = vpop.f32.mrb[0].mxu0
      %v1411 = vadd.f32 %v1302, %v1410
      %v1412 = vpop.f32.mrb[0].mxu0
      %v1413 = vpop.f32.mrb[0].mxu0
      %v1414 = vadd.f32 %v1302, %v1413
      %v1415 = vpop.f32.mrb[0].mxu0
      %1416 = vmatprep.mubr.bf16.mxu0 0
      %1417 = vmatmul.mubr.bf16.gmra.mrb[0].mxu0 %v1333
      %v1418 = vpop.f32.mrb[0].mxu0
      %v1419 = vadd.f32 %v1302, %v1418
      %v1420 = vpop.f32.mrb[0].mxu0
      %v1421 = vpop.f32.mrb[0].mxu0
      %v1422 = vadd.f32 %v1302, %v1421
      %v1423 = vpop.f32.mrb[0].mxu0
      %1424 = vmatprep.mubr.bf16.mxu0 0
      %1425 = vmatmul.mubr.bf16.gmra.mrb[0].mxu0 %v1336
      %v1426 = vpop.f32.mrb[0].mxu0
      %v1427 = vadd.f32 %v1302, %v1426
      %v1428 = vpop.f32.mrb[0].mxu0
      %v1429 = vpop.f32.mrb[0].mxu0
      %v1430 = vadd.f32 %v1302, %v1429
      %v1431 = vpop.f32.mrb[0].mxu0
      %1432 = vmatprep.mubr.bf16.mxu0 0
      %1433 = vmatmul.mubr.bf16.gmra.mrb[0].mxu0 %v1339
      %v1434 = vpop.f32.mrb[0].mxu0
      %v1435 = vadd.f32 %v1302, %v1434
      %v1436 = vpop.f32.mrb[0].mxu0
      %v1437 = vpop.f32.mrb[0].mxu0
      %v1438 = vadd.f32 %v1302, %v1437
      %v1439 = vpop.f32.mrb[0].mxu0
      %1440 = vmatprep.mubr.bf16.mxu0 0
      %1441 = vmatmul.mubr.bf16.gmra.mrb[0].mxu0 %v1342
      %v1442 = vpop.f32.mrb[0].mxu0
      %v1443 = vadd.f32 %v1302, %v1442
      %v1444 = vpop.f32.mrb[0].mxu0
      %v1445 = vpop.f32.mrb[0].mxu0
      %v1446 = vadd.f32 %v1302, %v1445
      %v1447 = vpop.f32.mrb[0].mxu0
      %1448 = vdwg.mxu0
      %1467 = vrot.lane.b32.xlu0 %v1052, 112
      %v1468 = vpop.permute.xlu0 %1467
      %1469 = vrot.lane.b32.xlu0 %v1055, 112
      %v1470 = vpop.permute.xlu0 %1469
      %1471 = vrot.lane.b32.xlu0 %v1060, 112
      %v1472 = vpop.permute.xlu0 %1471
      %1473 = vrot.lane.b32.xlu0 %v1063, 112
      %v1474 = vpop.permute.xlu0 %1473
      %1475 = vrot.lane.b32.xlu0 %v1068, 112
      %v1476 = vpop.permute.xlu0 %1475
      %1477 = vrot.lane.b32.xlu0 %v1071, 112
      %v1478 = vpop.permute.xlu0 %1477
      %1479 = vrot.lane.b32.xlu0 %v1076, 112
      %v1480 = vpop.permute.xlu0 %1479
      %1481 = vrot.lane.b32.xlu0 %v1079, 112
      %v1482 = vpop.permute.xlu0 %1481
      %1483 = vrot.lane.b32.xlu0 %v1084, 112
      %v1484 = vpop.permute.xlu0 %1483
      %1485 = vrot.lane.b32.xlu0 %v1087, 112
      %v1486 = vpop.permute.xlu0 %1485
      %1487 = vrot.lane.b32.xlu0 %v1092, 112
      %v1488 = vpop.permute.xlu0 %1487
      %1489 = vrot.lane.b32.xlu0 %v1095, 112
      %v1490 = vpop.permute.xlu0 %1489
      %1491 = vrot.lane.b32.xlu0 %v1100, 112
      %v1492 = vpop.permute.xlu0 %1491
      %1493 = vrot.lane.b32.xlu0 %v1103, 112
      %v1494 = vpop.permute.xlu0 %1493
      %1495 = vrot.lane.b32.xlu0 %v1108, 112
      %v1496 = vpop.permute.xlu0 %1495
      %1497 = vrot.lane.b32.xlu0 %v1111, 112
      %v1498 = vpop.permute.xlu0 %1497
      %1499 = vrot.lane.b32.xlu0 %v1116, 112
      %v1500 = vpop.permute.xlu0 %1499
      %1501 = vrot.lane.b32.xlu0 %v1119, 112
      %v1502 = vpop.permute.xlu0 %1501
      %v1521 = vadd.f32 %v1379, %v1468
      %v1522 = vadd.f32 %v1382, %v1470
      %v1523 = vadd.f32 %v1387, %v1472
      %v1524 = vadd.f32 %v1390, %v1474
      %v1525 = vadd.f32 %v1395, %v1476
      %v1526 = vadd.f32 %v1398, %v1478
      %v1527 = vadd.f32 %v1403, %v1480
      %v1528 = vadd.f32 %v1406, %v1482
      %v1529 = vadd.f32 %v1411, %v1484
      %v1530 = vadd.f32 %v1414, %v1486
      %v1531 = vadd.f32 %v1419, %v1488
      %v1532 = vadd.f32 %v1422, %v1490
      %v1533 = vadd.f32 %v1427, %v1492
      %v1534 = vadd.f32 %v1430, %v1494
      %v1535 = vadd.f32 %v1435, %v1496
      %v1536 = vadd.f32 %v1438, %v1498
      %v1537 = vadd.f32 %v1443, %v1500
      %v1538 = vadd.f32 %v1446, %v1502
      %v1539 = vmax.f32 %v1521, 0.0
      %v1540 = vmax.f32 %v1522, 0.0
      %v1541 = vmax.f32 %v1523, 0.0
      %v1542 = vmax.f32 %v1524, 0.0
      %v1543 = vmax.f32 %v1525, 0.0
      %v1544 = vmax.f32 %v1526, 0.0
      %v1545 = vmax.f32 %v1527, 0.0
      %v1546 = vmax.f32 %v1528, 0.0
      %v1547 = vmax.f32 %v1529, 0.0
      %v1548 = vmax.f32 %v1530, 0.0
      %v1549 = vmax.f32 %v1531, 0.0
      %v1550 = vmax.f32 %v1532, 0.0
      %v1551 = vmax.f32 %v1533, 0.0
      %v1552 = vmax.f32 %v1534, 0.0
      %v1553 = vmax.f32 %v1535, 0.0
      %v1554 = vmax.f32 %v1536, 0.0
      %v1555 = vmax.f32 %v1537, 0.0
      %v1556 = vmax.f32 %v1538, 0.0
      %vm1557 = vcmp.ge.s32.totalorder %v513, 2
      %vm1558 = vcmp.ge.s32.totalorder %v514, 2
      %vm1559 = vcmp.ge.s32.totalorder %v515, 2
      %vm1560 = vcmp.ge.s32.totalorder %v516, 2
      %vm1561 = vcmp.ge.s32.totalorder %v517, 2
      %vm1562 = vcmp.ge.s32.totalorder %v518, 2
      %vm1563 = vcmp.ge.s32.totalorder %v519, 2
      %vm1564 = vcmp.ge.s32.totalorder %v520, 2
      %vm1565 = vcmp.ge.s32.totalorder %v521, 2
      %vm1566 = vcmp.ge.s32.totalorder %v522, 2
      %vm1567 = vcmp.ge.s32.totalorder %v523, 2
      %vm1568 = vcmp.ge.s32.totalorder %v524, 2
      %vm1569 = vcmp.ge.s32.totalorder %v525, 2
      %vm1570 = vcmp.ge.s32.totalorder %v526, 2
      %vm1571 = vcmp.ge.s32.totalorder %v527, 2
      %vm1572 = vcmp.ge.s32.totalorder %v528, 2
      %vm1573 = vcmp.ge.s32.totalorder %v529, 2
      %vm1574 = vcmp.ge.s32.totalorder %v530, 2
      %v1575 = vrot.slane %v1539, 6
      %v1576 = vrot.slane %v1540, 6
      %v1577 = vrot.slane %v1541, 6
      %v1578 = vrot.slane %v1542, 6
      %v1579 = vrot.slane %v1543, 6
      %v1580 = vrot.slane %v1544, 6
      %v1581 = vrot.slane %v1545, 6
      %v1582 = vrot.slane %v1546, 6
      %v1583 = vrot.slane %v1547, 6
      %v1584 = vrot.slane %v1548, 6
      %v1585 = vrot.slane %v1549, 6
      %v1586 = vrot.slane %v1550, 6
      %v1587 = vrot.slane %v1551, 6
      %v1588 = vrot.slane %v1552, 6
      %v1589 = vrot.slane %v1553, 6
      %v1590 = vrot.slane %v1554, 6
      %v1591 = vrot.slane %v1555, 6
      %v1592 = vrot.slane %v1556, 6
      %vm1593 = vcmp.lt.s32.totalorder %v225, 2
      %v1594 = vsel %vm1593, %v1591, %v1592
      %v1595 = vsel %vm1593, %v1590, %v1591
      %v1596 = vsel %vm1593, %v1589, %v1590
      %v1597 = vsel %vm1593, %v1588, %v1589
      %v1598 = vsel %vm1593, %v1587, %v1588
      %v1599 = vsel %vm1593, %v1586, %v1587
      %v1600 = vsel %vm1593, %v1585, %v1586
      %v1601 = vsel %vm1593, %v1584, %v1585
      %v1602 = vsel %vm1593, %v1583, %v1584
      %v1603 = vsel %vm1593, %v1582, %v1583
      %v1604 = vsel %vm1593, %v1581, %v1582
      %v1605 = vsel %vm1593, %v1580, %v1581
      %v1606 = vsel %vm1593, %v1579, %v1580
      %v1607 = vsel %vm1593, %v1578, %v1579
      %v1608 = vsel %vm1593, %v1577, %v1578
      %v1609 = vsel %vm1593, %v1576, %v1577
      %v1610 = vsel %vm1593, %v1575, %v1576
      %v1611 = vsel %vm1593, %v1592, %v1575
      %v1612 = vsel %vm1557, 1, 0
      %v1613 = vsel %vm1558, 1, 0
      %v1614 = vsel %vm1559, 1, 0
      %v1615 = vsel %vm1560, 1, 0
      %v1616 = vsel %vm1561, 1, 0
      %v1617 = vsel %vm1562, 1, 0
      %v1618 = vsel %vm1563, 1, 0
      %v1619 = vsel %vm1564, 1, 0
      %v1620 = vsel %vm1565, 1, 0
      %v1621 = vsel %vm1566, 1, 0
      %v1622 = vsel %vm1567, 1, 0
      %v1623 = vsel %vm1568, 1, 0
      %v1624 = vsel %vm1569, 1, 0
      %v1625 = vsel %vm1570, 1, 0
      %v1626 = vsel %vm1571, 1, 0
      %v1627 = vsel %vm1572, 1, 0
      %v1628 = vsel %vm1573, 1, 0
      %v1629 = vsel %vm1574, 1, 0
      %vm1630 = vcmp.eq.s32.totalorder %v1612, 1
      %vm1631 = vcmp.eq.s32.totalorder %v1613, 1
      %vm1632 = vcmp.eq.s32.totalorder %v1614, 1
      %vm1633 = vcmp.eq.s32.totalorder %v1615, 1
      %vm1634 = vcmp.eq.s32.totalorder %v1616, 1
      %vm1635 = vcmp.eq.s32.totalorder %v1617, 1
      %vm1636 = vcmp.eq.s32.totalorder %v1618, 1
      %vm1637 = vcmp.eq.s32.totalorder %v1619, 1
      %vm1638 = vcmp.eq.s32.totalorder %v1620, 1
      %vm1639 = vcmp.eq.s32.totalorder %v1621, 1
      %vm1640 = vcmp.eq.s32.totalorder %v1622, 1
      %vm1641 = vcmp.eq.s32.totalorder %v1623, 1
      %vm1642 = vcmp.eq.s32.totalorder %v1624, 1
      %vm1643 = vcmp.eq.s32.totalorder %v1625, 1
      %vm1644 = vcmp.eq.s32.totalorder %v1626, 1
      %vm1645 = vcmp.eq.s32.totalorder %v1627, 1
      %vm1646 = vcmp.eq.s32.totalorder %v1628, 1
      %vm1647 = vcmp.eq.s32.totalorder %v1629, 1
      %v1648 = vsel %vm1630, %v1611, 0.0
      %v1649 = vsel %vm1631, %v1610, 0.0
      %v1650 = vsel %vm1632, %v1609, 0.0
      %v1651 = vsel %vm1633, %v1608, 0.0
      %v1652 = vsel %vm1634, %v1607, 0.0
      %v1653 = vsel %vm1635, %v1606, 0.0
      %v1654 = vsel %vm1636, %v1605, 0.0
      %v1655 = vsel %vm1637, %v1604, 0.0
      %v1656 = vsel %vm1638, %v1603, 0.0
      %v1657 = vsel %vm1639, %v1602, 0.0
      %v1658 = vsel %vm1640, %v1601, 0.0
      %v1659 = vsel %vm1641, %v1600, 0.0
      %v1660 = vsel %vm1642, %v1599, 0.0
      %v1661 = vsel %vm1643, %v1598, 0.0
      %v1662 = vsel %vm1644, %v1597, 0.0
      %v1663 = vsel %vm1645, %v1596, 0.0
      %v1664 = vsel %vm1646, %v1595, 0.0
      %v1665 = vsel %vm1647, %v1594, 0.0
      %1684 = vrot.lane.b32.xlu0 %v1648, 16
      %v1685 = vpop.permute.xlu0 %1684
      %1686 = vrot.lane.b32.xlu0 %v1649, 16
      %v1687 = vpop.permute.xlu0 %1686
      %1688 = vrot.lane.b32.xlu0 %v1650, 16
      %v1689 = vpop.permute.xlu0 %1688
      %1690 = vrot.lane.b32.xlu0 %v1651, 16
      %v1691 = vpop.permute.xlu0 %1690
      %1692 = vrot.lane.b32.xlu0 %v1652, 16
      %v1693 = vpop.permute.xlu0 %1692
      %1694 = vrot.lane.b32.xlu0 %v1653, 16
      %v1695 = vpop.permute.xlu0 %1694
      %1696 = vrot.lane.b32.xlu0 %v1654, 16
      %v1697 = vpop.permute.xlu0 %1696
      %1698 = vrot.lane.b32.xlu0 %v1655, 16
      %v1699 = vpop.permute.xlu0 %1698
      %1700 = vrot.lane.b32.xlu0 %v1656, 16
      %v1701 = vpop.permute.xlu0 %1700
      %1702 = vrot.lane.b32.xlu0 %v1657, 16
      %v1703 = vpop.permute.xlu0 %1702
      %1704 = vrot.lane.b32.xlu0 %v1658, 16
      %v1705 = vpop.permute.xlu0 %1704
      %1706 = vrot.lane.b32.xlu0 %v1659, 16
      %v1707 = vpop.permute.xlu0 %1706
      %1708 = vrot.lane.b32.xlu0 %v1660, 16
      %v1709 = vpop.permute.xlu0 %1708
      %1710 = vrot.lane.b32.xlu0 %v1661, 16
      %v1711 = vpop.permute.xlu0 %1710
      %1712 = vrot.lane.b32.xlu0 %v1662, 16
      %v1713 = vpop.permute.xlu0 %1712
      %1714 = vrot.lane.b32.xlu0 %v1663, 16
      %v1715 = vpop.permute.xlu0 %1714
      %1716 = vrot.lane.b32.xlu0 %v1664, 16
      %v1717 = vpop.permute.xlu0 %1716
      %1718 = vrot.lane.b32.xlu0 %v1665, 16
      %v1719 = vpop.permute.xlu0 %1718
      %v1738 = vsel %vm989, %v1539, %v1685
      %v1739 = vsel %vm989, %v1540, %v1687
      %v1740 = vsel %vm989, %v1541, %v1689
      %v1741 = vsel %vm989, %v1542, %v1691
      %v1742 = vsel %vm989, %v1543, %v1693
      %v1743 = vsel %vm989, %v1544, %v1695
      %v1744 = vsel %vm989, %v1545, %v1697
      %v1745 = vsel %vm989, %v1546, %v1699
      %v1746 = vsel %vm989, %v1547, %v1701
      %v1747 = vsel %vm989, %v1548, %v1703
      %v1748 = vsel %vm989, %v1549, %v1705
      %v1749 = vsel %vm989, %v1550, %v1707
      %v1750 = vsel %vm989, %v1551, %v1709
      %v1751 = vsel %vm989, %v1552, %v1711
      %v1752 = vsel %vm989, %v1553, %v1713
      %v1753 = vsel %vm989, %v1554, %v1715
      %v1754 = vsel %vm989, %v1555, %v1717
      %v1755 = vsel %vm989, %v1556, %v1719
      %v1756 = vld [vmem:[%s2 + $0x8] sm:$0xf]
      %v1757 = vld [vmem:[%s2 + $0x18] sm:$0xf]
      %v1758 = vld [vmem:[%s2 + $0x28] sm:$0xf]
      %v1759 = vld [vmem:[%s2 + $0x38] sm:$0xf]
      %v1760 = vpack.c.bf16 %v1739, %v1738
      %v1761 = vpack.c.bf16 %v1741, %v1740
      %v1762 = vpack.c.bf16 %v1743, %v1742
      %v1763 = vpack.c.bf16 %v1745, %v1744
      %v1764 = vpack.c.bf16 %v1747, %v1746
      %v1765 = vpack.c.bf16 %v1749, %v1748
      %v1766 = vpack.c.bf16 %v1751, %v1750
      %v1767 = vpack.c.bf16 %v1753, %v1752
      %v1768 = vpack.c.bf16 %v1755, %v1754
      %v1769 = vld [vmem:[%s3 + $0x2] sm:$0x1]
      %v1771 = vlaneseq
      %v1772 = vshrl.u32 %v1771, 7
      %v1773 = vsub.s32 0, %v1772
      %v1774 = vrot.slane %v1769, %v1773
      %v1780 = vunpack.c.l.b16 %v1756
      %v1781 = vunpack.c.l.b16 %v1757
      %v1782 = vunpack.c.l.b16 %v1758
      %v1783 = vunpack.c.l.b16 %v1759
      %v1784 = vpack.c.b16 %v1781, %v1780
      %v1785 = vpack.c.b16 %v1783, %v1782
      %v1789 = vsel %vm1316, %v1760, 0
      %v1792 = vsel %vm1316, %v1761, 0
      %v1795 = vsel %vm1316, %v1762, 0
      %v1798 = vsel %vm1316, %v1763, 0
      %v1801 = vsel %vm1316, %v1764, 0
      %v1804 = vsel %vm1316, %v1765, 0
      %v1807 = vsel %vm1316, %v1766, 0
      %v1810 = vsel %vm1316, %v1767, 0
      %v1813 = vsel %vm1316, %v1768, 0
      %1815 = vmatprep.subr.bf16.mxu0 0
      %1816 = vmatpush1.bf16.msra.mxu0 %v1784
      %1817 = vmatprep.subr.bf16.mxu0 0
      %1818 = vmatpush1.bf16.msra.mxu0 %v1785
      %1819 = vmatprep.subr.bf16.mxu0 0
      %1820 = vmatpush1.bf16.msra.mxu0 0
      %1821 = vmatprep.subr.bf16.mxu0 0
      %1822 = vmatpush1.bf16.msra.mxu0 0
      %1823 = vmatprep.subr.bf16.mxu0 0
      %1824 = vmatpush1.bf16.msra.mxu0 0
      %1825 = vmatprep.subr.bf16.mxu0 0
      %1826 = vmatpush1.bf16.msra.mxu0 0
      %1827 = vmatprep.subr.bf16.mxu0 0
      %1828 = vmatpush1.bf16.msra.mxu0 0
      %1829 = vmatprep.subr.bf16.mxu0 0
      %1830 = vmatpush1.bf16.msra.mxu0 0
      %1831 = vmatprep.subr.bf16.mxu0 0
      %1832 = vmatpush1.bf16.msra.mxu0 0
      %1833 = vmatprep.subr.bf16.mxu0 0
      %1834 = vmatpush1.bf16.msra.mxu0 0
      %1835 = vmatprep.subr.bf16.mxu0 0
      %1836 = vmatpush1.bf16.msra.mxu0 0
      %1837 = vmatprep.subr.bf16.mxu0 0
      %1838 = vmatpush1.bf16.msra.mxu0 0
      %1839 = vmatprep.subr.bf16.mxu0 0
      %1840 = vmatpush1.bf16.msra.mxu0 0
      %1841 = vmatprep.subr.bf16.mxu0 0
      %1842 = vmatpush1.bf16.msra.mxu0 0
      %1843 = vmatprep.subr.bf16.mxu0 0
      %1844 = vmatpush1.bf16.msra.mxu0 0
      %1845 = vmatprep.subr.bf16.mxu0 0
      %1846 = vmatpush1.bf16.msra.mxu0 0
      %1847 = vmatprep.mubr.bf16.mxu0 0
      %1848 = vmatmul.mubr.bf16.gmra.mrb[0].mxu0 %v1789
      %v1849 = vpop.f32.mrb[0].mxu0
      %v1850 = vadd.f32 %v1774, %v1849
      %v1851 = vpop.f32.mrb[0].mxu0
      %v1852 = vpop.f32.mrb[0].mxu0
      %v1853 = vadd.f32 %v1774, %v1852
      %v1854 = vpop.f32.mrb[0].mxu0
      %1855 = vmatprep.mubr.bf16.mxu0 0
      %1856 = vmatmul.mubr.bf16.gmra.mrb[0].mxu0 %v1792
      %v1857 = vpop.f32.mrb[0].mxu0
      %v1858 = vadd.f32 %v1774, %v1857
      %v1859 = vpop.f32.mrb[0].mxu0
      %v1860 = vpop.f32.mrb[0].mxu0
      %v1861 = vadd.f32 %v1774, %v1860
      %v1862 = vpop.f32.mrb[0].mxu0
      %1863 = vmatprep.mubr.bf16.mxu0 0
      %1864 = vmatmul.mubr.bf16.gmra.mrb[0].mxu0 %v1795
      %v1865 = vpop.f32.mrb[0].mxu0
      %v1866 = vadd.f32 %v1774, %v1865
      %v1867 = vpop.f32.mrb[0].mxu0
      %v1868 = vpop.f32.mrb[0].mxu0
      %v1869 = vadd.f32 %v1774, %v1868
      %v1870 = vpop.f32.mrb[0].mxu0
      %1871 = vmatprep.mubr.bf16.mxu0 0
      %1872 = vmatmul.mubr.bf16.gmra.mrb[0].mxu0 %v1798
      %v1873 = vpop.f32.mrb[0].mxu0
      %v1874 = vadd.f32 %v1774, %v1873
      %v1875 = vpop.f32.mrb[0].mxu0
      %v1876 = vpop.f32.mrb[0].mxu0
      %v1877 = vadd.f32 %v1774, %v1876
      %v1878 = vpop.f32.mrb[0].mxu0
      %1879 = vmatprep.mubr.bf16.mxu0 0
      %1880 = vmatmul.mubr.bf16.gmra.mrb[0].mxu0 %v1801
      %v1881 = vpop.f32.mrb[0].mxu0
      %v1882 = vadd.f32 %v1774, %v1881
      %v1883 = vpop.f32.mrb[0].mxu0
      %v1884 = vpop.f32.mrb[0].mxu0
      %v1885 = vadd.f32 %v1774, %v1884
      %v1886 = vpop.f32.mrb[0].mxu0
      %1887 = vmatprep.mubr.bf16.mxu0 0
      %1888 = vmatmul.mubr.bf16.gmra.mrb[0].mxu0 %v1804
      %v1889 = vpop.f32.mrb[0].mxu0
      %v1890 = vadd.f32 %v1774, %v1889
      %v1891 = vpop.f32.mrb[0].mxu0
      %v1892 = vpop.f32.mrb[0].mxu0
      %v1893 = vadd.f32 %v1774, %v1892
      %v1894 = vpop.f32.mrb[0].mxu0
      %1895 = vmatprep.mubr.bf16.mxu0 0
      %1896 = vmatmul.mubr.bf16.gmra.mrb[0].mxu0 %v1807
      %v1897 = vpop.f32.mrb[0].mxu0
      %v1898 = vadd.f32 %v1774, %v1897
      %v1899 = vpop.f32.mrb[0].mxu0
      %v1900 = vpop.f32.mrb[0].mxu0
      %v1901 = vadd.f32 %v1774, %v1900
      %v1902 = vpop.f32.mrb[0].mxu0
      %1903 = vmatprep.mubr.bf16.mxu0 0
      %1904 = vmatmul.mubr.bf16.gmra.mrb[0].mxu0 %v1810
      %v1905 = vpop.f32.mrb[0].mxu0
      %v1906 = vadd.f32 %v1774, %v1905
      %v1907 = vpop.f32.mrb[0].mxu0
      %v1908 = vpop.f32.mrb[0].mxu0
      %v1909 = vadd.f32 %v1774, %v1908
      %v1910 = vpop.f32.mrb[0].mxu0
      %1911 = vmatprep.mubr.bf16.mxu0 0
      %1912 = vmatmul.mubr.bf16.gmra.mrb[0].mxu0 %v1813
      %v1913 = vpop.f32.mrb[0].mxu0
      %v1914 = vadd.f32 %v1774, %v1913
      %v1915 = vpop.f32.mrb[0].mxu0
      %v1916 = vpop.f32.mrb[0].mxu0
      %v1917 = vadd.f32 %v1774, %v1916
      %v1918 = vpop.f32.mrb[0].mxu0
      %1919 = vdwg.mxu0
      %v1920 = vmax.f32 %v1850, 0.0
      %v1921 = vmax.f32 %v1853, 0.0
      %v1922 = vmax.f32 %v1858, 0.0
      %v1923 = vmax.f32 %v1861, 0.0
      %v1924 = vmax.f32 %v1866, 0.0
      %v1925 = vmax.f32 %v1869, 0.0
      %v1926 = vmax.f32 %v1874, 0.0
      %v1927 = vmax.f32 %v1877, 0.0
      %v1928 = vmax.f32 %v1882, 0.0
      %v1929 = vmax.f32 %v1885, 0.0
      %v1930 = vmax.f32 %v1890, 0.0
      %v1931 = vmax.f32 %v1893, 0.0
      %v1932 = vmax.f32 %v1898, 0.0
      %v1933 = vmax.f32 %v1901, 0.0
      %v1934 = vmax.f32 %v1906, 0.0
      %v1935 = vmax.f32 %v1909, 0.0
      %v1936 = vmax.f32 %v1914, 0.0
      %v1937 = vmax.f32 %v1917, 0.0
      %v1938 = vrot.slane %v1920, 6
      %v1939 = vrot.slane %v1921, 6
      %v1940 = vrot.slane %v1922, 6
      %v1941 = vrot.slane %v1923, 6
      %v1942 = vrot.slane %v1924, 6
      %v1943 = vrot.slane %v1925, 6
      %v1944 = vrot.slane %v1926, 6
      %v1945 = vrot.slane %v1927, 6
      %v1946 = vrot.slane %v1928, 6
      %v1947 = vrot.slane %v1929, 6
      %v1948 = vrot.slane %v1930, 6
      %v1949 = vrot.slane %v1931, 6
      %v1950 = vrot.slane %v1932, 6
      %v1951 = vrot.slane %v1933, 6
      %v1952 = vrot.slane %v1934, 6
      %v1953 = vrot.slane %v1935, 6
      %v1954 = vrot.slane %v1936, 6
      %v1955 = vrot.slane %v1937, 6
      %v1956 = vsel %vm1593, %v1954, %v1955
      %v1957 = vsel %vm1593, %v1953, %v1954
      %v1958 = vsel %vm1593, %v1952, %v1953
      %v1959 = vsel %vm1593, %v1951, %v1952
      %v1960 = vsel %vm1593, %v1950, %v1951
      %v1961 = vsel %vm1593, %v1949, %v1950
      %v1962 = vsel %vm1593, %v1948, %v1949
      %v1963 = vsel %vm1593, %v1947, %v1948
      %v1964 = vsel %vm1593, %v1946, %v1947
      %v1965 = vsel %vm1593, %v1945, %v1946
      %v1966 = vsel %vm1593, %v1944, %v1945
      %v1967 = vsel %vm1593, %v1943, %v1944
      %v1968 = vsel %vm1593, %v1942, %v1943
      %v1969 = vsel %vm1593, %v1941, %v1942
      %v1970 = vsel %vm1593, %v1940, %v1941
      %v1971 = vsel %vm1593, %v1939, %v1940
      %v1972 = vsel %vm1593, %v1938, %v1939
      %v1973 = vsel %vm1593, %v1955, %v1938
      %v1974 = vsel %vm1630, %v1973, 0.0
      %v1975 = vsel %vm1631, %v1972, 0.0
      %v1976 = vsel %vm1632, %v1971, 0.0
      %v1977 = vsel %vm1633, %v1970, 0.0
      %v1978 = vsel %vm1634, %v1969, 0.0
      %v1979 = vsel %vm1635, %v1968, 0.0
      %v1980 = vsel %vm1636, %v1967, 0.0
      %v1981 = vsel %vm1637, %v1966, 0.0
      %v1982 = vsel %vm1638, %v1965, 0.0
      %v1983 = vsel %vm1639, %v1964, 0.0
      %v1984 = vsel %vm1640, %v1963, 0.0
      %v1985 = vsel %vm1641, %v1962, 0.0
      %v1986 = vsel %vm1642, %v1961, 0.0
      %v1987 = vsel %vm1643, %v1960, 0.0
      %v1988 = vsel %vm1644, %v1959, 0.0
      %v1989 = vsel %vm1645, %v1958, 0.0
      %v1990 = vsel %vm1646, %v1957, 0.0
      %v1991 = vsel %vm1647, %v1956, 0.0
      %2010 = vrot.lane.b32.xlu0 %v1974, 16
      %v2011 = vpop.permute.xlu0 %2010
      %2012 = vrot.lane.b32.xlu0 %v1975, 16
      %v2013 = vpop.permute.xlu0 %2012
      %2014 = vrot.lane.b32.xlu0 %v1976, 16
      %v2015 = vpop.permute.xlu0 %2014
      %2016 = vrot.lane.b32.xlu0 %v1977, 16
      %v2017 = vpop.permute.xlu0 %2016
      %2018 = vrot.lane.b32.xlu0 %v1978, 16
      %v2019 = vpop.permute.xlu0 %2018
      %2020 = vrot.lane.b32.xlu0 %v1979, 16
      %v2021 = vpop.permute.xlu0 %2020
      %2022 = vrot.lane.b32.xlu0 %v1980, 16
      %v2023 = vpop.permute.xlu0 %2022
      %2024 = vrot.lane.b32.xlu0 %v1981, 16
      %v2025 = vpop.permute.xlu0 %2024
      %2026 = vrot.lane.b32.xlu0 %v1982, 16
      %v2027 = vpop.permute.xlu0 %2026
      %2028 = vrot.lane.b32.xlu0 %v1983, 16
      %v2029 = vpop.permute.xlu0 %2028
      %2030 = vrot.lane.b32.xlu0 %v1984, 16
      %v2031 = vpop.permute.xlu0 %2030
      %2032 = vrot.lane.b32.xlu0 %v1985, 16
      %v2033 = vpop.permute.xlu0 %2032
      %2034 = vrot.lane.b32.xlu0 %v1986, 16
      %v2035 = vpop.permute.xlu0 %2034
      %2036 = vrot.lane.b32.xlu0 %v1987, 16
      %v2037 = vpop.permute.xlu0 %2036
      %2038 = vrot.lane.b32.xlu0 %v1988, 16
      %v2039 = vpop.permute.xlu0 %2038
      %2040 = vrot.lane.b32.xlu0 %v1989, 16
      %v2041 = vpop.permute.xlu0 %2040
      %2042 = vrot.lane.b32.xlu0 %v1990, 16
      %v2043 = vpop.permute.xlu0 %2042
      %2044 = vrot.lane.b32.xlu0 %v1991, 16
      %v2045 = vpop.permute.xlu0 %2044
      %v2064 = vsel %vm989, %v1920, %v2011
      %v2065 = vsel %vm989, %v1921, %v2013
      %v2066 = vsel %vm989, %v1922, %v2015
      %v2067 = vsel %vm989, %v1923, %v2017
      %v2068 = vsel %vm989, %v1924, %v2019
      %v2069 = vsel %vm989, %v1925, %v2021
      %v2070 = vsel %vm989, %v1926, %v2023
      %v2071 = vsel %vm989, %v1927, %v2025
      %v2072 = vsel %vm989, %v1928, %v2027
      %v2073 = vsel %vm989, %v1929, %v2029
      %v2074 = vsel %vm989, %v1930, %v2031
      %v2075 = vsel %vm989, %v1931, %v2033
      %v2076 = vsel %vm989, %v1932, %v2035
      %v2077 = vsel %vm989, %v1933, %v2037
      %v2078 = vsel %vm989, %v1934, %v2039
      %v2079 = vsel %vm989, %v1935, %v2041
      %v2080 = vsel %vm989, %v1936, %v2043
      %v2081 = vsel %vm989, %v1937, %v2045
      %v2082 = vld [vmem:[%s2 + $0xc] sm:$0xf]
      %v2083 = vld [vmem:[%s2 + $0x1c] sm:$0xf]
      %v2084 = vld [vmem:[%s2 + $0x2c] sm:$0xf]
      %v2085 = vld [vmem:[%s2 + $0x3c] sm:$0xf]
      %v2086 = vpack.c.bf16 %v2065, %v2064
      %v2087 = vpack.c.bf16 %v2067, %v2066
      %v2088 = vpack.c.bf16 %v2069, %v2068
      %v2089 = vpack.c.bf16 %v2071, %v2070
      %v2090 = vpack.c.bf16 %v2073, %v2072
      %v2091 = vpack.c.bf16 %v2075, %v2074
      %v2092 = vpack.c.bf16 %v2077, %v2076
      %v2093 = vpack.c.bf16 %v2079, %v2078
      %v2094 = vpack.c.bf16 %v2081, %v2080
      %v2095 = vld [vmem:[%s3 + $0x3] sm:$0x1]
      %v2097 = vlaneseq
      %v2098 = vshrl.u32 %v2097, 7
      %v2099 = vsub.s32 0, %v2098
      %v2100 = vrot.slane %v2095, %v2099
      %v2106 = vunpack.c.l.b16 %v2082
      %v2107 = vunpack.c.l.b16 %v2083
      %v2108 = vunpack.c.l.b16 %v2084
      %v2109 = vunpack.c.l.b16 %v2085
      %v2110 = vpack.c.b16 %v2107, %v2106
      %v2111 = vpack.c.b16 %v2109, %v2108
      %v2115 = vsel %vm1316, %v2086, 0
      %v2118 = vsel %vm1316, %v2087, 0
      %v2121 = vsel %vm1316, %v2088, 0
      %v2124 = vsel %vm1316, %v2089, 0
      %v2127 = vsel %vm1316, %v2090, 0
      %v2130 = vsel %vm1316, %v2091, 0
      %v2133 = vsel %vm1316, %v2092, 0
      %v2136 = vsel %vm1316, %v2093, 0
      %v2139 = vsel %vm1316, %v2094, 0
      %2141 = vmatprep.subr.bf16.mxu0 0
      %2142 = vmatpush1.bf16.msra.mxu0 %v2110
      %2143 = vmatprep.subr.bf16.mxu0 0
      %2144 = vmatpush1.bf16.msra.mxu0 %v2111
      %2145 = vmatprep.subr.bf16.mxu0 0
      %2146 = vmatpush1.bf16.msra.mxu0 0
      %2147 = vmatprep.subr.bf16.mxu0 0
      %2148 = vmatpush1.bf16.msra.mxu0 0
      %2149 = vmatprep.subr.bf16.mxu0 0
      %2150 = vmatpush1.bf16.msra.mxu0 0
      %2151 = vmatprep.subr.bf16.mxu0 0
      %2152 = vmatpush1.bf16.msra.mxu0 0
      %2153 = vmatprep.subr.bf16.mxu0 0
      %2154 = vmatpush1.bf16.msra.mxu0 0
      %2155 = vmatprep.subr.bf16.mxu0 0
      %2156 = vmatpush1.bf16.msra.mxu0 0
      %2157 = vmatprep.subr.bf16.mxu0 0
      %2158 = vmatpush1.bf16.msra.mxu0 0
      %2159 = vmatprep.subr.bf16.mxu0 0
      %2160 = vmatpush1.bf16.msra.mxu0 0
      %2161 = vmatprep.subr.bf16.mxu0 0
      %2162 = vmatpush1.bf16.msra.mxu0 0
      %2163 = vmatprep.subr.bf16.mxu0 0
      %2164 = vmatpush1.bf16.msra.mxu0 0
      %2165 = vmatprep.subr.bf16.mxu0 0
      %2166 = vmatpush1.bf16.msra.mxu0 0
      %2167 = vmatprep.subr.bf16.mxu0 0
      %2168 = vmatpush1.bf16.msra.mxu0 0
      %2169 = vmatprep.subr.bf16.mxu0 0
      %2170 = vmatpush1.bf16.msra.mxu0 0
      %2171 = vmatprep.subr.bf16.mxu0 0
      %2172 = vmatpush1.bf16.msra.mxu0 0
      %2173 = vmatprep.mubr.bf16.mxu0 0
      %2174 = vmatmul.mubr.bf16.gmra.mrb[0].mxu0 %v2115
      %v2175 = vpop.f32.mrb[0].mxu0
      %v2176 = vadd.f32 %v2100, %v2175
      %v2177 = vpop.f32.mrb[0].mxu0
      %v2178 = vpop.f32.mrb[0].mxu0
      %v2179 = vadd.f32 %v2100, %v2178
      %v2180 = vpop.f32.mrb[0].mxu0
      %2181 = vmatprep.mubr.bf16.mxu0 0
      %2182 = vmatmul.mubr.bf16.gmra.mrb[0].mxu0 %v2118
      %v2183 = vpop.f32.mrb[0].mxu0
      %v2184 = vadd.f32 %v2100, %v2183
      %v2185 = vpop.f32.mrb[0].mxu0
      %v2186 = vpop.f32.mrb[0].mxu0
      %v2187 = vadd.f32 %v2100, %v2186
      %v2188 = vpop.f32.mrb[0].mxu0
      %2189 = vmatprep.mubr.bf16.mxu0 0
      %2190 = vmatmul.mubr.bf16.gmra.mrb[0].mxu0 %v2121
      %v2191 = vpop.f32.mrb[0].mxu0
      %v2192 = vadd.f32 %v2100, %v2191
      %v2193 = vpop.f32.mrb[0].mxu0
      %v2194 = vpop.f32.mrb[0].mxu0
      %v2195 = vadd.f32 %v2100, %v2194
      %v2196 = vpop.f32.mrb[0].mxu0
      %2197 = vmatprep.mubr.bf16.mxu0 0
      %2198 = vmatmul.mubr.bf16.gmra.mrb[0].mxu0 %v2124
      %v2199 = vpop.f32.mrb[0].mxu0
      %v2200 = vadd.f32 %v2100, %v2199
      %v2201 = vpop.f32.mrb[0].mxu0
      %v2202 = vpop.f32.mrb[0].mxu0
      %v2203 = vadd.f32 %v2100, %v2202
      %v2204 = vpop.f32.mrb[0].mxu0
      %2205 = vmatprep.mubr.bf16.mxu0 0
      %2206 = vmatmul.mubr.bf16.gmra.mrb[0].mxu0 %v2127
      %v2207 = vpop.f32.mrb[0].mxu0
      %v2208 = vadd.f32 %v2100, %v2207
      %v2209 = vpop.f32.mrb[0].mxu0
      %v2210 = vpop.f32.mrb[0].mxu0
      %v2211 = vadd.f32 %v2100, %v2210
      %v2212 = vpop.f32.mrb[0].mxu0
      %2213 = vmatprep.mubr.bf16.mxu0 0
      %2214 = vmatmul.mubr.bf16.gmra.mrb[0].mxu0 %v2130
      %v2215 = vpop.f32.mrb[0].mxu0
      %v2216 = vadd.f32 %v2100, %v2215
      %v2217 = vpop.f32.mrb[0].mxu0
      %v2218 = vpop.f32.mrb[0].mxu0
      %v2219 = vadd.f32 %v2100, %v2218
      %v2220 = vpop.f32.mrb[0].mxu0
      %2221 = vmatprep.mubr.bf16.mxu0 0
      %2222 = vmatmul.mubr.bf16.gmra.mrb[0].mxu0 %v2133
      %v2223 = vpop.f32.mrb[0].mxu0
      %v2224 = vadd.f32 %v2100, %v2223
      %v2225 = vpop.f32.mrb[0].mxu0
      %v2226 = vpop.f32.mrb[0].mxu0
      %v2227 = vadd.f32 %v2100, %v2226
      %v2228 = vpop.f32.mrb[0].mxu0
      %2229 = vmatprep.mubr.bf16.mxu0 0
      %2230 = vmatmul.mubr.bf16.gmra.mrb[0].mxu0 %v2136
      %v2231 = vpop.f32.mrb[0].mxu0
      %v2232 = vadd.f32 %v2100, %v2231
      %v2233 = vpop.f32.mrb[0].mxu0
      %v2234 = vpop.f32.mrb[0].mxu0
      %v2235 = vadd.f32 %v2100, %v2234
      %v2236 = vpop.f32.mrb[0].mxu0
      %2237 = vmatprep.mubr.bf16.mxu0 0
      %2238 = vmatmul.mubr.bf16.gmra.mrb[0].mxu0 %v2139
      %v2239 = vpop.f32.mrb[0].mxu0
      %v2240 = vadd.f32 %v2100, %v2239
      %v2241 = vpop.f32.mrb[0].mxu0
      %v2242 = vpop.f32.mrb[0].mxu0
      %v2243 = vadd.f32 %v2100, %v2242
      %v2244 = vpop.f32.mrb[0].mxu0
      %2245 = vdwg.mxu0
      %v2246 = vadd.f32 %v2176, %v1539
      %v2247 = vadd.f32 %v2179, %v1540
      %v2248 = vadd.f32 %v2184, %v1541
      %v2249 = vadd.f32 %v2187, %v1542
      %v2250 = vadd.f32 %v2192, %v1543
      %v2251 = vadd.f32 %v2195, %v1544
      %v2252 = vadd.f32 %v2200, %v1545
      %v2253 = vadd.f32 %v2203, %v1546
      %v2254 = vadd.f32 %v2208, %v1547
      %v2255 = vadd.f32 %v2211, %v1548
      %v2256 = vadd.f32 %v2216, %v1549
      %v2257 = vadd.f32 %v2219, %v1550
      %v2258 = vadd.f32 %v2224, %v1551
      %v2259 = vadd.f32 %v2227, %v1552
      %v2260 = vadd.f32 %v2232, %v1553
      %v2261 = vadd.f32 %v2235, %v1554
      %v2262 = vadd.f32 %v2240, %v1555
      %v2263 = vadd.f32 %v2243, %v1556
      %v2264 = vmax.f32 %v2246, 0.0
      %v2265 = vmax.f32 %v2247, 0.0
      %v2266 = vmax.f32 %v2248, 0.0
      %v2267 = vmax.f32 %v2249, 0.0
      %v2268 = vmax.f32 %v2250, 0.0
      %v2269 = vmax.f32 %v2251, 0.0
      %v2270 = vmax.f32 %v2252, 0.0
      %v2271 = vmax.f32 %v2253, 0.0
      %v2272 = vmax.f32 %v2254, 0.0
      %v2273 = vmax.f32 %v2255, 0.0
      %v2274 = vmax.f32 %v2256, 0.0
      %v2275 = vmax.f32 %v2257, 0.0
      %v2276 = vmax.f32 %v2258, 0.0
      %v2277 = vmax.f32 %v2259, 0.0
      %v2278 = vmax.f32 %v2260, 0.0
      %v2279 = vmax.f32 %v2261, 0.0
      %v2280 = vmax.f32 %v2262, 0.0
      %v2281 = vmax.f32 %v2263, 0.0
      %2282 = vst.msk [vmem:[%s221] sm:$0xff] %vm989, %v2264
      %2283 = vst.msk [vmem:[%s221 + $0x8] sm:$0xff] %vm989, %v2265
      %2284 = vst.msk [vmem:[%s221 + $0x10] sm:$0xff] %vm989, %v2266
      %2285 = vst.msk [vmem:[%s221 + $0x18] sm:$0xff] %vm989, %v2267
      %2286 = vst.msk [vmem:[%s221 + $0x20] sm:$0xff] %vm989, %v2268
      %2287 = vst.msk [vmem:[%s221 + $0x28] sm:$0xff] %vm989, %v2269
      %2288 = vst.msk [vmem:[%s221 + $0x30] sm:$0xff] %vm989, %v2270
      %2289 = vst.msk [vmem:[%s221 + $0x38] sm:$0xff] %vm989, %v2271
      %2290 = vst.msk [vmem:[%s221 + $0x40] sm:$0xff] %vm989, %v2272
      %2291 = vst.msk [vmem:[%s221 + $0x48] sm:$0xff] %vm989, %v2273
      %2292 = vst.msk [vmem:[%s221 + $0x50] sm:$0xff] %vm989, %v2274
      %2293 = vst.msk [vmem:[%s221 + $0x58] sm:$0xff] %vm989, %v2275
      %2294 = vst.msk [vmem:[%s221 + $0x60] sm:$0xff] %vm989, %v2276
      %2295 = vst.msk [vmem:[%s221 + $0x68] sm:$0xff] %vm989, %v2277
      %2296 = vst.msk [vmem:[%s221 + $0x70] sm:$0xff] %vm989, %v2278
      %2297 = vst.msk [vmem:[%s221 + $0x78] sm:$0xff] %vm989, %v2279
      %2298 = vst.msk [vmem:[%s221 + $0x80] sm:$0xff] %vm989, %v2280
      %2299 = vst.msk [vmem:[%s221 + $0x88] sm:$0xff] %vm989, %v2281
      %s2300 = smul.u32 18, %s15
      %p2301 = scmp.lt.s32.totalorder %s2300, 35
      %s2302 = scalar_select %p2301, %s2300, 35
      %s2303 = smul.addr %s2302, 8
      %s2304 = scalar_lea.vmem %s4, %s2303
      // Predicated region
      $region37: #{_lambda_.2} parent=35 // pred_check
        %p2305 = pneg %p127
      $region38: #{_lambda_.2} parent=35 // pred_check_branch
        %2307 = sbr.rel (%p2305) target = $region40
      $region39: #{_lambda_.2} parent=35 // pred_region
        %s2308 = smul.u32 18, %s15
      $region40: #{_lambda_.2} parent=35 // pred_fallthru
        _
    $region36: #{_lambda_.2} parent=5 // pred_fallthru
      _
    %p2309 = scmp.le.s32.totalorder 2, %s10
    // Predicated region
    $region41: #{_lambda_.2} parent=5 // pred_check
      %p2310 = pneg %p2309
    $region42: #{_lambda_.2} parent=5 // pred_check_branch
      %2312 = sbr.rel (%p2310) target = $region44
    $region43: #{_lambda_.2} parent=5 // pred_region
      %s2313 = ssub.s32 %s10, 2
      // Predicated region
      $region45: #{_lambda_.2} parent=43 // pred_check
        %p2314 = pneg %p133
      $region46: #{_lambda_.2} parent=43 // pred_check_branch
        %2316 = sbr.rel (%p2314) target = $region48
      $region47: #{_lambda_.2} parent=43 // pred_region
        %s2317 = smul.u32 18, %s16
        %p2318 = scmp.lt.s32.totalorder %s2317, 35
        %s2319 = scalar_select %p2318, %s2317, 35
        %s2320 = smul.addr %s2319, 8
        %s2321 = scalar_lea.vmem %s4, %s2320
      $region48: #{_lambda_.2} parent=43 // pred_fallthru
        _
    $region44: #{_lambda_.2} parent=5 // pred_fallthru
      _
  $region6: #{_lambda_.2} parent=0 // loop_footer
    %s14 = sadd.s32 1, %s10
  $region7: #{_lambda_.2} parent=0 // loop_footer_branch
    %9 = sbr.rel target = $region3
  $region8: #{_lambda_.2} parent=0 // loop_exit
    _

</llo_original>
